<compile_context>
chip_gen: v7x
topology: tpu7x:2x2x1
jax: 0.10.0
libtpu: 0.0.40
codegen_flags: <defaults>
</compile_context>

<pallas_src>
import functools

import jax
import jax.numpy as jnp
from jax.experimental import pallas as pl
from jax.experimental.pallas import tpu as pltpu

_LANE = 128

_WEIGHT_ORDER = (
    "vis_w", "vis_b", "lang_w", "lang_b",
    "vin_w", "vin_b", "lin_w", "lin_b",
    "wq", "bq", "wkv", "bkv", "wo", "bo", "ln1_g", "ln1_b",
    "ffn1_w", "ffn1_b", "ffn2_w", "ffn2_b", "ln2_g", "ln2_b",
    "pol_w", "pol_b", "head_w", "head_b",
)

# Single-buffer the constant weight blocks if this JAX version supports it.
try:
    _W_SPEC_KW = {"pipeline_mode": pl.Buffered(1)}
    pl.BlockSpec((8, 128), lambda i: (0, 0), **_W_SPEC_KW)
except Exception:   # pragma: no cover - older JAX fallback
    _W_SPEC_KW = {}


def _rup(x):
    return max(_LANE, ((x + _LANE - 1) // _LANE) * _LANE)


def _rup8(x):
    return ((x + 7) // 8) * 8


# ----------------------------------------------------------------------------
# Fused kernel: one grid step == TILE_B batch elements.
# ----------------------------------------------------------------------------
def _vlnce_fused_kernel(x_ref, emb_ref, *refs,
                        tile_b, nv_p, nv, l_tok, heads, dh, hd):
    (vis_w, vis_b, lang_w, lang_b,
     vin_w, vin_b, lin_w, lin_b,
     wq, bq, wkv, bkv, wo, bo, ln1_g, ln1_b,
     ffn1_w, ffn1_b, ffn2_w, ffn2_b, ln2_g, ln2_b,
     pol_w, pol_b, head_w, head_b, o_ref) = refs

    f32 = jnp.float32
    bf16 = jnp.bfloat16
    hd_p = vin_w.shape[1]
    inv_hd = 1.0 / float(hd)
    inv_nv = 1.0 / float(nv)

    # lane index over the packed hidden features
    lane = jax.lax.broadcasted_iota(jnp.int32, (1, hd_p), 1)
    fmask = (lane < hd).astype(f32)                      # real hidden lanes (for LN var)

    def mm(x, w_ref, b_ref=None, act=None):
        acc = jnp.dot(x.astype(bf16), w_ref[...], preferred_element_type=f32)
        if b_ref is not None:
            acc = acc + b_ref[...]
        if act == "relu":
            acc = jnp.maximum(acc, 0.0)
        elif act == "tanh":
            acc = jnp.tanh(acc)
        return acc

    def ln(y, g_ref, b_ref):
        # padded feature lanes of y are exactly zero -> sum/hd is the true mean;
        # variance is masked to the real features so stats match the reference.
        mean = jnp.sum(y, axis=-1, keepdims=True) * inv_hd
        yc = y - mean
        var = jnp.sum(yc * yc * fmask, axis=-1, keepdims=True) * inv_hd
        yn = yc * jax.lax.rsqrt(var + 1e-5)
        return yn * g_ref[...] + b_ref[...]

    # ---- token-wise GEMMs over all TILE_B batch elements at once -------------
    vis = mm(x_ref[...], vis_w, vis_b)                   # [T*Nvp, vd_p]
    lng = mm(emb_ref[...], lang_w, lang_b)               # [T*L,   ld_p]
    vh = mm(vis, vin_w, vin_b)                           # [T*Nvp, hd_p]
    lh = mm(lng, lin_w, lin_b)                           # [T*L,   hd_p]

    # fused QKV (1/sqrt(dh) folded into wq/bq)
    q = mm(vh, wq, bq)                                   # [T*Nvp, hd_p]
    kv = mm(lh, wkv, bkv)                                # [T*L, 2*hd_p]
    k = kv[:, :hd_p]
    v = kv[:, hd_p:]

    # ---- per-(batch, head) cross attention; heads stay packed in hd_p lanes --
    head_masks = [((lane >= h * dh) & (lane < (h + 1) * dh)).astype(f32)
                  for h in range(heads)]
    outs = []
    for b in range(tile_b):
        qb = q[b * nv_p:(b + 1) * nv_p, :]
        kb = k[b * l_tok:(b + 1) * l_tok, :].astype(bf16)
        vb = v[b * l_tok:(b + 1) * l_tok, :]
        acc_b = jnp.zeros((nv_p, hd_p), f32)
        for h in range(heads):
            qm = (qb * head_masks[h]).astype(bf16)
            s = jax.lax.dot_general(qm, kb, (((1,), (1,)), ((), ())),
                                    preferred_element_type=f32)       # [Nvp, L]
            s = s - jnp.max(s, axis=-1, keepdims=True)
            p = jnp.exp(s)
            p = p * pl.reciprocal(jnp.sum(p, axis=-1, keepdims=True), approx=True)
            vm = (vb * head_masks[h]).astype(bf16)
            acc_b = acc_b + jnp.dot(p.astype(bf16), vm,
                                    preferred_element_type=f32)       # [Nvp, hd_p]
        outs.append(acc_b)
    attn = jnp.concatenate(outs, axis=0)                 # [T*Nvp, hd_p]

    # ---- output projection + residual + LN1 ----------------------------------
    vh = ln(mm(attn, wo, bo) + vh, ln1_g, ln1_b)

    # ---- FFN + residual + LN2 -------------------------------------------------
    ff = mm(vh, ffn1_w, ffn1_b, act="relu")
    vh = ln(mm(ff, ffn2_w, ffn2_b) + vh, ln2_g, ln2_b)

    # ---- mean-pool real visual tokens per batch element (block-diag matmul) --
    r = jax.lax.broadcasted_iota(jnp.int32, (tile_b, tile_b * nv_p), 0)
    c = jax.lax.broadcasted_iota(jnp.int32, (tile_b, tile_b * nv_p), 1)
    pool = ((c >= r * nv_p) & (c < r * nv_p + nv)).astype(f32) * inv_nv
    pooled = jnp.dot(pool, vh, preferred_element_type=f32)            # [T, hd_p]

    # ---- policy MLP, fused logits+value head (lane-dense 128-wide store) -----
    hpol = mm(pooled, pol_w, pol_b, act="tanh")                       # [T, ph_p]
    o_ref[...] = mm(hpol, head_w, head_b).astype(o_ref.dtype)         # [T, out_p]


# ----------------------------------------------------------------------------
# Parameter construction: logical params, then lane-padded / fused / bf16-cast.
# ----------------------------------------------------------------------------
def init_params(key, cfg):
    p = cfg["visual_encoder"]["patch_size"]
    vocab = cfg["lang_encoder"]["vocab_size"]
    emb = cfg["lang_encoder"]["embed_dim"]
    vd = cfg["cross_modal"]["visual_dim"]
    ld = cfg["cross_modal"]["lang_dim"]
    hd = cfg["cross_modal"]["hidden_dim"]
    heads = cfg["cross_modal"]["num_heads"]
    ph = cfg["policy"]["hidden_dim"]
    na = cfg["policy"]["action_space"]
    ffn = 4 * hd
    assert hd % heads == 0
    dh = hd // heads

    vd_p, ld_p, hd_p = _rup(vd), _rup(ld), _rup(hd)
    emb_p, ph_p, ffn_p = _rup(emb), _rup(ph), _rup(ffn)
    out_p = _rup(na + 1)
    cpp = 4 * p * p
    bf16, f32 = jnp.bfloat16, jnp.float32

    def nrm(k, shape):
        return (0.02 * jax.random.normal(k, shape)).astype(f32)

    ks = iter(jax.random.split(key, 16))

    vis_w = nrm(next(ks), (cpp, vd))
    emb_t = nrm(next(ks), (vocab, emb))
    lang_w = nrm(next(ks), (emb, ld))
    vin_w = nrm(next(ks), (vd, hd))
    lin_w = nrm(next(ks), (ld, hd))
    wq = nrm(next(ks), (hd, hd))
    wk = nrm(next(ks), (hd, hd))
    wv = nrm(next(ks), (hd, hd))
    wo = nrm(next(ks), (hd, hd))
    ffn1_w = nrm(next(ks), (hd, ffn))
    ffn2_w = nrm(next(ks), (ffn, hd))
    pol_w = nrm(next(ks), (hd, ph))
    act_w = nrm(next(ks), (ph, na))
    val_w = nrm(next(ks), (ph, 1))

    def pad2(w, r, c):
        return jnp.zeros((r, c), f32).at[:w.shape[0], :w.shape[1]].set(w)

    def zb(c):
        return jnp.zeros((1, c), f32)

    scale = 1.0 / float(dh) ** 0.5                       # folded into wq (bq is zero)
    head_w = jnp.concatenate([act_w, val_w], axis=1)     # [ph, na+1]

    params = {
        # bf16 embedding table: the data-dependent gather stays host-side.
        "emb": pad2(emb_t, vocab, emb_p).astype(bf16),
        "vis_w": pad2(vis_w, cpp, vd_p).astype(bf16), "vis_b": zb(vd_p),
        "lang_w": pad2(lang_w, emb_p, ld_p).astype(bf16), "lang_b": zb(ld_p),
        "vin_w": pad2(vin_w, vd_p, hd_p).astype(bf16), "vin_b": zb(hd_p),
        "lin_w": pad2(lin_w, ld_p, hd_p).astype(bf16), "lin_b": zb(hd_p),
        "wq": pad2(wq * scale, hd_p, hd_p).astype(bf16), "bq": zb(hd_p),
        "wkv": jnp.concatenate([pad2(wk, hd_p, hd_p), pad2(wv, hd_p, hd_p)],
                               axis=1).astype(bf16),
        "bkv": zb(2 * hd_p),
        "wo": pad2(wo, hd_p, hd_p).astype(bf16), "bo": zb(hd_p),
        "ln1_g": pad2(jnp.ones((1, hd), f32), 1, hd_p), "ln1_b": zb(hd_p),
        "ffn1_w": pad2(ffn1_w, hd_p, ffn_p).astype(bf16), "ffn1_b": zb(ffn_p),
        "ffn2_w": pad2(ffn2_w, ffn_p, hd_p).astype(bf16), "ffn2_b": zb(hd_p),
        "ln2_g": pad2(jnp.ones((1, hd), f32), 1, hd_p), "ln2_b": zb(hd_p),
        "pol_w": pad2(pol_w, hd_p, ph_p).astype(bf16), "pol_b": zb(ph_p),
        "head_w": pad2(head_w, ph_p, out_p).astype(bf16), "head_b": zb(out_p),
    }
    return params


# ----------------------------------------------------------------------------
# TILE_B selection from a conservative VMEM budget (fits v7x 64 MiB/TC).
# ----------------------------------------------------------------------------
def _choose_tile_b(nv_p, l_tok, cpp, emb_p, vd_p, ld_p, hd_p, ffn_p, ph_p,
                   weight_bytes):
    # TODO(synk): per-generation budget / CORE_PARALLEL via pltpu.get_tpu_info().
    budget = 32 * 1024 * 1024
    for tile_b in (64, 32, 16, 8):
        tv, tl = tile_b * nv_p, tile_b * l_tok
        stream = 2 * 2 * (tv * cpp + tl * emb_p)                  # bf16, double-buffered
        acts = 4 * (tv * (vd_p + 4 * hd_p + ffn_p)
                    + tl * (ld_p + 3 * hd_p)
                    + tile_b * (ph_p + hd_p))                     # f32 working set (approx)
        total = weight_bytes + stream + acts
        if total <= budget:
            return tile_b, total
    tv, tl = 8 * nv_p, 8 * l_tok
    return 8, weight_bytes + 2 * 2 * (tv * cpp + tl * emb_p) + 4 * tv * ffn_p


# ----------------------------------------------------------------------------
# Forward pass: host-side glue + one fused pallas_call.
# ----------------------------------------------------------------------------
def vlnce_forward(params, rgb, depth, instr, *, cfg):
    b, _, h, w = rgb.shape
    p = cfg["visual_encoder"]["patch_size"]
    hd = cfg["cross_modal"]["hidden_dim"]
    heads = cfg["cross_modal"]["num_heads"]
    na = cfg["policy"]["action_space"]
    dh = hd // heads
    out_p = _rup(na + 1)

    # patchify NCHW -> [B, Nv, C*P*P] (channel-major per patch, Conv2d-compatible),
    # pad tokens to a multiple of 8 sublanes, flatten batch+tokens, cast to bf16.
    nv = (h // p) * (w // p)
    nv_p = _rup8(nv)
    cpp = 4 * p * p
    x = jnp.concatenate([rgb, depth], axis=1)
    x = x.reshape(b, 4, h // p, p, w // p, p)
    x = x.transpose(0, 2, 4, 1, 3, 5).reshape(b, nv, cpp)
    if nv_p > nv:
        x = jnp.pad(x, ((0, 0), (0, nv_p - nv), (0, 0)))
    x = x.reshape(b * nv_p, cpp).astype(jnp.bfloat16)

    # TODO(synk): token-embedding gather is data-dependent; stays in plain JAX.
    emb = jnp.take(params["emb"], instr, axis=0)              # [B, L, emb_p] bf16
    l_tok, emb_p = emb.shape[1], emb.shape[2]
    emb = emb.reshape(b * l_tok, emb_p)

    weights = [params[k] for k in _WEIGHT_ORDER]
    weight_bytes = sum(int(wt.size) * wt.dtype.itemsize for wt in weights)

    vd_p = params["vis_w"].shape[1]
    ld_p = params["lang_w"].shape[1]
    hd_p = params["vin_w"].shape[1]
    ffn_p = params["ffn1_w"].shape[1]
    ph_p = params["pol_w"].shape[1]

    tile_b, vmem_est = _choose_tile_b(nv_p, l_tok, cpp, emb_p, vd_p, ld_p,
                                      hd_p, ffn_p, ph_p, weight_bytes)
    tile_b = min(tile_b, max(8, _rup8(b)))                    # don't over-pad tiny batches
    b_pad = -(-b // tile_b) * tile_b

    if b_pad > b:
        x = jnp.pad(x, ((0, (b_pad - b) * nv_p), (0, 0)))
        emb = jnp.pad(emb, ((0, (b_pad - b) * l_tok), (0, 0)))

    in_specs = [
        pl.BlockSpec((tile_b * nv_p, cpp), lambda i: (i, 0)),
        pl.BlockSpec((tile_b * l_tok, emb_p), lambda i: (i, 0)),
    ] + [pl.BlockSpec(wt.shape, lambda i: (0, 0), **_W_SPEC_KW) for wt in weights]

    vmem_limit = int(min(56 * 1024 * 1024, max(2 * vmem_est, 32 * 1024 * 1024)))

    out = pl.pallas_call(
        functools.partial(_vlnce_fused_kernel, tile_b=tile_b, nv_p=nv_p, nv=nv,
                          l_tok=l_tok, heads=heads, dh=dh, hd=hd),
        out_shape=jax.ShapeDtypeStruct((b_pad, out_p), jnp.float32),
        grid=(b_pad // tile_b,),
        in_specs=in_specs,
        out_specs=pl.BlockSpec((tile_b, out_p), lambda i: (i, 0)),
        compiler_params=pltpu.CompilerParams(
            dimension_semantics=("parallel",),
            vmem_limit_bytes=vmem_limit),
    )(x, emb, *weights)

    logits = out[:b, :na]
    value = out[:b, na:na + 1]
    return logits, value


# ----------------------------------------------------------------------------
if __name__ == "__main__":
    cfg = {
        "visual_encoder": {"type": "patch_cnn", "patch_size": 8},
        "lang_encoder": {"type": "embedding", "vocab_size": 50, "embed_dim": 32},
        "cross_modal": {"visual_dim": 32, "lang_dim": 32, "hidden_dim": 32,
                        "num_heads": 2, "num_layers": 1, "dropout": 0.0},
        "policy": {"hidden_dim": 32, "action_space": 4},
    }

    key = jax.random.PRNGKey(0)
    kp, kr, kd, ki = jax.random.split(key, 4)

    B, H, W, L = 2, 16, 16, 8
    rgb = jax.random.normal(kr, (B, 3, H, W), dtype=jnp.float32)
    depth = jax.random.normal(kd, (B, 1, H, W), dtype=jnp.float32)
    instr = jax.random.randint(ki, (B, L), 0, cfg["lang_encoder"]["vocab_size"],
                               dtype=jnp.int32)

    params = init_params(kp, cfg)

    fwd = jax.jit(functools.partial(vlnce_forward, cfg=cfg))
    logits, value = fwd(params, rgb, depth, instr)
    jax.block_until_ready((logits, value))

    assert logits.shape == (B, cfg["policy"]["action_space"])
    assert value.shape == (B, 1)
    assert bool(jnp.all(jnp.isfinite(logits))) and bool(jnp.all(jnp.isfinite(value)))
    print("KERNEL_OK")
</pallas_src>

<mosaic_0001>
module attributes {stable_mosaic.version = 11 : i64} {
  func.func @_vlnce_fused_kernel(%arg0: i32, %arg1: memref<64x256xbf16, #tpu.memory_space<vmem>>, %arg2: memref<64x128xbf16, #tpu.memory_space<vmem>>, %arg3: memref<256x128xbf16, #tpu.memory_space<vmem>>, %arg4: memref<1x128xf32, #tpu.memory_space<vmem>>, %arg5: memref<128x128xbf16, #tpu.memory_space<vmem>>, %arg6: memref<1x128xf32, #tpu.memory_space<vmem>>, %arg7: memref<128x128xbf16, #tpu.memory_space<vmem>>, %arg8: memref<1x128xf32, #tpu.memory_space<vmem>>, %arg9: memref<128x128xbf16, #tpu.memory_space<vmem>>, %arg10: memref<1x128xf32, #tpu.memory_space<vmem>>, %arg11: memref<128x128xbf16, #tpu.memory_space<vmem>>, %arg12: memref<1x128xf32, #tpu.memory_space<vmem>>, %arg13: memref<128x256xbf16, #tpu.memory_space<vmem>>, %arg14: memref<1x256xf32, #tpu.memory_space<vmem>>, %arg15: memref<128x128xbf16, #tpu.memory_space<vmem>>, %arg16: memref<1x128xf32, #tpu.memory_space<vmem>>, %arg17: memref<1x128xf32, #tpu.memory_space<vmem>>, %arg18: memref<1x128xf32, #tpu.memory_space<vmem>>, %arg19: memref<128x128xbf16, #tpu.memory_space<vmem>>, %arg20: memref<1x128xf32, #tpu.memory_space<vmem>>, %arg21: memref<128x128xbf16, #tpu.memory_space<vmem>>, %arg22: memref<1x128xf32, #tpu.memory_space<vmem>>, %arg23: memref<1x128xf32, #tpu.memory_space<vmem>>, %arg24: memref<1x128xf32, #tpu.memory_space<vmem>>, %arg25: memref<128x128xbf16, #tpu.memory_space<vmem>>, %arg26: memref<1x128xf32, #tpu.memory_space<vmem>>, %arg27: memref<128x128xbf16, #tpu.memory_space<vmem>>, %arg28: memref<1x128xf32, #tpu.memory_space<vmem>>, %arg29: memref<8x128xf32, #tpu.memory_space<vmem>>) attributes {dimension_semantics = [#tpu.dimension_semantics<parallel>], iteration_bounds = array<i64: 1>, scalar_prefetch = 0 : i64, scratch_operands = 0 : i64, tpu.core_type = #tpu.core_type<tc>, window_params = [{transform_indices = @transform_0, window_bounds = array<i64: 64, 256>}, {transform_indices = @transform_1, window_bounds = array<i64: 64, 128>}, {pipeline_mode = #tpu.pipeline_mode<synchronous>, transform_indices = @transform_2, window_bounds = array<i64: 256, 128>}, {pipeline_mode = #tpu.pipeline_mode<synchronous>, transform_indices = @transform_3, window_bounds = array<i64: 1, 128>}, {pipeline_mode = #tpu.pipeline_mode<synchronous>, transform_indices = @transform_4, window_bounds = array<i64: 128, 128>}, {pipeline_mode = #tpu.pipeline_mode<synchronous>, transform_indices = @transform_5, window_bounds = array<i64: 1, 128>}, {pipeline_mode = #tpu.pipeline_mode<synchronous>, transform_indices = @transform_6, window_bounds = array<i64: 128, 128>}, {pipeline_mode = #tpu.pipeline_mode<synchronous>, transform_indices = @transform_7, window_bounds = array<i64: 1, 128>}, {pipeline_mode = #tpu.pipeline_mode<synchronous>, transform_indices = @transform_8, window_bounds = array<i64: 128, 128>}, {pipeline_mode = #tpu.pipeline_mode<synchronous>, transform_indices = @transform_9, window_bounds = array<i64: 1, 128>}, {pipeline_mode = #tpu.pipeline_mode<synchronous>, transform_indices = @transform_10, window_bounds = array<i64: 128, 128>}, {pipeline_mode = #tpu.pipeline_mode<synchronous>, transform_indices = @transform_11, window_bounds = array<i64: 1, 128>}, {pipeline_mode = #tpu.pipeline_mode<synchronous>, transform_indices = @transform_12, window_bounds = array<i64: 128, 256>}, {pipeline_mode = #tpu.pipeline_mode<synchronous>, transform_indices = @transform_13, window_bounds = array<i64: 1, 256>}, {pipeline_mode = #tpu.pipeline_mode<synchronous>, transform_indices = @transform_14, window_bounds = array<i64: 128, 128>}, {pipeline_mode = #tpu.pipeline_mode<synchronous>, transform_indices = @transform_15, window_bounds = array<i64: 1, 128>}, {pipeline_mode = #tpu.pipeline_mode<synchronous>, transform_indices = @transform_16, window_bounds = array<i64: 1, 128>}, {pipeline_mode = #tpu.pipeline_mode<synchronous>, transform_indices = @transform_17, window_bounds = array<i64: 1, 128>}, {pipeline_mode = #tpu.pipeline_mode<synchronous>, transform_indices = @transform_18, window_bounds = array<i64: 128, 128>}, {pipeline_mode = #tpu.pipeline_mode<synchronous>, transform_indices = @transform_19, window_bounds = array<i64: 1, 128>}, {pipeline_mode = #tpu.pipeline_mode<synchronous>, transform_indices = @transform_20, window_bounds = array<i64: 128, 128>}, {pipeline_mode = #tpu.pipeline_mode<synchronous>, transform_indices = @transform_21, window_bounds = array<i64: 1, 128>}, {pipeline_mode = #tpu.pipeline_mode<synchronous>, transform_indices = @transform_22, window_bounds = array<i64: 1, 128>}, {pipeline_mode = #tpu.pipeline_mode<synchronous>, transform_indices = @transform_23, window_bounds = array<i64: 1, 128>}, {pipeline_mode = #tpu.pipeline_mode<synchronous>, transform_indices = @transform_24, window_bounds = array<i64: 128, 128>}, {pipeline_mode = #tpu.pipeline_mode<synchronous>, transform_indices = @transform_25, window_bounds = array<i64: 1, 128>}, {pipeline_mode = #tpu.pipeline_mode<synchronous>, transform_indices = @transform_26, window_bounds = array<i64: 128, 128>}, {pipeline_mode = #tpu.pipeline_mode<synchronous>, transform_indices = @transform_27, window_bounds = array<i64: 1, 128>}, {transform_indices = @transform_28, window_bounds = array<i64: 8, 128>}]} {
    %0 = tpu.iota {dimensions = array<i32: 1>} : vector<1x128xi32>
    %c32_i32 = arith.constant 32 : i32
    %1 = vector.broadcast %c32_i32 : i32 to vector<1x128xi32>
    %2 = arith.cmpi slt, %0, %1 : vector<1x128xi32>
    %3 = arith.extui %2 : vector<1x128xi1> to vector<1x128xi32>
    %4 = arith.sitofp %3 : vector<1x128xi32> to vector<1x128xf32>
    %c0 = arith.constant 0 : index
    %c0_0 = arith.constant 0 : index
    %5 = vector.load %arg1[%c0, %c0_0] : memref<64x256xbf16, #tpu.memory_space<vmem>>, vector<64x256xbf16>
    %c0_1 = arith.constant 0 : index
    %c0_2 = arith.constant 0 : index
    %6 = vector.load %arg3[%c0_1, %c0_2] : memref<256x128xbf16, #tpu.memory_space<vmem>>, vector<256x128xbf16>
    %cst = arith.constant dense<0.000000e+00> : vector<64x128xf32>
    %7 = tpu.matmul %5, %6, %cst {dimension_numbers = #tpu.dot_dimension_numbers<[1], [0], [0], [1], [0, 0, 1, 1], [], []>} : vector<64x256xbf16>, vector<256x128xbf16>, vector<64x128xf32> -> vector<64x128xf32>
    %c0_3 = arith.constant 0 : index
    %c0_4 = arith.constant 0 : index
    %8 = vector.load %arg4[%c0_3, %c0_4] : memref<1x128xf32, #tpu.memory_space<vmem>>, vector<1x128xf32>
    %9 = vector.broadcast %8 : vector<1x128xf32> to vector<64x128xf32>
    %10 = arith.addf %7, %9 : vector<64x128xf32>
    %c0_5 = arith.constant 0 : index
    %c0_6 = arith.constant 0 : index
    %11 = vector.load %arg2[%c0_5, %c0_6] : memref<64x128xbf16, #tpu.memory_space<vmem>>, vector<64x128xbf16>
    %c0_7 = arith.constant 0 : index
    %c0_8 = arith.constant 0 : index
    %12 = vector.load %arg5[%c0_7, %c0_8] : memref<128x128xbf16, #tpu.memory_space<vmem>>, vector<128x128xbf16>
    %cst_9 = arith.constant dense<0.000000e+00> : vector<64x128xf32>
    %13 = tpu.matmul %11, %12, %cst_9 {dimension_numbers = #tpu.dot_dimension_numbers<[1], [0], [0], [1], [0, 0, 1, 1], [], []>} : vector<64x128xbf16>, vector<128x128xbf16>, vector<64x128xf32> -> vector<64x128xf32>
    %c0_10 = arith.constant 0 : index
    %c0_11 = arith.constant 0 : index
    %14 = vector.load %arg6[%c0_10, %c0_11] : memref<1x128xf32, #tpu.memory_space<vmem>>, vector<1x128xf32>
    %15 = vector.broadcast %14 : vector<1x128xf32> to vector<64x128xf32>
    %16 = arith.addf %13, %15 : vector<64x128xf32>
    %17 = arith.truncf %10 : vector<64x128xf32> to vector<64x128xbf16>
    %c0_12 = arith.constant 0 : index
    %c0_13 = arith.constant 0 : index
    %18 = vector.load %arg7[%c0_12, %c0_13] : memref<128x128xbf16, #tpu.memory_space<vmem>>, vector<128x128xbf16>
    %cst_14 = arith.constant dense<0.000000e+00> : vector<64x128xf32>
    %19 = tpu.matmul %17, %18, %cst_14 {dimension_numbers = #tpu.dot_dimension_numbers<[1], [0], [0], [1], [0, 0, 1, 1], [], []>} : vector<64x128xbf16>, vector<128x128xbf16>, vector<64x128xf32> -> vector<64x128xf32>
    %c0_15 = arith.constant 0 : index
    %c0_16 = arith.constant 0 : index
    %20 = vector.load %arg8[%c0_15, %c0_16] : memref<1x128xf32, #tpu.memory_space<vmem>>, vector<1x128xf32>
    %21 = vector.broadcast %20 : vector<1x128xf32> to vector<64x128xf32>
    %22 = arith.addf %19, %21 : vector<64x128xf32>
    %23 = arith.truncf %16 : vector<64x128xf32> to vector<64x128xbf16>
    %c0_17 = arith.constant 0 : index
    %c0_18 = arith.constant 0 : index
    %24 = vector.load %arg9[%c0_17, %c0_18] : memref<128x128xbf16, #tpu.memory_space<vmem>>, vector<128x128xbf16>
    %cst_19 = arith.constant dense<0.000000e+00> : vector<64x128xf32>
    %25 = tpu.matmul %23, %24, %cst_19 {dimension_numbers = #tpu.dot_dimension_numbers<[1], [0], [0], [1], [0, 0, 1, 1], [], []>} : vector<64x128xbf16>, vector<128x128xbf16>, vector<64x128xf32> -> vector<64x128xf32>
    %c0_20 = arith.constant 0 : index
    %c0_21 = arith.constant 0 : index
    %26 = vector.load %arg10[%c0_20, %c0_21] : memref<1x128xf32, #tpu.memory_space<vmem>>, vector<1x128xf32>
    %27 = vector.broadcast %26 : vector<1x128xf32> to vector<64x128xf32>
    %28 = arith.addf %25, %27 : vector<64x128xf32>
    %29 = arith.truncf %22 : vector<64x128xf32> to vector<64x128xbf16>
    %c0_22 = arith.constant 0 : index
    %c0_23 = arith.constant 0 : index
    %30 = vector.load %arg11[%c0_22, %c0_23] : memref<128x128xbf16, #tpu.memory_space<vmem>>, vector<128x128xbf16>
    %cst_24 = arith.constant dense<0.000000e+00> : vector<64x128xf32>
    %31 = tpu.matmul %29, %30, %cst_24 {dimension_numbers = #tpu.dot_dimension_numbers<[1], [0], [0], [1], [0, 0, 1, 1], [], []>} : vector<64x128xbf16>, vector<128x128xbf16>, vector<64x128xf32> -> vector<64x128xf32>
    %c0_25 = arith.constant 0 : index
    %c0_26 = arith.constant 0 : index
    %32 = vector.load %arg12[%c0_25, %c0_26] : memref<1x128xf32, #tpu.memory_space<vmem>>, vector<1x128xf32>
    %33 = vector.broadcast %32 : vector<1x128xf32> to vector<64x128xf32>
    %34 = arith.addf %31, %33 : vector<64x128xf32>
    %35 = arith.truncf %28 : vector<64x128xf32> to vector<64x128xbf16>
    %c0_27 = arith.constant 0 : index
    %c0_28 = arith.constant 0 : index
    %36 = vector.load %arg13[%c0_27, %c0_28] : memref<128x256xbf16, #tpu.memory_space<vmem>>, vector<128x256xbf16>
    %cst_29 = arith.constant dense<0.000000e+00> : vector<64x256xf32>
    %37 = tpu.matmul %35, %36, %cst_29 {dimension_numbers = #tpu.dot_dimension_numbers<[1], [0], [0], [1], [0, 0, 1, 1], [], []>} : vector<64x128xbf16>, vector<128x256xbf16>, vector<64x256xf32> -> vector<64x256xf32>
    %c0_30 = arith.constant 0 : index
    %c0_31 = arith.constant 0 : index
    %38 = vector.load %arg14[%c0_30, %c0_31] : memref<1x256xf32, #tpu.memory_space<vmem>>, vector<1x256xf32>
    %39 = vector.broadcast %38 : vector<1x256xf32> to vector<64x256xf32>
    %40 = arith.addf %37, %39 : vector<64x256xf32>
    %41 = vector.extract_strided_slice %40 {offsets = [0, 0], sizes = [64, 128], strides = [1, 1]} : vector<64x256xf32> to vector<64x128xf32>
    %42 = vector.extract_strided_slice %40 {offsets = [0, 128], sizes = [64, 128], strides = [1, 1]} : vector<64x256xf32> to vector<64x128xf32>
    %c0_i32 = arith.constant 0 : i32
    %43 = vector.broadcast %c0_i32 : i32 to vector<1x128xi32>
    %44 = arith.cmpi sge, %0, %43 : vector<1x128xi32>
    %c16_i32 = arith.constant 16 : i32
    %45 = vector.broadcast %c16_i32 : i32 to vector<1x128xi32>
    %46 = arith.cmpi slt, %0, %45 : vector<1x128xi32>
    %47 = arith.andi %44, %46 : vector<1x128xi1>
    %48 = arith.extui %47 : vector<1x128xi1> to vector<1x128xi32>
    %49 = arith.sitofp %48 : vector<1x128xi32> to vector<1x128xf32>
    %c16_i32_32 = arith.constant 16 : i32
    %50 = vector.broadcast %c16_i32_32 : i32 to vector<1x128xi32>
    %51 = arith.cmpi sge, %0, %50 : vector<1x128xi32>
    %c32_i32_33 = arith.constant 32 : i32
    %52 = vector.broadcast %c32_i32_33 : i32 to vector<1x128xi32>
    %53 = arith.cmpi slt, %0, %52 : vector<1x128xi32>
    %54 = arith.andi %51, %53 : vector<1x128xi1>
    %55 = arith.extui %54 : vector<1x128xi1> to vector<1x128xi32>
    %56 = arith.sitofp %55 : vector<1x128xi32> to vector<1x128xf32>
    %57 = vector.extract_strided_slice %34 {offsets = [0, 0], sizes = [8, 128], strides = [1, 1]} : vector<64x128xf32> to vector<8x128xf32>
    %58 = vector.extract_strided_slice %41 {offsets = [0, 0], sizes = [8, 128], strides = [1, 1]} : vector<64x128xf32> to vector<8x128xf32>
    %59 = arith.truncf %58 : vector<8x128xf32> to vector<8x128xbf16>
    %60 = vector.extract_strided_slice %42 {offsets = [0, 0], sizes = [8, 128], strides = [1, 1]} : vector<64x128xf32> to vector<8x128xf32>
    %cst_34 = arith.constant 0.000000e+00 : f32
    %61 = vector.broadcast %cst_34 : f32 to vector<8x128xf32>
    %62 = vector.broadcast %49 : vector<1x128xf32> to vector<8x128xf32>
    %63 = arith.mulf %57, %62 : vector<8x128xf32>
    %64 = arith.truncf %63 : vector<8x128xf32> to vector<8x128xbf16>
    %cst_35 = arith.constant dense<0.000000e+00> : vector<8x8xf32>
    %65 = tpu.matmul %64, %59, %cst_35 {dimension_numbers = #tpu.dot_dimension_numbers<[1], [1], [0], [0], [0, 0, 1, 0], [], []>} : vector<8x128xbf16>, vector<8x128xbf16>, vector<8x8xf32> -> vector<8x8xf32>
    %cst_36 = arith.constant dense<0xFF800000> : vector<8xf32>
    %66 = vector.multi_reduction <maximumf>, %65, %cst_36 [1] : vector<8x8xf32> to vector<8xf32>
    %67 = vector.shape_cast %66 : vector<8xf32> to vector<8x1xf32>
    %68 = vector.broadcast %67 : vector<8x1xf32> to vector<8x8xf32>
    %69 = arith.subf %65, %68 : vector<8x8xf32>
    %70 = math.exp %69 : vector<8x8xf32>
    %cst_37 = arith.constant dense<0.000000e+00> : vector<8xf32>
    %71 = vector.multi_reduction <add>, %70, %cst_37 [1] : vector<8x8xf32> to vector<8xf32>
    %72 = vector.shape_cast %71 : vector<8xf32> to vector<8x1xf32>
    %73 = tpu.reciprocal %72 {approx = true} : vector<8x1xf32> -> vector<8x1xf32>
    %74 = vector.broadcast %73 : vector<8x1xf32> to vector<8x8xf32>
    %75 = arith.mulf %70, %74 : vector<8x8xf32>
    %76 = vector.broadcast %49 : vector<1x128xf32> to vector<8x128xf32>
    %77 = arith.mulf %60, %76 : vector<8x128xf32>
    %78 = arith.truncf %77 : vector<8x128xf32> to vector<8x128xbf16>
    %79 = arith.truncf %75 : vector<8x8xf32> to vector<8x8xbf16>
    %cst_38 = arith.constant dense<0.000000e+00> : vector<8x128xf32>
    %80 = tpu.matmul %79, %78, %cst_38 {dimension_numbers = #tpu.dot_dimension_numbers<[1], [0], [0], [1], [0, 0, 1, 1], [], []>} : vector<8x8xbf16>, vector<8x128xbf16>, vector<8x128xf32> -> vector<8x128xf32>
    %81 = arith.addf %61, %80 : vector<8x128xf32>
    %82 = vector.broadcast %56 : vector<1x128xf32> to vector<8x128xf32>
    %83 = arith.mulf %57, %82 : vector<8x128xf32>
    %84 = arith.truncf %83 : vector<8x128xf32> to vector<8x128xbf16>
    %cst_39 = arith.constant dense<0.000000e+00> : vector<8x8xf32>
    %85 = tpu.matmul %84, %59, %cst_39 {dimension_numbers = #tpu.dot_dimension_numbers<[1], [1], [0], [0], [0, 0, 1, 0], [], []>} : vector<8x128xbf16>, vector<8x128xbf16>, vector<8x8xf32> -> vector<8x8xf32>
    %cst_40 = arith.constant dense<0xFF800000> : vector<8xf32>
    %86 = vector.multi_reduction <maximumf>, %85, %cst_40 [1] : vector<8x8xf32> to vector<8xf32>
    %87 = vector.shape_cast %86 : vector<8xf32> to vector<8x1xf32>
    %88 = vector.broadcast %87 : vector<8x1xf32> to vector<8x8xf32>
    %89 = arith.subf %85, %88 : vector<8x8xf32>
    %90 = math.exp %89 : vector<8x8xf32>
    %cst_41 = arith.constant dense<0.000000e+00> : vector<8xf32>
    %91 = vector.multi_reduction <add>, %90, %cst_41 [1] : vector<8x8xf32> to vector<8xf32>
    %92 = vector.shape_cast %91 : vector<8xf32> to vector<8x1xf32>
    %93 = tpu.reciprocal %92 {approx = true} : vector<8x1xf32> -> vector<8x1xf32>
    %94 = vector.broadcast %93 : vector<8x1xf32> to vector<8x8xf32>
    %95 = arith.mulf %90, %94 : vector<8x8xf32>
    %96 = vector.broadcast %56 : vector<1x128xf32> to vector<8x128xf32>
    %97 = arith.mulf %60, %96 : vector<8x128xf32>
    %98 = arith.truncf %97 : vector<8x128xf32> to vector<8x128xbf16>
    %99 = arith.truncf %95 : vector<8x8xf32> to vector<8x8xbf16>
    %cst_42 = arith.constant dense<0.000000e+00> : vector<8x128xf32>
    %100 = tpu.matmul %99, %98, %cst_42 {dimension_numbers = #tpu.dot_dimension_numbers<[1], [0], [0], [1], [0, 0, 1, 1], [], []>} : vector<8x8xbf16>, vector<8x128xbf16>, vector<8x128xf32> -> vector<8x128xf32>
    %101 = arith.addf %81, %100 : vector<8x128xf32>
    %102 = vector.extract_strided_slice %34 {offsets = [8, 0], sizes = [8, 128], strides = [1, 1]} : vector<64x128xf32> to vector<8x128xf32>
    %103 = vector.extract_strided_slice %41 {offsets = [8, 0], sizes = [8, 128], strides = [1, 1]} : vector<64x128xf32> to vector<8x128xf32>
    %104 = arith.truncf %103 : vector<8x128xf32> to vector<8x128xbf16>
    %105 = vector.extract_strided_slice %42 {offsets = [8, 0], sizes = [8, 128], strides = [1, 1]} : vector<64x128xf32> to vector<8x128xf32>
    %cst_43 = arith.constant 0.000000e+00 : f32
    %106 = vector.broadcast %cst_43 : f32 to vector<8x128xf32>
    %107 = vector.broadcast %49 : vector<1x128xf32> to vector<8x128xf32>
    %108 = arith.mulf %102, %107 : vector<8x128xf32>
    %109 = arith.truncf %108 : vector<8x128xf32> to vector<8x128xbf16>
    %cst_44 = arith.constant dense<0.000000e+00> : vector<8x8xf32>
    %110 = tpu.matmul %109, %104, %cst_44 {dimension_numbers = #tpu.dot_dimension_numbers<[1], [1], [0], [0], [0, 0, 1, 0], [], []>} : vector<8x128xbf16>, vector<8x128xbf16>, vector<8x8xf32> -> vector<8x8xf32>
    %cst_45 = arith.constant dense<0xFF800000> : vector<8xf32>
    %111 = vector.multi_reduction <maximumf>, %110, %cst_45 [1] : vector<8x8xf32> to vector<8xf32>
    %112 = vector.shape_cast %111 : vector<8xf32> to vector<8x1xf32>
    %113 = vector.broadcast %112 : vector<8x1xf32> to vector<8x8xf32>
    %114 = arith.subf %110, %113 : vector<8x8xf32>
    %115 = math.exp %114 : vector<8x8xf32>
    %cst_46 = arith.constant dense<0.000000e+00> : vector<8xf32>
    %116 = vector.multi_reduction <add>, %115, %cst_46 [1] : vector<8x8xf32> to vector<8xf32>
    %117 = vector.shape_cast %116 : vector<8xf32> to vector<8x1xf32>
    %118 = tpu.reciprocal %117 {approx = true} : vector<8x1xf32> -> vector<8x1xf32>
    %119 = vector.broadcast %118 : vector<8x1xf32> to vector<8x8xf32>
    %120 = arith.mulf %115, %119 : vector<8x8xf32>
    %121 = vector.broadcast %49 : vector<1x128xf32> to vector<8x128xf32>
    %122 = arith.mulf %105, %121 : vector<8x128xf32>
    %123 = arith.truncf %122 : vector<8x128xf32> to vector<8x128xbf16>
    %124 = arith.truncf %120 : vector<8x8xf32> to vector<8x8xbf16>
    %cst_47 = arith.constant dense<0.000000e+00> : vector<8x128xf32>
    %125 = tpu.matmul %124, %123, %cst_47 {dimension_numbers = #tpu.dot_dimension_numbers<[1], [0], [0], [1], [0, 0, 1, 1], [], []>} : vector<8x8xbf16>, vector<8x128xbf16>, vector<8x128xf32> -> vector<8x128xf32>
    %126 = arith.addf %106, %125 : vector<8x128xf32>
    %127 = vector.broadcast %56 : vector<1x128xf32> to vector<8x128xf32>
    %128 = arith.mulf %102, %127 : vector<8x128xf32>
    %129 = arith.truncf %128 : vector<8x128xf32> to vector<8x128xbf16>
    %cst_48 = arith.constant dense<0.000000e+00> : vector<8x8xf32>
    %130 = tpu.matmul %129, %104, %cst_48 {dimension_numbers = #tpu.dot_dimension_numbers<[1], [1], [0], [0], [0, 0, 1, 0], [], []>} : vector<8x128xbf16>, vector<8x128xbf16>, vector<8x8xf32> -> vector<8x8xf32>
    %cst_49 = arith.constant dense<0xFF800000> : vector<8xf32>
    %131 = vector.multi_reduction <maximumf>, %130, %cst_49 [1] : vector<8x8xf32> to vector<8xf32>
    %132 = vector.shape_cast %131 : vector<8xf32> to vector<8x1xf32>
    %133 = vector.broadcast %132 : vector<8x1xf32> to vector<8x8xf32>
    %134 = arith.subf %130, %133 : vector<8x8xf32>
    %135 = math.exp %134 : vector<8x8xf32>
    %cst_50 = arith.constant dense<0.000000e+00> : vector<8xf32>
    %136 = vector.multi_reduction <add>, %135, %cst_50 [1] : vector<8x8xf32> to vector<8xf32>
    %137 = vector.shape_cast %136 : vector<8xf32> to vector<8x1xf32>
    %138 = tpu.reciprocal %137 {approx = true} : vector<8x1xf32> -> vector<8x1xf32>
    %139 = vector.broadcast %138 : vector<8x1xf32> to vector<8x8xf32>
    %140 = arith.mulf %135, %139 : vector<8x8xf32>
    %141 = vector.broadcast %56 : vector<1x128xf32> to vector<8x128xf32>
    %142 = arith.mulf %105, %141 : vector<8x128xf32>
    %143 = arith.truncf %142 : vector<8x128xf32> to vector<8x128xbf16>
    %144 = arith.truncf %140 : vector<8x8xf32> to vector<8x8xbf16>
    %cst_51 = arith.constant dense<0.000000e+00> : vector<8x128xf32>
    %145 = tpu.matmul %144, %143, %cst_51 {dimension_numbers = #tpu.dot_dimension_numbers<[1], [0], [0], [1], [0, 0, 1, 1], [], []>} : vector<8x8xbf16>, vector<8x128xbf16>, vector<8x128xf32> -> vector<8x128xf32>
    %146 = arith.addf %126, %145 : vector<8x128xf32>
    %147 = vector.extract_strided_slice %34 {offsets = [16, 0], sizes = [8, 128], strides = [1, 1]} : vector<64x128xf32> to vector<8x128xf32>
    %148 = vector.extract_strided_slice %41 {offsets = [16, 0], sizes = [8, 128], strides = [1, 1]} : vector<64x128xf32> to vector<8x128xf32>
    %149 = arith.truncf %148 : vector<8x128xf32> to vector<8x128xbf16>
    %150 = vector.extract_strided_slice %42 {offsets = [16, 0], sizes = [8, 128], strides = [1, 1]} : vector<64x128xf32> to vector<8x128xf32>
    %cst_52 = arith.constant 0.000000e+00 : f32
    %151 = vector.broadcast %cst_52 : f32 to vector<8x128xf32>
    %152 = vector.broadcast %49 : vector<1x128xf32> to vector<8x128xf32>
    %153 = arith.mulf %147, %152 : vector<8x128xf32>
    %154 = arith.truncf %153 : vector<8x128xf32> to vector<8x128xbf16>
    %cst_53 = arith.constant dense<0.000000e+00> : vector<8x8xf32>
    %155 = tpu.matmul %154, %149, %cst_53 {dimension_numbers = #tpu.dot_dimension_numbers<[1], [1], [0], [0], [0, 0, 1, 0], [], []>} : vector<8x128xbf16>, vector<8x128xbf16>, vector<8x8xf32> -> vector<8x8xf32>
    %cst_54 = arith.constant dense<0xFF800000> : vector<8xf32>
    %156 = vector.multi_reduction <maximumf>, %155, %cst_54 [1] : vector<8x8xf32> to vector<8xf32>
    %157 = vector.shape_cast %156 : vector<8xf32> to vector<8x1xf32>
    %158 = vector.broadcast %157 : vector<8x1xf32> to vector<8x8xf32>
    %159 = arith.subf %155, %158 : vector<8x8xf32>
    %160 = math.exp %159 : vector<8x8xf32>
    %cst_55 = arith.constant dense<0.000000e+00> : vector<8xf32>
    %161 = vector.multi_reduction <add>, %160, %cst_55 [1] : vector<8x8xf32> to vector<8xf32>
    %162 = vector.shape_cast %161 : vector<8xf32> to vector<8x1xf32>
    %163 = tpu.reciprocal %162 {approx = true} : vector<8x1xf32> -> vector<8x1xf32>
    %164 = vector.broadcast %163 : vector<8x1xf32> to vector<8x8xf32>
    %165 = arith.mulf %160, %164 : vector<8x8xf32>
    %166 = vector.broadcast %49 : vector<1x128xf32> to vector<8x128xf32>
    %167 = arith.mulf %150, %166 : vector<8x128xf32>
    %168 = arith.truncf %167 : vector<8x128xf32> to vector<8x128xbf16>
    %169 = arith.truncf %165 : vector<8x8xf32> to vector<8x8xbf16>
    %cst_56 = arith.constant dense<0.000000e+00> : vector<8x128xf32>
    %170 = tpu.matmul %169, %168, %cst_56 {dimension_numbers = #tpu.dot_dimension_numbers<[1], [0], [0], [1], [0, 0, 1, 1], [], []>} : vector<8x8xbf16>, vector<8x128xbf16>, vector<8x128xf32> -> vector<8x128xf32>
    %171 = arith.addf %151, %170 : vector<8x128xf32>
    %172 = vector.broadcast %56 : vector<1x128xf32> to vector<8x128xf32>
    %173 = arith.mulf %147, %172 : vector<8x128xf32>
    %174 = arith.truncf %173 : vector<8x128xf32> to vector<8x128xbf16>
    %cst_57 = arith.constant dense<0.000000e+00> : vector<8x8xf32>
    %175 = tpu.matmul %174, %149, %cst_57 {dimension_numbers = #tpu.dot_dimension_numbers<[1], [1], [0], [0], [0, 0, 1, 0], [], []>} : vector<8x128xbf16>, vector<8x128xbf16>, vector<8x8xf32> -> vector<8x8xf32>
    %cst_58 = arith.constant dense<0xFF800000> : vector<8xf32>
    %176 = vector.multi_reduction <maximumf>, %175, %cst_58 [1] : vector<8x8xf32> to vector<8xf32>
    %177 = vector.shape_cast %176 : vector<8xf32> to vector<8x1xf32>
    %178 = vector.broadcast %177 : vector<8x1xf32> to vector<8x8xf32>
    %179 = arith.subf %175, %178 : vector<8x8xf32>
    %180 = math.exp %179 : vector<8x8xf32>
    %cst_59 = arith.constant dense<0.000000e+00> : vector<8xf32>
    %181 = vector.multi_reduction <add>, %180, %cst_59 [1] : vector<8x8xf32> to vector<8xf32>
    %182 = vector.shape_cast %181 : vector<8xf32> to vector<8x1xf32>
    %183 = tpu.reciprocal %182 {approx = true} : vector<8x1xf32> -> vector<8x1xf32>
    %184 = vector.broadcast %183 : vector<8x1xf32> to vector<8x8xf32>
    %185 = arith.mulf %180, %184 : vector<8x8xf32>
    %186 = vector.broadcast %56 : vector<1x128xf32> to vector<8x128xf32>
    %187 = arith.mulf %150, %186 : vector<8x128xf32>
    %188 = arith.truncf %187 : vector<8x128xf32> to vector<8x128xbf16>
    %189 = arith.truncf %185 : vector<8x8xf32> to vector<8x8xbf16>
    %cst_60 = arith.constant dense<0.000000e+00> : vector<8x128xf32>
    %190 = tpu.matmul %189, %188, %cst_60 {dimension_numbers = #tpu.dot_dimension_numbers<[1], [0], [0], [1], [0, 0, 1, 1], [], []>} : vector<8x8xbf16>, vector<8x128xbf16>, vector<8x128xf32> -> vector<8x128xf32>
    %191 = arith.addf %171, %190 : vector<8x128xf32>
    %192 = vector.extract_strided_slice %34 {offsets = [24, 0], sizes = [8, 128], strides = [1, 1]} : vector<64x128xf32> to vector<8x128xf32>
    %193 = vector.extract_strided_slice %41 {offsets = [24, 0], sizes = [8, 128], strides = [1, 1]} : vector<64x128xf32> to vector<8x128xf32>
    %194 = arith.truncf %193 : vector<8x128xf32> to vector<8x128xbf16>
    %195 = vector.extract_strided_slice %42 {offsets = [24, 0], sizes = [8, 128], strides = [1, 1]} : vector<64x128xf32> to vector<8x128xf32>
    %cst_61 = arith.constant 0.000000e+00 : f32
    %196 = vector.broadcast %cst_61 : f32 to vector<8x128xf32>
    %197 = vector.broadcast %49 : vector<1x128xf32> to vector<8x128xf32>
    %198 = arith.mulf %192, %197 : vector<8x128xf32>
    %199 = arith.truncf %198 : vector<8x128xf32> to vector<8x128xbf16>
    %cst_62 = arith.constant dense<0.000000e+00> : vector<8x8xf32>
    %200 = tpu.matmul %199, %194, %cst_62 {dimension_numbers = #tpu.dot_dimension_numbers<[1], [1], [0], [0], [0, 0, 1, 0], [], []>} : vector<8x128xbf16>, vector<8x128xbf16>, vector<8x8xf32> -> vector<8x8xf32>
    %cst_63 = arith.constant dense<0xFF800000> : vector<8xf32>
    %201 = vector.multi_reduction <maximumf>, %200, %cst_63 [1] : vector<8x8xf32> to vector<8xf32>
    %202 = vector.shape_cast %201 : vector<8xf32> to vector<8x1xf32>
    %203 = vector.broadcast %202 : vector<8x1xf32> to vector<8x8xf32>
    %204 = arith.subf %200, %203 : vector<8x8xf32>
    %205 = math.exp %204 : vector<8x8xf32>
    %cst_64 = arith.constant dense<0.000000e+00> : vector<8xf32>
    %206 = vector.multi_reduction <add>, %205, %cst_64 [1] : vector<8x8xf32> to vector<8xf32>
    %207 = vector.shape_cast %206 : vector<8xf32> to vector<8x1xf32>
    %208 = tpu.reciprocal %207 {approx = true} : vector<8x1xf32> -> vector<8x1xf32>
    %209 = vector.broadcast %208 : vector<8x1xf32> to vector<8x8xf32>
    %210 = arith.mulf %205, %209 : vector<8x8xf32>
    %211 = vector.broadcast %49 : vector<1x128xf32> to vector<8x128xf32>
    %212 = arith.mulf %195, %211 : vector<8x128xf32>
    %213 = arith.truncf %212 : vector<8x128xf32> to vector<8x128xbf16>
    %214 = arith.truncf %210 : vector<8x8xf32> to vector<8x8xbf16>
    %cst_65 = arith.constant dense<0.000000e+00> : vector<8x128xf32>
    %215 = tpu.matmul %214, %213, %cst_65 {dimension_numbers = #tpu.dot_dimension_numbers<[1], [0], [0], [1], [0, 0, 1, 1], [], []>} : vector<8x8xbf16>, vector<8x128xbf16>, vector<8x128xf32> -> vector<8x128xf32>
    %216 = arith.addf %196, %215 : vector<8x128xf32>
    %217 = vector.broadcast %56 : vector<1x128xf32> to vector<8x128xf32>
    %218 = arith.mulf %192, %217 : vector<8x128xf32>
    %219 = arith.truncf %218 : vector<8x128xf32> to vector<8x128xbf16>
    %cst_66 = arith.constant dense<0.000000e+00> : vector<8x8xf32>
    %220 = tpu.matmul %219, %194, %cst_66 {dimension_numbers = #tpu.dot_dimension_numbers<[1], [1], [0], [0], [0, 0, 1, 0], [], []>} : vector<8x128xbf16>, vector<8x128xbf16>, vector<8x8xf32> -> vector<8x8xf32>
    %cst_67 = arith.constant dense<0xFF800000> : vector<8xf32>
    %221 = vector.multi_reduction <maximumf>, %220, %cst_67 [1] : vector<8x8xf32> to vector<8xf32>
    %222 = vector.shape_cast %221 : vector<8xf32> to vector<8x1xf32>
    %223 = vector.broadcast %222 : vector<8x1xf32> to vector<8x8xf32>
    %224 = arith.subf %220, %223 : vector<8x8xf32>
    %225 = math.exp %224 : vector<8x8xf32>
    %cst_68 = arith.constant dense<0.000000e+00> : vector<8xf32>
    %226 = vector.multi_reduction <add>, %225, %cst_68 [1] : vector<8x8xf32> to vector<8xf32>
    %227 = vector.shape_cast %226 : vector<8xf32> to vector<8x1xf32>
    %228 = tpu.reciprocal %227 {approx = true} : vector<8x1xf32> -> vector<8x1xf32>
    %229 = vector.broadcast %228 : vector<8x1xf32> to vector<8x8xf32>
    %230 = arith.mulf %225, %229 : vector<8x8xf32>
    %231 = vector.broadcast %56 : vector<1x128xf32> to vector<8x128xf32>
    %232 = arith.mulf %195, %231 : vector<8x128xf32>
    %233 = arith.truncf %232 : vector<8x128xf32> to vector<8x128xbf16>
    %234 = arith.truncf %230 : vector<8x8xf32> to vector<8x8xbf16>
    %cst_69 = arith.constant dense<0.000000e+00> : vector<8x128xf32>
    %235 = tpu.matmul %234, %233, %cst_69 {dimension_numbers = #tpu.dot_dimension_numbers<[1], [0], [0], [1], [0, 0, 1, 1], [], []>} : vector<8x8xbf16>, vector<8x128xbf16>, vector<8x128xf32> -> vector<8x128xf32>
    %236 = arith.addf %216, %235 : vector<8x128xf32>
    %237 = vector.extract_strided_slice %34 {offsets = [32, 0], sizes = [8, 128], strides = [1, 1]} : vector<64x128xf32> to vector<8x128xf32>
    %238 = vector.extract_strided_slice %41 {offsets = [32, 0], sizes = [8, 128], strides = [1, 1]} : vector<64x128xf32> to vector<8x128xf32>
    %239 = arith.truncf %238 : vector<8x128xf32> to vector<8x128xbf16>
    %240 = vector.extract_strided_slice %42 {offsets = [32, 0], sizes = [8, 128], strides = [1, 1]} : vector<64x128xf32> to vector<8x128xf32>
    %cst_70 = arith.constant 0.000000e+00 : f32
    %241 = vector.broadcast %cst_70 : f32 to vector<8x128xf32>
    %242 = vector.broadcast %49 : vector<1x128xf32> to vector<8x128xf32>
    %243 = arith.mulf %237, %242 : vector<8x128xf32>
    %244 = arith.truncf %243 : vector<8x128xf32> to vector<8x128xbf16>
    %cst_71 = arith.constant dense<0.000000e+00> : vector<8x8xf32>
    %245 = tpu.matmul %244, %239, %cst_71 {dimension_numbers = #tpu.dot_dimension_numbers<[1], [1], [0], [0], [0, 0, 1, 0], [], []>} : vector<8x128xbf16>, vector<8x128xbf16>, vector<8x8xf32> -> vector<8x8xf32>
    %cst_72 = arith.constant dense<0xFF800000> : vector<8xf32>
    %246 = vector.multi_reduction <maximumf>, %245, %cst_72 [1] : vector<8x8xf32> to vector<8xf32>
    %247 = vector.shape_cast %246 : vector<8xf32> to vector<8x1xf32>
    %248 = vector.broadcast %247 : vector<8x1xf32> to vector<8x8xf32>
    %249 = arith.subf %245, %248 : vector<8x8xf32>
    %250 = math.exp %249 : vector<8x8xf32>
    %cst_73 = arith.constant dense<0.000000e+00> : vector<8xf32>
    %251 = vector.multi_reduction <add>, %250, %cst_73 [1] : vector<8x8xf32> to vector<8xf32>
    %252 = vector.shape_cast %251 : vector<8xf32> to vector<8x1xf32>
    %253 = tpu.reciprocal %252 {approx = true} : vector<8x1xf32> -> vector<8x1xf32>
    %254 = vector.broadcast %253 : vector<8x1xf32> to vector<8x8xf32>
    %255 = arith.mulf %250, %254 : vector<8x8xf32>
    %256 = vector.broadcast %49 : vector<1x128xf32> to vector<8x128xf32>
    %257 = arith.mulf %240, %256 : vector<8x128xf32>
    %258 = arith.truncf %257 : vector<8x128xf32> to vector<8x128xbf16>
    %259 = arith.truncf %255 : vector<8x8xf32> to vector<8x8xbf16>
    %cst_74 = arith.constant dense<0.000000e+00> : vector<8x128xf32>
    %260 = tpu.matmul %259, %258, %cst_74 {dimension_numbers = #tpu.dot_dimension_numbers<[1], [0], [0], [1], [0, 0, 1, 1], [], []>} : vector<8x8xbf16>, vector<8x128xbf16>, vector<8x128xf32> -> vector<8x128xf32>
    %261 = arith.addf %241, %260 : vector<8x128xf32>
    %262 = vector.broadcast %56 : vector<1x128xf32> to vector<8x128xf32>
    %263 = arith.mulf %237, %262 : vector<8x128xf32>
    %264 = arith.truncf %263 : vector<8x128xf32> to vector<8x128xbf16>
    %cst_75 = arith.constant dense<0.000000e+00> : vector<8x8xf32>
    %265 = tpu.matmul %264, %239, %cst_75 {dimension_numbers = #tpu.dot_dimension_numbers<[1], [1], [0], [0], [0, 0, 1, 0], [], []>} : vector<8x128xbf16>, vector<8x128xbf16>, vector<8x8xf32> -> vector<8x8xf32>
    %cst_76 = arith.constant dense<0xFF800000> : vector<8xf32>
    %266 = vector.multi_reduction <maximumf>, %265, %cst_76 [1] : vector<8x8xf32> to vector<8xf32>
    %267 = vector.shape_cast %266 : vector<8xf32> to vector<8x1xf32>
    %268 = vector.broadcast %267 : vector<8x1xf32> to vector<8x8xf32>
    %269 = arith.subf %265, %268 : vector<8x8xf32>
    %270 = math.exp %269 : vector<8x8xf32>
    %cst_77 = arith.constant dense<0.000000e+00> : vector<8xf32>
    %271 = vector.multi_reduction <add>, %270, %cst_77 [1] : vector<8x8xf32> to vector<8xf32>
    %272 = vector.shape_cast %271 : vector<8xf32> to vector<8x1xf32>
    %273 = tpu.reciprocal %272 {approx = true} : vector<8x1xf32> -> vector<8x1xf32>
    %274 = vector.broadcast %273 : vector<8x1xf32> to vector<8x8xf32>
    %275 = arith.mulf %270, %274 : vector<8x8xf32>
    %276 = vector.broadcast %56 : vector<1x128xf32> to vector<8x128xf32>
    %277 = arith.mulf %240, %276 : vector<8x128xf32>
    %278 = arith.truncf %277 : vector<8x128xf32> to vector<8x128xbf16>
    %279 = arith.truncf %275 : vector<8x8xf32> to vector<8x8xbf16>
    %cst_78 = arith.constant dense<0.000000e+00> : vector<8x128xf32>
    %280 = tpu.matmul %279, %278, %cst_78 {dimension_numbers = #tpu.dot_dimension_numbers<[1], [0], [0], [1], [0, 0, 1, 1], [], []>} : vector<8x8xbf16>, vector<8x128xbf16>, vector<8x128xf32> -> vector<8x128xf32>
    %281 = arith.addf %261, %280 : vector<8x128xf32>
    %282 = vector.extract_strided_slice %34 {offsets = [40, 0], sizes = [8, 128], strides = [1, 1]} : vector<64x128xf32> to vector<8x128xf32>
    %283 = vector.extract_strided_slice %41 {offsets = [40, 0], sizes = [8, 128], strides = [1, 1]} : vector<64x128xf32> to vector<8x128xf32>
    %284 = arith.truncf %283 : vector<8x128xf32> to vector<8x128xbf16>
    %285 = vector.extract_strided_slice %42 {offsets = [40, 0], sizes = [8, 128], strides = [1, 1]} : vector<64x128xf32> to vector<8x128xf32>
    %cst_79 = arith.constant 0.000000e+00 : f32
    %286 = vector.broadcast %cst_79 : f32 to vector<8x128xf32>
    %287 = vector.broadcast %49 : vector<1x128xf32> to vector<8x128xf32>
    %288 = arith.mulf %282, %287 : vector<8x128xf32>
    %289 = arith.truncf %288 : vector<8x128xf32> to vector<8x128xbf16>
    %cst_80 = arith.constant dense<0.000000e+00> : vector<8x8xf32>
    %290 = tpu.matmul %289, %284, %cst_80 {dimension_numbers = #tpu.dot_dimension_numbers<[1], [1], [0], [0], [0, 0, 1, 0], [], []>} : vector<8x128xbf16>, vector<8x128xbf16>, vector<8x8xf32> -> vector<8x8xf32>
    %cst_81 = arith.constant dense<0xFF800000> : vector<8xf32>
    %291 = vector.multi_reduction <maximumf>, %290, %cst_81 [1] : vector<8x8xf32> to vector<8xf32>
    %292 = vector.shape_cast %291 : vector<8xf32> to vector<8x1xf32>
    %293 = vector.broadcast %292 : vector<8x1xf32> to vector<8x8xf32>
    %294 = arith.subf %290, %293 : vector<8x8xf32>
    %295 = math.exp %294 : vector<8x8xf32>
    %cst_82 = arith.constant dense<0.000000e+00> : vector<8xf32>
    %296 = vector.multi_reduction <add>, %295, %cst_82 [1] : vector<8x8xf32> to vector<8xf32>
    %297 = vector.shape_cast %296 : vector<8xf32> to vector<8x1xf32>
    %298 = tpu.reciprocal %297 {approx = true} : vector<8x1xf32> -> vector<8x1xf32>
    %299 = vector.broadcast %298 : vector<8x1xf32> to vector<8x8xf32>
    %300 = arith.mulf %295, %299 : vector<8x8xf32>
    %301 = vector.broadcast %49 : vector<1x128xf32> to vector<8x128xf32>
    %302 = arith.mulf %285, %301 : vector<8x128xf32>
    %303 = arith.truncf %302 : vector<8x128xf32> to vector<8x128xbf16>
    %304 = arith.truncf %300 : vector<8x8xf32> to vector<8x8xbf16>
    %cst_83 = arith.constant dense<0.000000e+00> : vector<8x128xf32>
    %305 = tpu.matmul %304, %303, %cst_83 {dimension_numbers = #tpu.dot_dimension_numbers<[1], [0], [0], [1], [0, 0, 1, 1], [], []>} : vector<8x8xbf16>, vector<8x128xbf16>, vector<8x128xf32> -> vector<8x128xf32>
    %306 = arith.addf %286, %305 : vector<8x128xf32>
    %307 = vector.broadcast %56 : vector<1x128xf32> to vector<8x128xf32>
    %308 = arith.mulf %282, %307 : vector<8x128xf32>
    %309 = arith.truncf %308 : vector<8x128xf32> to vector<8x128xbf16>
    %cst_84 = arith.constant dense<0.000000e+00> : vector<8x8xf32>
    %310 = tpu.matmul %309, %284, %cst_84 {dimension_numbers = #tpu.dot_dimension_numbers<[1], [1], [0], [0], [0, 0, 1, 0], [], []>} : vector<8x128xbf16>, vector<8x128xbf16>, vector<8x8xf32> -> vector<8x8xf32>
    %cst_85 = arith.constant dense<0xFF800000> : vector<8xf32>
    %311 = vector.multi_reduction <maximumf>, %310, %cst_85 [1] : vector<8x8xf32> to vector<8xf32>
    %312 = vector.shape_cast %311 : vector<8xf32> to vector<8x1xf32>
    %313 = vector.broadcast %312 : vector<8x1xf32> to vector<8x8xf32>
    %314 = arith.subf %310, %313 : vector<8x8xf32>
    %315 = math.exp %314 : vector<8x8xf32>
    %cst_86 = arith.constant dense<0.000000e+00> : vector<8xf32>
    %316 = vector.multi_reduction <add>, %315, %cst_86 [1] : vector<8x8xf32> to vector<8xf32>
    %317 = vector.shape_cast %316 : vector<8xf32> to vector<8x1xf32>
    %318 = tpu.reciprocal %317 {approx = true} : vector<8x1xf32> -> vector<8x1xf32>
    %319 = vector.broadcast %318 : vector<8x1xf32> to vector<8x8xf32>
    %320 = arith.mulf %315, %319 : vector<8x8xf32>
    %321 = vector.broadcast %56 : vector<1x128xf32> to vector<8x128xf32>
    %322 = arith.mulf %285, %321 : vector<8x128xf32>
    %323 = arith.truncf %322 : vector<8x128xf32> to vector<8x128xbf16>
    %324 = arith.truncf %320 : vector<8x8xf32> to vector<8x8xbf16>
    %cst_87 = arith.constant dense<0.000000e+00> : vector<8x128xf32>
    %325 = tpu.matmul %324, %323, %cst_87 {dimension_numbers = #tpu.dot_dimension_numbers<[1], [0], [0], [1], [0, 0, 1, 1], [], []>} : vector<8x8xbf16>, vector<8x128xbf16>, vector<8x128xf32> -> vector<8x128xf32>
    %326 = arith.addf %306, %325 : vector<8x128xf32>
    %327 = vector.extract_strided_slice %34 {offsets = [48, 0], sizes = [8, 128], strides = [1, 1]} : vector<64x128xf32> to vector<8x128xf32>
    %328 = vector.extract_strided_slice %41 {offsets = [48, 0], sizes = [8, 128], strides = [1, 1]} : vector<64x128xf32> to vector<8x128xf32>
    %329 = arith.truncf %328 : vector<8x128xf32> to vector<8x128xbf16>
    %330 = vector.extract_strided_slice %42 {offsets = [48, 0], sizes = [8, 128], strides = [1, 1]} : vector<64x128xf32> to vector<8x128xf32>
    %cst_88 = arith.constant 0.000000e+00 : f32
    %331 = vector.broadcast %cst_88 : f32 to vector<8x128xf32>
    %332 = vector.broadcast %49 : vector<1x128xf32> to vector<8x128xf32>
    %333 = arith.mulf %327, %332 : vector<8x128xf32>
    %334 = arith.truncf %333 : vector<8x128xf32> to vector<8x128xbf16>
    %cst_89 = arith.constant dense<0.000000e+00> : vector<8x8xf32>
    %335 = tpu.matmul %334, %329, %cst_89 {dimension_numbers = #tpu.dot_dimension_numbers<[1], [1], [0], [0], [0, 0, 1, 0], [], []>} : vector<8x128xbf16>, vector<8x128xbf16>, vector<8x8xf32> -> vector<8x8xf32>
    %cst_90 = arith.constant dense<0xFF800000> : vector<8xf32>
    %336 = vector.multi_reduction <maximumf>, %335, %cst_90 [1] : vector<8x8xf32> to vector<8xf32>
    %337 = vector.shape_cast %336 : vector<8xf32> to vector<8x1xf32>
    %338 = vector.broadcast %337 : vector<8x1xf32> to vector<8x8xf32>
    %339 = arith.subf %335, %338 : vector<8x8xf32>
    %340 = math.exp %339 : vector<8x8xf32>
    %cst_91 = arith.constant dense<0.000000e+00> : vector<8xf32>
    %341 = vector.multi_reduction <add>, %340, %cst_91 [1] : vector<8x8xf32> to vector<8xf32>
    %342 = vector.shape_cast %341 : vector<8xf32> to vector<8x1xf32>
    %343 = tpu.reciprocal %342 {approx = true} : vector<8x1xf32> -> vector<8x1xf32>
    %344 = vector.broadcast %343 : vector<8x1xf32> to vector<8x8xf32>
    %345 = arith.mulf %340, %344 : vector<8x8xf32>
    %346 = vector.broadcast %49 : vector<1x128xf32> to vector<8x128xf32>
    %347 = arith.mulf %330, %346 : vector<8x128xf32>
    %348 = arith.truncf %347 : vector<8x128xf32> to vector<8x128xbf16>
    %349 = arith.truncf %345 : vector<8x8xf32> to vector<8x8xbf16>
    %cst_92 = arith.constant dense<0.000000e+00> : vector<8x128xf32>
    %350 = tpu.matmul %349, %348, %cst_92 {dimension_numbers = #tpu.dot_dimension_numbers<[1], [0], [0], [1], [0, 0, 1, 1], [], []>} : vector<8x8xbf16>, vector<8x128xbf16>, vector<8x128xf32> -> vector<8x128xf32>
    %351 = arith.addf %331, %350 : vector<8x128xf32>
    %352 = vector.broadcast %56 : vector<1x128xf32> to vector<8x128xf32>
    %353 = arith.mulf %327, %352 : vector<8x128xf32>
    %354 = arith.truncf %353 : vector<8x128xf32> to vector<8x128xbf16>
    %cst_93 = arith.constant dense<0.000000e+00> : vector<8x8xf32>
    %355 = tpu.matmul %354, %329, %cst_93 {dimension_numbers = #tpu.dot_dimension_numbers<[1], [1], [0], [0], [0, 0, 1, 0], [], []>} : vector<8x128xbf16>, vector<8x128xbf16>, vector<8x8xf32> -> vector<8x8xf32>
    %cst_94 = arith.constant dense<0xFF800000> : vector<8xf32>
    %356 = vector.multi_reduction <maximumf>, %355, %cst_94 [1] : vector<8x8xf32> to vector<8xf32>
    %357 = vector.shape_cast %356 : vector<8xf32> to vector<8x1xf32>
    %358 = vector.broadcast %357 : vector<8x1xf32> to vector<8x8xf32>
    %359 = arith.subf %355, %358 : vector<8x8xf32>
    %360 = math.exp %359 : vector<8x8xf32>
    %cst_95 = arith.constant dense<0.000000e+00> : vector<8xf32>
    %361 = vector.multi_reduction <add>, %360, %cst_95 [1] : vector<8x8xf32> to vector<8xf32>
    %362 = vector.shape_cast %361 : vector<8xf32> to vector<8x1xf32>
    %363 = tpu.reciprocal %362 {approx = true} : vector<8x1xf32> -> vector<8x1xf32>
    %364 = vector.broadcast %363 : vector<8x1xf32> to vector<8x8xf32>
    %365 = arith.mulf %360, %364 : vector<8x8xf32>
    %366 = vector.broadcast %56 : vector<1x128xf32> to vector<8x128xf32>
    %367 = arith.mulf %330, %366 : vector<8x128xf32>
    %368 = arith.truncf %367 : vector<8x128xf32> to vector<8x128xbf16>
    %369 = arith.truncf %365 : vector<8x8xf32> to vector<8x8xbf16>
    %cst_96 = arith.constant dense<0.000000e+00> : vector<8x128xf32>
    %370 = tpu.matmul %369, %368, %cst_96 {dimension_numbers = #tpu.dot_dimension_numbers<[1], [0], [0], [1], [0, 0, 1, 1], [], []>} : vector<8x8xbf16>, vector<8x128xbf16>, vector<8x128xf32> -> vector<8x128xf32>
    %371 = arith.addf %351, %370 : vector<8x128xf32>
    %372 = vector.extract_strided_slice %34 {offsets = [56, 0], sizes = [8, 128], strides = [1, 1]} : vector<64x128xf32> to vector<8x128xf32>
    %373 = vector.extract_strided_slice %41 {offsets = [56, 0], sizes = [8, 128], strides = [1, 1]} : vector<64x128xf32> to vector<8x128xf32>
    %374 = arith.truncf %373 : vector<8x128xf32> to vector<8x128xbf16>
    %375 = vector.extract_strided_slice %42 {offsets = [56, 0], sizes = [8, 128], strides = [1, 1]} : vector<64x128xf32> to vector<8x128xf32>
    %cst_97 = arith.constant 0.000000e+00 : f32
    %376 = vector.broadcast %cst_97 : f32 to vector<8x128xf32>
    %377 = vector.broadcast %49 : vector<1x128xf32> to vector<8x128xf32>
    %378 = arith.mulf %372, %377 : vector<8x128xf32>
    %379 = arith.truncf %378 : vector<8x128xf32> to vector<8x128xbf16>
    %cst_98 = arith.constant dense<0.000000e+00> : vector<8x8xf32>
    %380 = tpu.matmul %379, %374, %cst_98 {dimension_numbers = #tpu.dot_dimension_numbers<[1], [1], [0], [0], [0, 0, 1, 0], [], []>} : vector<8x128xbf16>, vector<8x128xbf16>, vector<8x8xf32> -> vector<8x8xf32>
    %cst_99 = arith.constant dense<0xFF800000> : vector<8xf32>
    %381 = vector.multi_reduction <maximumf>, %380, %cst_99 [1] : vector<8x8xf32> to vector<8xf32>
    %382 = vector.shape_cast %381 : vector<8xf32> to vector<8x1xf32>
    %383 = vector.broadcast %382 : vector<8x1xf32> to vector<8x8xf32>
    %384 = arith.subf %380, %383 : vector<8x8xf32>
    %385 = math.exp %384 : vector<8x8xf32>
    %cst_100 = arith.constant dense<0.000000e+00> : vector<8xf32>
    %386 = vector.multi_reduction <add>, %385, %cst_100 [1] : vector<8x8xf32> to vector<8xf32>
    %387 = vector.shape_cast %386 : vector<8xf32> to vector<8x1xf32>
    %388 = tpu.reciprocal %387 {approx = true} : vector<8x1xf32> -> vector<8x1xf32>
    %389 = vector.broadcast %388 : vector<8x1xf32> to vector<8x8xf32>
    %390 = arith.mulf %385, %389 : vector<8x8xf32>
    %391 = vector.broadcast %49 : vector<1x128xf32> to vector<8x128xf32>
    %392 = arith.mulf %375, %391 : vector<8x128xf32>
    %393 = arith.truncf %392 : vector<8x128xf32> to vector<8x128xbf16>
    %394 = arith.truncf %390 : vector<8x8xf32> to vector<8x8xbf16>
    %cst_101 = arith.constant dense<0.000000e+00> : vector<8x128xf32>
    %395 = tpu.matmul %394, %393, %cst_101 {dimension_numbers = #tpu.dot_dimension_numbers<[1], [0], [0], [1], [0, 0, 1, 1], [], []>} : vector<8x8xbf16>, vector<8x128xbf16>, vector<8x128xf32> -> vector<8x128xf32>
    %396 = arith.addf %376, %395 : vector<8x128xf32>
    %397 = vector.broadcast %56 : vector<1x128xf32> to vector<8x128xf32>
    %398 = arith.mulf %372, %397 : vector<8x128xf32>
    %399 = arith.truncf %398 : vector<8x128xf32> to vector<8x128xbf16>
    %cst_102 = arith.constant dense<0.000000e+00> : vector<8x8xf32>
    %400 = tpu.matmul %399, %374, %cst_102 {dimension_numbers = #tpu.dot_dimension_numbers<[1], [1], [0], [0], [0, 0, 1, 0], [], []>} : vector<8x128xbf16>, vector<8x128xbf16>, vector<8x8xf32> -> vector<8x8xf32>
    %cst_103 = arith.constant dense<0xFF800000> : vector<8xf32>
    %401 = vector.multi_reduction <maximumf>, %400, %cst_103 [1] : vector<8x8xf32> to vector<8xf32>
    %402 = vector.shape_cast %401 : vector<8xf32> to vector<8x1xf32>
    %403 = vector.broadcast %402 : vector<8x1xf32> to vector<8x8xf32>
    %404 = arith.subf %400, %403 : vector<8x8xf32>
    %405 = math.exp %404 : vector<8x8xf32>
    %cst_104 = arith.constant dense<0.000000e+00> : vector<8xf32>
    %406 = vector.multi_reduction <add>, %405, %cst_104 [1] : vector<8x8xf32> to vector<8xf32>
    %407 = vector.shape_cast %406 : vector<8xf32> to vector<8x1xf32>
    %408 = tpu.reciprocal %407 {approx = true} : vector<8x1xf32> -> vector<8x1xf32>
    %409 = vector.broadcast %408 : vector<8x1xf32> to vector<8x8xf32>
    %410 = arith.mulf %405, %409 : vector<8x8xf32>
    %411 = vector.broadcast %56 : vector<1x128xf32> to vector<8x128xf32>
    %412 = arith.mulf %375, %411 : vector<8x128xf32>
    %413 = arith.truncf %412 : vector<8x128xf32> to vector<8x128xbf16>
    %414 = arith.truncf %410 : vector<8x8xf32> to vector<8x8xbf16>
    %cst_105 = arith.constant dense<0.000000e+00> : vector<8x128xf32>
    %415 = tpu.matmul %414, %413, %cst_105 {dimension_numbers = #tpu.dot_dimension_numbers<[1], [0], [0], [1], [0, 0, 1, 1], [], []>} : vector<8x8xbf16>, vector<8x128xbf16>, vector<8x128xf32> -> vector<8x128xf32>
    %416 = arith.addf %396, %415 : vector<8x128xf32>
    %417 = tpu.concatenate %101, %146, %191, %236, %281, %326, %371, %416 in 0 : vector<8x128xf32>, vector<8x128xf32>, vector<8x128xf32>, vector<8x128xf32>, vector<8x128xf32>, vector<8x128xf32>, vector<8x128xf32>, vector<8x128xf32> -> vector<64x128xf32>
    %418 = arith.truncf %417 : vector<64x128xf32> to vector<64x128xbf16>
    %c0_106 = arith.constant 0 : index
    %c0_107 = arith.constant 0 : index
    %419 = vector.load %arg15[%c0_106, %c0_107] : memref<128x128xbf16, #tpu.memory_space<vmem>>, vector<128x128xbf16>
    %cst_108 = arith.constant dense<0.000000e+00> : vector<64x128xf32>
    %420 = tpu.matmul %418, %419, %cst_108 {dimension_numbers = #tpu.dot_dimension_numbers<[1], [0], [0], [1], [0, 0, 1, 1], [], []>} : vector<64x128xbf16>, vector<128x128xbf16>, vector<64x128xf32> -> vector<64x128xf32>
    %c0_109 = arith.constant 0 : index
    %c0_110 = arith.constant 0 : index
    %421 = vector.load %arg16[%c0_109, %c0_110] : memref<1x128xf32, #tpu.memory_space<vmem>>, vector<1x128xf32>
    %422 = vector.broadcast %421 : vector<1x128xf32> to vector<64x128xf32>
    %423 = arith.addf %420, %422 : vector<64x128xf32>
    %424 = arith.addf %423, %22 : vector<64x128xf32>
    %cst_111 = arith.constant dense<0.000000e+00> : vector<64xf32>
    %425 = vector.multi_reduction <add>, %424, %cst_111 [1] : vector<64x128xf32> to vector<64xf32>
    %426 = vector.shape_cast %425 : vector<64xf32> to vector<64x1xf32>
    %cst_112 = arith.constant 3.125000e-02 : f32
    %427 = vector.broadcast %cst_112 : f32 to vector<64x1xf32>
    %428 = arith.mulf %426, %427 : vector<64x1xf32>
    %429 = vector.broadcast %428 : vector<64x1xf32> to vector<64x128xf32>
    %430 = arith.subf %424, %429 : vector<64x128xf32>
    %431 = arith.mulf %430, %430 : vector<64x128xf32>
    %432 = vector.broadcast %4 : vector<1x128xf32> to vector<64x128xf32>
    %433 = arith.mulf %431, %432 : vector<64x128xf32>
    %cst_113 = arith.constant dense<0.000000e+00> : vector<64xf32>
    %434 = vector.multi_reduction <add>, %433, %cst_113 [1] : vector<64x128xf32> to vector<64xf32>
    %435 = vector.shape_cast %434 : vector<64xf32> to vector<64x1xf32>
    %cst_114 = arith.constant 3.125000e-02 : f32
    %436 = vector.broadcast %cst_114 : f32 to vector<64x1xf32>
    %437 = arith.mulf %435, %436 : vector<64x1xf32>
    %cst_115 = arith.constant 9.99999974E-6 : f32
    %438 = vector.broadcast %cst_115 : f32 to vector<64x1xf32>
    %439 = arith.addf %437, %438 : vector<64x1xf32>
    %440 = math.rsqrt %439 : vector<64x1xf32>
    %441 = vector.broadcast %440 : vector<64x1xf32> to vector<64x128xf32>
    %442 = arith.mulf %430, %441 : vector<64x128xf32>
    %c0_116 = arith.constant 0 : index
    %c0_117 = arith.constant 0 : index
    %443 = vector.load %arg17[%c0_116, %c0_117] : memref<1x128xf32, #tpu.memory_space<vmem>>, vector<1x128xf32>
    %444 = vector.broadcast %443 : vector<1x128xf32> to vector<64x128xf32>
    %445 = arith.mulf %442, %444 : vector<64x128xf32>
    %c0_118 = arith.constant 0 : index
    %c0_119 = arith.constant 0 : index
    %446 = vector.load %arg18[%c0_118, %c0_119] : memref<1x128xf32, #tpu.memory_space<vmem>>, vector<1x128xf32>
    %447 = vector.broadcast %446 : vector<1x128xf32> to vector<64x128xf32>
    %448 = arith.addf %445, %447 : vector<64x128xf32>
    %449 = arith.truncf %448 : vector<64x128xf32> to vector<64x128xbf16>
    %c0_120 = arith.constant 0 : index
    %c0_121 = arith.constant 0 : index
    %450 = vector.load %arg19[%c0_120, %c0_121] : memref<128x128xbf16, #tpu.memory_space<vmem>>, vector<128x128xbf16>
    %cst_122 = arith.constant dense<0.000000e+00> : vector<64x128xf32>
    %451 = tpu.matmul %449, %450, %cst_122 {dimension_numbers = #tpu.dot_dimension_numbers<[1], [0], [0], [1], [0, 0, 1, 1], [], []>} : vector<64x128xbf16>, vector<128x128xbf16>, vector<64x128xf32> -> vector<64x128xf32>
    %c0_123 = arith.constant 0 : index
    %c0_124 = arith.constant 0 : index
    %452 = vector.load %arg20[%c0_123, %c0_124] : memref<1x128xf32, #tpu.memory_space<vmem>>, vector<1x128xf32>
    %453 = vector.broadcast %452 : vector<1x128xf32> to vector<64x128xf32>
    %454 = arith.addf %451, %453 : vector<64x128xf32>
    %cst_125 = arith.constant 0.000000e+00 : f32
    %455 = vector.broadcast %cst_125 : f32 to vector<64x128xf32>
    %456 = arith.maximumf %454, %455 : vector<64x128xf32>
    %457 = arith.truncf %456 : vector<64x128xf32> to vector<64x128xbf16>
    %c0_126 = arith.constant 0 : index
    %c0_127 = arith.constant 0 : index
    %458 = vector.load %arg21[%c0_126, %c0_127] : memref<128x128xbf16, #tpu.memory_space<vmem>>, vector<128x128xbf16>
    %cst_128 = arith.constant dense<0.000000e+00> : vector<64x128xf32>
    %459 = tpu.matmul %457, %458, %cst_128 {dimension_numbers = #tpu.dot_dimension_numbers<[1], [0], [0], [1], [0, 0, 1, 1], [], []>} : vector<64x128xbf16>, vector<128x128xbf16>, vector<64x128xf32> -> vector<64x128xf32>
    %c0_129 = arith.constant 0 : index
    %c0_130 = arith.constant 0 : index
    %460 = vector.load %arg22[%c0_129, %c0_130] : memref<1x128xf32, #tpu.memory_space<vmem>>, vector<1x128xf32>
    %461 = vector.broadcast %460 : vector<1x128xf32> to vector<64x128xf32>
    %462 = arith.addf %459, %461 : vector<64x128xf32>
    %463 = arith.addf %462, %448 : vector<64x128xf32>
    %cst_131 = arith.constant dense<0.000000e+00> : vector<64xf32>
    %464 = vector.multi_reduction <add>, %463, %cst_131 [1] : vector<64x128xf32> to vector<64xf32>
    %465 = vector.shape_cast %464 : vector<64xf32> to vector<64x1xf32>
    %cst_132 = arith.constant 3.125000e-02 : f32
    %466 = vector.broadcast %cst_132 : f32 to vector<64x1xf32>
    %467 = arith.mulf %465, %466 : vector<64x1xf32>
    %468 = vector.broadcast %467 : vector<64x1xf32> to vector<64x128xf32>
    %469 = arith.subf %463, %468 : vector<64x128xf32>
    %470 = arith.mulf %469, %469 : vector<64x128xf32>
    %471 = vector.broadcast %4 : vector<1x128xf32> to vector<64x128xf32>
    %472 = arith.mulf %470, %471 : vector<64x128xf32>
    %cst_133 = arith.constant dense<0.000000e+00> : vector<64xf32>
    %473 = vector.multi_reduction <add>, %472, %cst_133 [1] : vector<64x128xf32> to vector<64xf32>
    %474 = vector.shape_cast %473 : vector<64xf32> to vector<64x1xf32>
    %cst_134 = arith.constant 3.125000e-02 : f32
    %475 = vector.broadcast %cst_134 : f32 to vector<64x1xf32>
    %476 = arith.mulf %474, %475 : vector<64x1xf32>
    %cst_135 = arith.constant 9.99999974E-6 : f32
    %477 = vector.broadcast %cst_135 : f32 to vector<64x1xf32>
    %478 = arith.addf %476, %477 : vector<64x1xf32>
    %479 = math.rsqrt %478 : vector<64x1xf32>
    %480 = vector.broadcast %479 : vector<64x1xf32> to vector<64x128xf32>
    %481 = arith.mulf %469, %480 : vector<64x128xf32>
    %c0_136 = arith.constant 0 : index
    %c0_137 = arith.constant 0 : index
    %482 = vector.load %arg23[%c0_136, %c0_137] : memref<1x128xf32, #tpu.memory_space<vmem>>, vector<1x128xf32>
    %483 = vector.broadcast %482 : vector<1x128xf32> to vector<64x128xf32>
    %484 = arith.mulf %481, %483 : vector<64x128xf32>
    %c0_138 = arith.constant 0 : index
    %c0_139 = arith.constant 0 : index
    %485 = vector.load %arg24[%c0_138, %c0_139] : memref<1x128xf32, #tpu.memory_space<vmem>>, vector<1x128xf32>
    %486 = vector.broadcast %485 : vector<1x128xf32> to vector<64x128xf32>
    %487 = arith.addf %484, %486 : vector<64x128xf32>
    %488 = tpu.iota {dimensions = array<i32: 0>} : vector<8x64xi32>
    %489 = tpu.iota {dimensions = array<i32: 1>} : vector<8x64xi32>
    %c8_i32 = arith.constant 8 : i32
    %490 = vector.broadcast %c8_i32 : i32 to vector<8x64xi32>
    %491 = arith.muli %488, %490 : vector<8x64xi32>
    %492 = arith.cmpi sge, %489, %491 : vector<8x64xi32>
    %c8_i32_140 = arith.constant 8 : i32
    %493 = vector.broadcast %c8_i32_140 : i32 to vector<8x64xi32>
    %494 = arith.muli %488, %493 : vector<8x64xi32>
    %c4_i32 = arith.constant 4 : i32
    %495 = vector.broadcast %c4_i32 : i32 to vector<8x64xi32>
    %496 = arith.addi %494, %495 : vector<8x64xi32>
    %497 = arith.cmpi slt, %489, %496 : vector<8x64xi32>
    %498 = arith.andi %492, %497 : vector<8x64xi1>
    %499 = arith.extui %498 : vector<8x64xi1> to vector<8x64xi32>
    %500 = arith.sitofp %499 : vector<8x64xi32> to vector<8x64xf32>
    %cst_141 = arith.constant 2.500000e-01 : f32
    %501 = vector.broadcast %cst_141 : f32 to vector<8x64xf32>
    %502 = arith.mulf %500, %501 : vector<8x64xf32>
    %cst_142 = arith.constant dense<0.000000e+00> : vector<8x128xf32>
    %503 = tpu.matmul %502, %487, %cst_142 {dimension_numbers = #tpu.dot_dimension_numbers<[1], [0], [0], [1], [0, 0, 1, 1], [], []>} : vector<8x64xf32>, vector<64x128xf32>, vector<8x128xf32> -> vector<8x128xf32>
    %504 = arith.truncf %503 : vector<8x128xf32> to vector<8x128xbf16>
    %c0_143 = arith.constant 0 : index
    %c0_144 = arith.constant 0 : index
    %505 = vector.load %arg25[%c0_143, %c0_144] : memref<128x128xbf16, #tpu.memory_space<vmem>>, vector<128x128xbf16>
    %cst_145 = arith.constant dense<0.000000e+00> : vector<8x128xf32>
    %506 = tpu.matmul %504, %505, %cst_145 {dimension_numbers = #tpu.dot_dimension_numbers<[1], [0], [0], [1], [0, 0, 1, 1], [], []>} : vector<8x128xbf16>, vector<128x128xbf16>, vector<8x128xf32> -> vector<8x128xf32>
    %c0_146 = arith.constant 0 : index
    %c0_147 = arith.constant 0 : index
    %507 = vector.load %arg26[%c0_146, %c0_147] : memref<1x128xf32, #tpu.memory_space<vmem>>, vector<1x128xf32>
    %508 = vector.broadcast %507 : vector<1x128xf32> to vector<8x128xf32>
    %509 = arith.addf %506, %508 : vector<8x128xf32>
    %510 = math.tanh %509 : vector<8x128xf32>
    %511 = arith.truncf %510 : vector<8x128xf32> to vector<8x128xbf16>
    %c0_148 = arith.constant 0 : index
    %c0_149 = arith.constant 0 : index
    %512 = vector.load %arg27[%c0_148, %c0_149] : memref<128x128xbf16, #tpu.memory_space<vmem>>, vector<128x128xbf16>
    %cst_150 = arith.constant dense<0.000000e+00> : vector<8x128xf32>
    %513 = tpu.matmul %511, %512, %cst_150 {dimension_numbers = #tpu.dot_dimension_numbers<[1], [0], [0], [1], [0, 0, 1, 1], [], []>} : vector<8x128xbf16>, vector<128x128xbf16>, vector<8x128xf32> -> vector<8x128xf32>
    %c0_151 = arith.constant 0 : index
    %c0_152 = arith.constant 0 : index
    %514 = vector.load %arg28[%c0_151, %c0_152] : memref<1x128xf32, #tpu.memory_space<vmem>>, vector<1x128xf32>
    %515 = vector.broadcast %514 : vector<1x128xf32> to vector<8x128xf32>
    %516 = arith.addf %513, %515 : vector<8x128xf32>
    %c0_153 = arith.constant 0 : index
    %c0_154 = arith.constant 0 : index
    %517 = vector.load %arg29[%c0_153, %c0_154] : memref<8x128xf32, #tpu.memory_space<vmem>>, vector<8x128xf32>
    tpu.vector_store %arg29[%c0_153, %c0_154], %516 {strides = array<i32>} : memref<8x128xf32, #tpu.memory_space<vmem>>, vector<8x128xf32>,
    return
  }
  func.func @transform_0(%arg0: i32) -> (i32, i32) {
    %c0_i32 = arith.constant 0 : i32
    %c0_i32_0 = arith.constant 0 : i32
    return %arg0, %c0_i32 : i32, i32
  }
  func.func @transform_1(%arg0: i32) -> (i32, i32) {
    %c0_i32 = arith.constant 0 : i32
    %c0_i32_0 = arith.constant 0 : i32
    return %arg0, %c0_i32 : i32, i32
  }
  func.func @transform_2(%arg0: i32) -> (i32, i32) {
    %c0_i32 = arith.constant 0 : i32
    %c0_i32_0 = arith.constant 0 : i32
    %c0_i32_1 = arith.constant 0 : i32
    return %c0_i32, %c0_i32_0 : i32, i32
  }
  func.func @transform_3(%arg0: i32) -> (i32, i32) {
    %c0_i32 = arith.constant 0 : i32
    %c0_i32_0 = arith.constant 0 : i32
    %c0_i32_1 = arith.constant 0 : i32
    return %c0_i32, %c0_i32_0 : i32, i32
  }
  func.func @transform_4(%arg0: i32) -> (i32, i32) {
    %c0_i32 = arith.constant 0 : i32
    %c0_i32_0 = arith.constant 0 : i32
    %c0_i32_1 = arith.constant 0 : i32
    return %c0_i32, %c0_i32_0 : i32, i32
  }
  func.func @transform_5(%arg0: i32) -> (i32, i32) {
    %c0_i32 = arith.constant 0 : i32
    %c0_i32_0 = arith.constant 0 : i32
    %c0_i32_1 = arith.constant 0 : i32
    return %c0_i32, %c0_i32_0 : i32, i32
  }
  func.func @transform_6(%arg0: i32) -> (i32, i32) {
    %c0_i32 = arith.constant 0 : i32
    %c0_i32_0 = arith.constant 0 : i32
    %c0_i32_1 = arith.constant 0 : i32
    return %c0_i32, %c0_i32_0 : i32, i32
  }
  func.func @transform_7(%arg0: i32) -> (i32, i32) {
    %c0_i32 = arith.constant 0 : i32
    %c0_i32_0 = arith.constant 0 : i32
    %c0_i32_1 = arith.constant 0 : i32
    return %c0_i32, %c0_i32_0 : i32, i32
  }
  func.func @transform_8(%arg0: i32) -> (i32, i32) {
    %c0_i32 = arith.constant 0 : i32
    %c0_i32_0 = arith.constant 0 : i32
    %c0_i32_1 = arith.constant 0 : i32
    return %c0_i32, %c0_i32_0 : i32, i32
  }
  func.func @transform_9(%arg0: i32) -> (i32, i32) {
    %c0_i32 = arith.constant 0 : i32
    %c0_i32_0 = arith.constant 0 : i32
    %c0_i32_1 = arith.constant 0 : i32
    return %c0_i32, %c0_i32_0 : i32, i32
  }
  func.func @transform_10(%arg0: i32) -> (i32, i32) {
    %c0_i32 = arith.constant 0 : i32
    %c0_i32_0 = arith.constant 0 : i32
    %c0_i32_1 = arith.constant 0 : i32
    return %c0_i32, %c0_i32_0 : i32, i32
  }
  func.func @transform_11(%arg0: i32) -> (i32, i32) {
    %c0_i32 = arith.constant 0 : i32
    %c0_i32_0 = arith.constant 0 : i32
    %c0_i32_1 = arith.constant 0 : i32
    return %c0_i32, %c0_i32_0 : i32, i32
  }
  func.func @transform_12(%arg0: i32) -> (i32, i32) {
    %c0_i32 = arith.constant 0 : i32
    %c0_i32_0 = arith.constant 0 : i32
    %c0_i32_1 = arith.constant 0 : i32
    return %c0_i32, %c0_i32_0 : i32, i32
  }
  func.func @transform_13(%arg0: i32) -> (i32, i32) {
    %c0_i32 = arith.constant 0 : i32
    %c0_i32_0 = arith.constant 0 : i32
    %c0_i32_1 = arith.constant 0 : i32
    return %c0_i32, %c0_i32_0 : i32, i32
  }
  func.func @transform_14(%arg0: i32) -> (i32, i32) {
    %c0_i32 = arith.constant 0 : i32
    %c0_i32_0 = arith.constant 0 : i32
    %c0_i32_1 = arith.constant 0 : i32
    return %c0_i32, %c0_i32_0 : i32, i32
  }
  func.func @transform_15(%arg0: i32) -> (i32, i32) {
    %c0_i32 = arith.constant 0 : i32
    %c0_i32_0 = arith.constant 0 : i32
    %c0_i32_1 = arith.constant 0 : i32
    return %c0_i32, %c0_i32_0 : i32, i32
  }
  func.func @transform_16(%arg0: i32) -> (i32, i32) {
    %c0_i32 = arith.constant 0 : i32
    %c0_i32_0 = arith.constant 0 : i32
    %c0_i32_1 = arith.constant 0 : i32
    return %c0_i32, %c0_i32_0 : i32, i32
  }
  func.func @transform_17(%arg0: i32) -> (i32, i32) {
    %c0_i32 = arith.constant 0 : i32
    %c0_i32_0 = arith.constant 0 : i32
    %c0_i32_1 = arith.constant 0 : i32
    return %c0_i32, %c0_i32_0 : i32, i32
  }
  func.func @transform_18(%arg0: i32) -> (i32, i32) {
    %c0_i32 = arith.constant 0 : i32
    %c0_i32_0 = arith.constant 0 : i32
    %c0_i32_1 = arith.constant 0 : i32
    return %c0_i32, %c0_i32_0 : i32, i32
  }
  func.func @transform_19(%arg0: i32) -> (i32, i32) {
    %c0_i32 = arith.constant 0 : i32
    %c0_i32_0 = arith.constant 0 : i32
    %c0_i32_1 = arith.constant 0 : i32
    return %c0_i32, %c0_i32_0 : i32, i32
  }
  func.func @transform_20(%arg0: i32) -> (i32, i32) {
    %c0_i32 = arith.constant 0 : i32
    %c0_i32_0 = arith.constant 0 : i32
    %c0_i32_1 = arith.constant 0 : i32
    return %c0_i32, %c0_i32_0 : i32, i32
  }
  func.func @transform_21(%arg0: i32) -> (i32, i32) {
    %c0_i32 = arith.constant 0 : i32
    %c0_i32_0 = arith.constant 0 : i32
    %c0_i32_1 = arith.constant 0 : i32
    return %c0_i32, %c0_i32_0 : i32, i32
  }
  func.func @transform_22(%arg0: i32) -> (i32, i32) {
    %c0_i32 = arith.constant 0 : i32
    %c0_i32_0 = arith.constant 0 : i32
    %c0_i32_1 = arith.constant 0 : i32
    return %c0_i32, %c0_i32_0 : i32, i32
  }
  func.func @transform_23(%arg0: i32) -> (i32, i32) {
    %c0_i32 = arith.constant 0 : i32
    %c0_i32_0 = arith.constant 0 : i32
    %c0_i32_1 = arith.constant 0 : i32
    return %c0_i32, %c0_i32_0 : i32, i32
  }
  func.func @transform_24(%arg0: i32) -> (i32, i32) {
    %c0_i32 = arith.constant 0 : i32
    %c0_i32_0 = arith.constant 0 : i32
    %c0_i32_1 = arith.constant 0 : i32
    return %c0_i32, %c0_i32_0 : i32, i32
  }
  func.func @transform_25(%arg0: i32) -> (i32, i32) {
    %c0_i32 = arith.constant 0 : i32
    %c0_i32_0 = arith.constant 0 : i32
    %c0_i32_1 = arith.constant 0 : i32
    return %c0_i32, %c0_i32_0 : i32, i32
  }
  func.func @transform_26(%arg0: i32) -> (i32, i32) {
    %c0_i32 = arith.constant 0 : i32
    %c0_i32_0 = arith.constant 0 : i32
    %c0_i32_1 = arith.constant 0 : i32
    return %c0_i32, %c0_i32_0 : i32, i32
  }
  func.func @transform_27(%arg0: i32) -> (i32, i32) {
    %c0_i32 = arith.constant 0 : i32
    %c0_i32_0 = arith.constant 0 : i32
    %c0_i32_1 = arith.constant 0 : i32
    return %c0_i32, %c0_i32_0 : i32, i32
  }
  func.func @transform_28(%arg0: i32) -> (i32, i32) {
    %c0_i32 = arith.constant 0 : i32
    %c0_i32_0 = arith.constant 0 : i32
    return %arg0, %c0_i32 : i32, i32
  }
}

</mosaic_0001>

<llo_original>
// kernel: vlnce_forward.1
$region0: #{vlnce_forward.1}
  #allocation0 [shape = 'u32[]', space=smem, size = 0x4, offset = 0x4, fixed_abs, tag = 'smem constant byte address 0x4 - core index']
  #allocation1 [shape = 'u32[144,128]{1,0:T(1,128)}', space=vmem, size = 0x12000, scoped, tag = 'internal scratch']
  %s0 = inlined_call_operand.vmem [shape: bf16[64,256], index: 0, kind: input, shape index: {}]
  %s1 = inlined_call_operand.vmem [shape: bf16[64,128], index: 1, kind: input, shape index: {}]
  %s2 = inlined_call_operand.vmem [shape: bf16[256,128], index: 2, kind: input, shape index: {}]
  %s3 = inlined_call_operand.vmem [shape: f32[1,128], index: 3, kind: input, shape index: {}]
  %s4 = inlined_call_operand.vmem [shape: bf16[128,128], index: 4, kind: input, shape index: {}]
  %s5 = inlined_call_operand.vmem [shape: f32[1,128], index: 5, kind: input, shape index: {}]
  %s6 = inlined_call_operand.vmem [shape: bf16[128,128], index: 6, kind: input, shape index: {}]
  %s7 = inlined_call_operand.vmem [shape: f32[1,128], index: 7, kind: input, shape index: {}]
  %s8 = inlined_call_operand.vmem [shape: bf16[128,128], index: 8, kind: input, shape index: {}]
  %s9 = inlined_call_operand.vmem [shape: f32[1,128], index: 9, kind: input, shape index: {}]
  %s10 = inlined_call_operand.vmem [shape: bf16[128,128], index: 10, kind: input, shape index: {}]
  %s11 = inlined_call_operand.vmem [shape: f32[1,128], index: 11, kind: input, shape index: {}]
  %s12 = inlined_call_operand.vmem [shape: bf16[128,256], index: 12, kind: input, shape index: {}]
  %s13 = inlined_call_operand.vmem [shape: f32[1,256], index: 13, kind: input, shape index: {}]
  %s14 = inlined_call_operand.vmem [shape: bf16[128,128], index: 14, kind: input, shape index: {}]
  %s15 = inlined_call_operand.vmem [shape: f32[1,128], index: 15, kind: input, shape index: {}]
  %s16 = inlined_call_operand.vmem [shape: f32[1,128], index: 16, kind: input, shape index: {}]
  %s17 = inlined_call_operand.vmem [shape: f32[1,128], index: 17, kind: input, shape index: {}]
  %s18 = inlined_call_operand.vmem [shape: bf16[128,128], index: 18, kind: input, shape index: {}]
  %s19 = inlined_call_operand.vmem [shape: f32[1,128], index: 19, kind: input, shape index: {}]
  %s20 = inlined_call_operand.vmem [shape: bf16[128,128], index: 20, kind: input, shape index: {}]
  %s21 = inlined_call_operand.vmem [shape: f32[1,128], index: 21, kind: input, shape index: {}]
  %s22 = inlined_call_operand.vmem [shape: f32[1,128], index: 22, kind: input, shape index: {}]
  %s23 = inlined_call_operand.vmem [shape: f32[1,128], index: 23, kind: input, shape index: {}]
  %s24 = inlined_call_operand.vmem [shape: bf16[128,128], index: 24, kind: input, shape index: {}]
  %s25 = inlined_call_operand.vmem [shape: f32[1,128], index: 25, kind: input, shape index: {}]
  %s26 = inlined_call_operand.vmem [shape: bf16[128,128], index: 26, kind: input, shape index: {}]
  %s27 = inlined_call_operand.vmem [shape: f32[1,128], index: 27, kind: input, shape index: {}]
  %s28 = inlined_call_operand.vmem [shape: f32[8,128], index: 28, kind: output, shape index: {}]
  %s29 = sld [smem:[#allocation0]]
  $region122: #{vlnce_forward.1} parent=0
    _
  %s31 = ssub.s32 1, %s29
  %s32 = scalar_select 0, %s31, %s29
  // Predicated region
  $region2: #{vlnce_forward.1} parent=0 // pred_check
    _
  $region3: #{vlnce_forward.1} parent=0 // pred_check_branch
    %34 = sbr.rel (0) target = $region5
  $region4: #{vlnce_forward.1} parent=0 // pred_region
    _
  $region5: #{vlnce_forward.1} parent=0 // pred_fallthru
    _
  // Predicated region
  $region6: #{vlnce_forward.1} parent=0 // pred_check
    _
  $region7: #{vlnce_forward.1} parent=0 // pred_check_branch
    %36 = sbr.rel (0) target = $region9
  $region8: #{vlnce_forward.1} parent=0 // pred_region
    _
  $region9: #{vlnce_forward.1} parent=0 // pred_fallthru
    _
  // Predicated region
  $region10: #{vlnce_forward.1} parent=0 // pred_check
    _
  $region11: #{vlnce_forward.1} parent=0 // pred_check_branch
    %38 = sbr.rel (0) target = $region13
  $region12: #{vlnce_forward.1} parent=0 // pred_region
    _
  $region13: #{vlnce_forward.1} parent=0 // pred_fallthru
    _
  // Predicated region
  $region14: #{vlnce_forward.1} parent=0 // pred_check
    _
  $region15: #{vlnce_forward.1} parent=0 // pred_check_branch
    %40 = sbr.rel (0) target = $region17
  $region16: #{vlnce_forward.1} parent=0 // pred_region
    _
  $region17: #{vlnce_forward.1} parent=0 // pred_fallthru
    _
  // Predicated region
  $region18: #{vlnce_forward.1} parent=0 // pred_check
    _
  $region19: #{vlnce_forward.1} parent=0 // pred_check_branch
    %42 = sbr.rel (0) target = $region21
  $region20: #{vlnce_forward.1} parent=0 // pred_region
    _
  $region21: #{vlnce_forward.1} parent=0 // pred_fallthru
    _
  // Predicated region
  $region22: #{vlnce_forward.1} parent=0 // pred_check
    _
  $region23: #{vlnce_forward.1} parent=0 // pred_check_branch
    %44 = sbr.rel (0) target = $region25
  $region24: #{vlnce_forward.1} parent=0 // pred_region
    _
  $region25: #{vlnce_forward.1} parent=0 // pred_fallthru
    _
  // Predicated region
  $region26: #{vlnce_forward.1} parent=0 // pred_check
    _
  $region27: #{vlnce_forward.1} parent=0 // pred_check_branch
    %46 = sbr.rel (0) target = $region29
  $region28: #{vlnce_forward.1} parent=0 // pred_region
    _
  $region29: #{vlnce_forward.1} parent=0 // pred_fallthru
    _
  // Predicated region
  $region30: #{vlnce_forward.1} parent=0 // pred_check
    _
  $region31: #{vlnce_forward.1} parent=0 // pred_check_branch
    %48 = sbr.rel (0) target = $region33
  $region32: #{vlnce_forward.1} parent=0 // pred_region
    _
  $region33: #{vlnce_forward.1} parent=0 // pred_fallthru
    _
  // Predicated region
  $region34: #{vlnce_forward.1} parent=0 // pred_check
    _
  $region35: #{vlnce_forward.1} parent=0 // pred_check_branch
    %50 = sbr.rel (0) target = $region37
  $region36: #{vlnce_forward.1} parent=0 // pred_region
    _
  $region37: #{vlnce_forward.1} parent=0 // pred_fallthru
    _
  // Predicated region
  $region38: #{vlnce_forward.1} parent=0 // pred_check
    _
  $region39: #{vlnce_forward.1} parent=0 // pred_check_branch
    %52 = sbr.rel (0) target = $region41
  $region40: #{vlnce_forward.1} parent=0 // pred_region
    _
  $region41: #{vlnce_forward.1} parent=0 // pred_fallthru
    _
  // Predicated region
  $region42: #{vlnce_forward.1} parent=0 // pred_check
    _
  $region43: #{vlnce_forward.1} parent=0 // pred_check_branch
    %54 = sbr.rel (0) target = $region45
  $region44: #{vlnce_forward.1} parent=0 // pred_region
    _
  $region45: #{vlnce_forward.1} parent=0 // pred_fallthru
    _
  // Predicated region
  $region46: #{vlnce_forward.1} parent=0 // pred_check
    _
  $region47: #{vlnce_forward.1} parent=0 // pred_check_branch
    %56 = sbr.rel (0) target = $region49
  $region48: #{vlnce_forward.1} parent=0 // pred_region
    _
  $region49: #{vlnce_forward.1} parent=0 // pred_fallthru
    _
  // Predicated region
  $region50: #{vlnce_forward.1} parent=0 // pred_check
    _
  $region51: #{vlnce_forward.1} parent=0 // pred_check_branch
    %58 = sbr.rel (0) target = $region53
  $region52: #{vlnce_forward.1} parent=0 // pred_region
    _
  $region53: #{vlnce_forward.1} parent=0 // pred_fallthru
    _
  // Predicated region
  $region54: #{vlnce_forward.1} parent=0 // pred_check
    _
  $region55: #{vlnce_forward.1} parent=0 // pred_check_branch
    %60 = sbr.rel (0) target = $region57
  $region56: #{vlnce_forward.1} parent=0 // pred_region
    _
  $region57: #{vlnce_forward.1} parent=0 // pred_fallthru
    _
  // Predicated region
  $region58: #{vlnce_forward.1} parent=0 // pred_check
    _
  $region59: #{vlnce_forward.1} parent=0 // pred_check_branch
    %62 = sbr.rel (0) target = $region61
  $region60: #{vlnce_forward.1} parent=0 // pred_region
    _
  $region61: #{vlnce_forward.1} parent=0 // pred_fallthru
    _
  // Predicated region
  $region62: #{vlnce_forward.1} parent=0 // pred_check
    _
  $region63: #{vlnce_forward.1} parent=0 // pred_check_branch
    %64 = sbr.rel (0) target = $region65
  $region64: #{vlnce_forward.1} parent=0 // pred_region
    _
  $region65: #{vlnce_forward.1} parent=0 // pred_fallthru
    _
  // Predicated region
  $region66: #{vlnce_forward.1} parent=0 // pred_check
    _
  $region67: #{vlnce_forward.1} parent=0 // pred_check_branch
    %66 = sbr.rel (0) target = $region69
  $region68: #{vlnce_forward.1} parent=0 // pred_region
    _
  $region69: #{vlnce_forward.1} parent=0 // pred_fallthru
    _
  // Predicated region
  $region70: #{vlnce_forward.1} parent=0 // pred_check
    _
  $region71: #{vlnce_forward.1} parent=0 // pred_check_branch
    %68 = sbr.rel (0) target = $region73
  $region72: #{vlnce_forward.1} parent=0 // pred_region
    _
  $region73: #{vlnce_forward.1} parent=0 // pred_fallthru
    _
  // Predicated region
  $region74: #{vlnce_forward.1} parent=0 // pred_check
    _
  $region75: #{vlnce_forward.1} parent=0 // pred_check_branch
    %70 = sbr.rel (0) target = $region77
  $region76: #{vlnce_forward.1} parent=0 // pred_region
    _
  $region77: #{vlnce_forward.1} parent=0 // pred_fallthru
    _
  // Predicated region
  $region78: #{vlnce_forward.1} parent=0 // pred_check
    _
  $region79: #{vlnce_forward.1} parent=0 // pred_check_branch
    %72 = sbr.rel (0) target = $region81
  $region80: #{vlnce_forward.1} parent=0 // pred_region
    _
  $region81: #{vlnce_forward.1} parent=0 // pred_fallthru
    _
  // Predicated region
  $region82: #{vlnce_forward.1} parent=0 // pred_check
    _
  $region83: #{vlnce_forward.1} parent=0 // pred_check_branch
    %74 = sbr.rel (0) target = $region85
  $region84: #{vlnce_forward.1} parent=0 // pred_region
    _
  $region85: #{vlnce_forward.1} parent=0 // pred_fallthru
    _
  // Predicated region
  $region86: #{vlnce_forward.1} parent=0 // pred_check
    _
  $region87: #{vlnce_forward.1} parent=0 // pred_check_branch
    %76 = sbr.rel (0) target = $region89
  $region88: #{vlnce_forward.1} parent=0 // pred_region
    _
  $region89: #{vlnce_forward.1} parent=0 // pred_fallthru
    _
  // Predicated region
  $region90: #{vlnce_forward.1} parent=0 // pred_check
    _
  $region91: #{vlnce_forward.1} parent=0 // pred_check_branch
    %78 = sbr.rel (0) target = $region93
  $region92: #{vlnce_forward.1} parent=0 // pred_region
    _
  $region93: #{vlnce_forward.1} parent=0 // pred_fallthru
    _
  // Predicated region
  $region94: #{vlnce_forward.1} parent=0 // pred_check
    _
  $region95: #{vlnce_forward.1} parent=0 // pred_check_branch
    %80 = sbr.rel (0) target = $region97
  $region96: #{vlnce_forward.1} parent=0 // pred_region
    _
  $region97: #{vlnce_forward.1} parent=0 // pred_fallthru
    _
  // Predicated region
  $region98: #{vlnce_forward.1} parent=0 // pred_check
    _
  $region99: #{vlnce_forward.1} parent=0 // pred_check_branch
    %82 = sbr.rel (0) target = $region101
  $region100: #{vlnce_forward.1} parent=0 // pred_region
    _
  $region101: #{vlnce_forward.1} parent=0 // pred_fallthru
    _
  // Predicated region
  $region102: #{vlnce_forward.1} parent=0 // pred_check
    _
  $region103: #{vlnce_forward.1} parent=0 // pred_check_branch
    %84 = sbr.rel (0) target = $region105
  $region104: #{vlnce_forward.1} parent=0 // pred_region
    _
  $region105: #{vlnce_forward.1} parent=0 // pred_fallthru
    _
  // Predicated region
  $region106: #{vlnce_forward.1} parent=0 // pred_check
    _
  $region107: #{vlnce_forward.1} parent=0 // pred_check_branch
    %86 = sbr.rel (0) target = $region109
  $region108: #{vlnce_forward.1} parent=0 // pred_region
    _
  $region109: #{vlnce_forward.1} parent=0 // pred_fallthru
    _
  // Predicated region
  $region110: #{vlnce_forward.1} parent=0 // pred_check
    _
  $region111: #{vlnce_forward.1} parent=0 // pred_check_branch
    %88 = sbr.rel (0) target = $region113
  $region112: #{vlnce_forward.1} parent=0 // pred_region
    _
  $region113: #{vlnce_forward.1} parent=0 // pred_fallthru
    _
  %v90 = vlaneseq
  %v91 = vand.u32 %v90, 127
  %vm92 = vcmp.lt.s32.totalorder %v91, 32
  %v93 = vsel %vm92, 1, 0
  %v94 = vcvt.s32.f32 %v93
  %v95 = vld [vmem:[%s0] sm:$0xff]
  %v96 = vld [vmem:[%s0 + $0x8] sm:$0xff]
  %v97 = vld [vmem:[%s0 + $0x10] sm:$0xff]
  %v98 = vld [vmem:[%s0 + $0x18] sm:$0xff]
  %v99 = vld [vmem:[%s0 + $0x20] sm:$0xff]
  %v100 = vld [vmem:[%s0 + $0x28] sm:$0xff]
  %v101 = vld [vmem:[%s0 + $0x30] sm:$0xff]
  %v102 = vld [vmem:[%s0 + $0x38] sm:$0xff]
  %v103 = vld [vmem:[%s2] sm:$0xf]
  %v104 = vld [vmem:[%s2 + $0x4] sm:$0xf]
  %v105 = vld [vmem:[%s2 + $0x8] sm:$0xf]
  %v106 = vld [vmem:[%s2 + $0xc] sm:$0xf]
  %v107 = vld [vmem:[%s2 + $0x10] sm:$0xf]
  %v108 = vld [vmem:[%s2 + $0x14] sm:$0xf]
  %v109 = vld [vmem:[%s2 + $0x18] sm:$0xf]
  %v110 = vld [vmem:[%s2 + $0x1c] sm:$0xf]
  %v111 = vld [vmem:[%s2 + $0x20] sm:$0xf]
  %v112 = vld [vmem:[%s2 + $0x24] sm:$0xf]
  %v113 = vld [vmem:[%s2 + $0x28] sm:$0xf]
  %v114 = vld [vmem:[%s2 + $0x2c] sm:$0xf]
  %v115 = vld [vmem:[%s2 + $0x30] sm:$0xf]
  %v116 = vld [vmem:[%s2 + $0x34] sm:$0xf]
  %v117 = vld [vmem:[%s2 + $0x38] sm:$0xf]
  %v118 = vld [vmem:[%s2 + $0x3c] sm:$0xf]
  %v119 = vld [vmem:[%s2 + $0x40] sm:$0xf]
  %v120 = vld [vmem:[%s2 + $0x44] sm:$0xf]
  %v121 = vld [vmem:[%s2 + $0x48] sm:$0xf]
  %v122 = vld [vmem:[%s2 + $0x4c] sm:$0xf]
  %v123 = vld [vmem:[%s2 + $0x50] sm:$0xf]
  %v124 = vld [vmem:[%s2 + $0x54] sm:$0xf]
  %v125 = vld [vmem:[%s2 + $0x58] sm:$0xf]
  %v126 = vld [vmem:[%s2 + $0x5c] sm:$0xf]
  %v127 = vld [vmem:[%s2 + $0x60] sm:$0xf]
  %v128 = vld [vmem:[%s2 + $0x64] sm:$0xf]
  %v129 = vld [vmem:[%s2 + $0x68] sm:$0xf]
  %v130 = vld [vmem:[%s2 + $0x6c] sm:$0xf]
  %v131 = vld [vmem:[%s2 + $0x70] sm:$0xf]
  %v132 = vld [vmem:[%s2 + $0x74] sm:$0xf]
  %v133 = vld [vmem:[%s2 + $0x78] sm:$0xf]
  %v134 = vld [vmem:[%s2 + $0x7c] sm:$0xf]
  %v135 = vld [vmem:[%s3] sm:$0x1]
  %v137 = vlaneseq
  %v138 = vshrl.u32 %v137, 7
  %v139 = vsub.s32 0, %v138
  %v140 = vrot.slane %v135, %v139
  %v150 = vunpack.c.l.b16 %v95
  %v151 = vunpack.c.h.b16 %v95
  %v152 = vunpack.c.l.b16 %v96
  %v153 = vunpack.c.h.b16 %v96
  %v154 = vunpack.c.l.b16 %v97
  %v155 = vunpack.c.h.b16 %v97
  %v156 = vunpack.c.l.b16 %v98
  %v157 = vunpack.c.h.b16 %v98
  %v158 = vunpack.c.l.b16 %v99
  %v159 = vunpack.c.h.b16 %v99
  %v160 = vunpack.c.l.b16 %v100
  %v161 = vunpack.c.h.b16 %v100
  %v162 = vunpack.c.l.b16 %v101
  %v163 = vunpack.c.h.b16 %v101
  %v164 = vunpack.c.l.b16 %v102
  %v165 = vunpack.c.h.b16 %v102
  %v166 = vpack.c.b16 %v152, %v150
  %v167 = vpack.c.b16 %v153, %v151
  %v168 = vpack.c.b16 %v156, %v154
  %v169 = vpack.c.b16 %v157, %v155
  %v170 = vpack.c.b16 %v160, %v158
  %v171 = vpack.c.b16 %v161, %v159
  %v172 = vpack.c.b16 %v164, %v162
  %v173 = vpack.c.b16 %v165, %v163
  %v214 = vunpack.c.l.b16 %v103
  %v215 = vunpack.c.l.b16 %v104
  %v216 = vunpack.c.l.b16 %v105
  %v217 = vunpack.c.l.b16 %v106
  %v218 = vunpack.c.l.b16 %v107
  %v219 = vunpack.c.l.b16 %v108
  %v220 = vunpack.c.l.b16 %v109
  %v221 = vunpack.c.l.b16 %v110
  %v222 = vunpack.c.l.b16 %v111
  %v223 = vunpack.c.l.b16 %v112
  %v224 = vunpack.c.l.b16 %v113
  %v225 = vunpack.c.l.b16 %v114
  %v226 = vunpack.c.l.b16 %v115
  %v227 = vunpack.c.l.b16 %v116
  %v228 = vunpack.c.l.b16 %v117
  %v229 = vunpack.c.l.b16 %v118
  %v230 = vunpack.c.l.b16 %v119
  %v231 = vunpack.c.l.b16 %v120
  %v232 = vunpack.c.l.b16 %v121
  %v233 = vunpack.c.l.b16 %v122
  %v234 = vunpack.c.l.b16 %v123
  %v235 = vunpack.c.l.b16 %v124
  %v236 = vunpack.c.l.b16 %v125
  %v237 = vunpack.c.l.b16 %v126
  %v238 = vunpack.c.l.b16 %v127
  %v239 = vunpack.c.l.b16 %v128
  %v240 = vunpack.c.l.b16 %v129
  %v241 = vunpack.c.l.b16 %v130
  %v242 = vunpack.c.l.b16 %v131
  %v243 = vunpack.c.l.b16 %v132
  %v244 = vunpack.c.l.b16 %v133
  %v245 = vunpack.c.l.b16 %v134
  %v246 = vpack.c.b16 %v215, %v214
  %v247 = vpack.c.b16 %v217, %v216
  %v248 = vpack.c.b16 %v219, %v218
  %v249 = vpack.c.b16 %v221, %v220
  %v250 = vpack.c.b16 %v223, %v222
  %v251 = vpack.c.b16 %v225, %v224
  %v252 = vpack.c.b16 %v227, %v226
  %v253 = vpack.c.b16 %v229, %v228
  %v254 = vpack.c.b16 %v231, %v230
  %v255 = vpack.c.b16 %v233, %v232
  %v256 = vpack.c.b16 %v235, %v234
  %v257 = vpack.c.b16 %v237, %v236
  %v258 = vpack.c.b16 %v239, %v238
  %v259 = vpack.c.b16 %v241, %v240
  %v260 = vpack.c.b16 %v243, %v242
  %v261 = vpack.c.b16 %v245, %v244
  %278 = vmatprep.subr.bf16.mxu0 0
  %279 = vmatpush1.bf16.msra.mxu0 %v246
  %280 = vmatprep.subr.bf16.mxu0 0
  %281 = vmatpush1.bf16.msra.mxu0 %v247
  %282 = vmatprep.subr.bf16.mxu0 0
  %283 = vmatpush1.bf16.msra.mxu0 %v248
  %284 = vmatprep.subr.bf16.mxu0 0
  %285 = vmatpush1.bf16.msra.mxu0 %v249
  %286 = vmatprep.subr.bf16.mxu0 0
  %287 = vmatpush1.bf16.msra.mxu0 %v250
  %288 = vmatprep.subr.bf16.mxu0 0
  %289 = vmatpush1.bf16.msra.mxu0 %v251
  %290 = vmatprep.subr.bf16.mxu0 0
  %291 = vmatpush1.bf16.msra.mxu0 %v252
  %292 = vmatprep.subr.bf16.mxu0 0
  %293 = vmatpush1.bf16.msra.mxu0 %v253
  %294 = vmatprep.subr.bf16.mxu0 0
  %295 = vmatpush1.bf16.msra.mxu0 %v254
  %296 = vmatprep.subr.bf16.mxu0 0
  %297 = vmatpush1.bf16.msra.mxu0 %v255
  %298 = vmatprep.subr.bf16.mxu0 0
  %299 = vmatpush1.bf16.msra.mxu0 %v256
  %300 = vmatprep.subr.bf16.mxu0 0
  %301 = vmatpush1.bf16.msra.mxu0 %v257
  %302 = vmatprep.subr.bf16.mxu0 0
  %303 = vmatpush1.bf16.msra.mxu0 %v258
  %304 = vmatprep.subr.bf16.mxu0 0
  %305 = vmatpush1.bf16.msra.mxu0 %v259
  %306 = vmatprep.subr.bf16.mxu0 0
  %307 = vmatpush1.bf16.msra.mxu0 %v260
  %308 = vmatprep.subr.bf16.mxu0 0
  %309 = vmatpush1.bf16.msra.mxu0 %v261
  %310 = vmatprep.mubr.bf16.mxu0 %v167
  %311 = vmatmul.mubr.bf16.gmra.mrb[0].mxu0 %v166
  %v312 = vpop.f32.mrb[0].mxu0
  %v313 = vadd.f32 %v140, %v312
  %v314 = vpop.f32.mrb[0].mxu0
  %v315 = vpop.f32.mrb[0].mxu0
  %v316 = vadd.f32 %v140, %v315
  %v317 = vpop.f32.mrb[0].mxu0
  %318 = vmatprep.mubr.bf16.mxu0 %v169
  %319 = vmatmul.mubr.bf16.gmra.mrb[0].mxu0 %v168
  %v320 = vpop.f32.mrb[0].mxu0
  %v321 = vadd.f32 %v140, %v320
  %v322 = vpop.f32.mrb[0].mxu0
  %v323 = vpop.f32.mrb[0].mxu0
  %v324 = vadd.f32 %v140, %v323
  %v325 = vpop.f32.mrb[0].mxu0
  %326 = vmatprep.mubr.bf16.mxu0 %v171
  %327 = vmatmul.mubr.bf16.gmra.mrb[0].mxu0 %v170
  %v328 = vpop.f32.mrb[0].mxu0
  %v329 = vadd.f32 %v140, %v328
  %v330 = vpop.f32.mrb[0].mxu0
  %v331 = vpop.f32.mrb[0].mxu0
  %v332 = vadd.f32 %v140, %v331
  %v333 = vpop.f32.mrb[0].mxu0
  %334 = vmatprep.mubr.bf16.mxu0 %v173
  %335 = vmatmul.mubr.bf16.gmra.mrb[0].mxu0 %v172
  %v336 = vpop.f32.mrb[0].mxu0
  %v337 = vadd.f32 %v140, %v336
  %v338 = vpop.f32.mrb[0].mxu0
  %v339 = vpop.f32.mrb[0].mxu0
  %v340 = vadd.f32 %v140, %v339
  %v341 = vpop.f32.mrb[0].mxu0
  %342 = vdwg.mxu0
  %v343 = vld [vmem:[%s1] sm:$0xf]
  %v344 = vld [vmem:[%s1 + $0x4] sm:$0xf]
  %v345 = vld [vmem:[%s1 + $0x8] sm:$0xf]
  %v346 = vld [vmem:[%s1 + $0xc] sm:$0xf]
  %v347 = vld [vmem:[%s1 + $0x10] sm:$0xf]
  %v348 = vld [vmem:[%s1 + $0x14] sm:$0xf]
  %v349 = vld [vmem:[%s1 + $0x18] sm:$0xf]
  %v350 = vld [vmem:[%s1 + $0x1c] sm:$0xf]
  %v351 = vld [vmem:[%s4] sm:$0xf]
  %v352 = vld [vmem:[%s4 + $0x4] sm:$0xf]
  %v353 = vld [vmem:[%s4 + $0x8] sm:$0xf]
  %v354 = vld [vmem:[%s4 + $0xc] sm:$0xf]
  %v355 = vld [vmem:[%s4 + $0x10] sm:$0xf]
  %v356 = vld [vmem:[%s4 + $0x14] sm:$0xf]
  %v357 = vld [vmem:[%s4 + $0x18] sm:$0xf]
  %v358 = vld [vmem:[%s4 + $0x1c] sm:$0xf]
  %v359 = vld [vmem:[%s4 + $0x20] sm:$0xf]
  %v360 = vld [vmem:[%s4 + $0x24] sm:$0xf]
  %v361 = vld [vmem:[%s4 + $0x28] sm:$0xf]
  %v362 = vld [vmem:[%s4 + $0x2c] sm:$0xf]
  %v363 = vld [vmem:[%s4 + $0x30] sm:$0xf]
  %v364 = vld [vmem:[%s4 + $0x34] sm:$0xf]
  %v365 = vld [vmem:[%s4 + $0x38] sm:$0xf]
  %v366 = vld [vmem:[%s4 + $0x3c] sm:$0xf]
  %v367 = vld [vmem:[%s5] sm:$0x1]
  %v369 = vlaneseq
  %v370 = vshrl.u32 %v369, 7
  %v371 = vsub.s32 0, %v370
  %v372 = vrot.slane %v367, %v371
  %v382 = vunpack.c.l.b16 %v343
  %v383 = vunpack.c.l.b16 %v344
  %v384 = vunpack.c.l.b16 %v345
  %v385 = vunpack.c.l.b16 %v346
  %v386 = vunpack.c.l.b16 %v347
  %v387 = vunpack.c.l.b16 %v348
  %v388 = vunpack.c.l.b16 %v349
  %v389 = vunpack.c.l.b16 %v350
  %v390 = vpack.c.b16 %v383, %v382
  %v391 = vpack.c.b16 %v385, %v384
  %v392 = vpack.c.b16 %v387, %v386
  %v393 = vpack.c.b16 %v389, %v388
  %v414 = vunpack.c.l.b16 %v351
  %v415 = vunpack.c.l.b16 %v352
  %v416 = vunpack.c.l.b16 %v353
  %v417 = vunpack.c.l.b16 %v354
  %v418 = vunpack.c.l.b16 %v355
  %v419 = vunpack.c.l.b16 %v356
  %v420 = vunpack.c.l.b16 %v357
  %v421 = vunpack.c.l.b16 %v358
  %v422 = vunpack.c.l.b16 %v359
  %v423 = vunpack.c.l.b16 %v360
  %v424 = vunpack.c.l.b16 %v361
  %v425 = vunpack.c.l.b16 %v362
  %v426 = vunpack.c.l.b16 %v363
  %v427 = vunpack.c.l.b16 %v364
  %v428 = vunpack.c.l.b16 %v365
  %v429 = vunpack.c.l.b16 %v366
  %v430 = vpack.c.b16 %v415, %v414
  %v431 = vpack.c.b16 %v417, %v416
  %v432 = vpack.c.b16 %v419, %v418
  %v433 = vpack.c.b16 %v421, %v420
  %v434 = vpack.c.b16 %v423, %v422
  %v435 = vpack.c.b16 %v425, %v424
  %v436 = vpack.c.b16 %v427, %v426
  %v437 = vpack.c.b16 %v429, %v428
  %446 = vmatprep.subr.bf16.mxu0 0
  %447 = vmatpush1.bf16.msra.mxu0 %v430
  %448 = vmatprep.subr.bf16.mxu0 0
  %449 = vmatpush1.bf16.msra.mxu0 %v431
  %450 = vmatprep.subr.bf16.mxu0 0
  %451 = vmatpush1.bf16.msra.mxu0 %v432
  %452 = vmatprep.subr.bf16.mxu0 0
  %453 = vmatpush1.bf16.msra.mxu0 %v433
  %454 = vmatprep.subr.bf16.mxu0 0
  %455 = vmatpush1.bf16.msra.mxu0 %v434
  %456 = vmatprep.subr.bf16.mxu0 0
  %457 = vmatpush1.bf16.msra.mxu0 %v435
  %458 = vmatprep.subr.bf16.mxu0 0
  %459 = vmatpush1.bf16.msra.mxu0 %v436
  %460 = vmatprep.subr.bf16.mxu0 0
  %461 = vmatpush1.bf16.msra.mxu0 %v437
  %462 = vmatprep.subr.bf16.mxu0 0
  %463 = vmatpush1.bf16.msra.mxu0 0
  %464 = vmatprep.subr.bf16.mxu0 0
  %465 = vmatpush1.bf16.msra.mxu0 0
  %466 = vmatprep.subr.bf16.mxu0 0
  %467 = vmatpush1.bf16.msra.mxu0 0
  %468 = vmatprep.subr.bf16.mxu0 0
  %469 = vmatpush1.bf16.msra.mxu0 0
  %470 = vmatprep.subr.bf16.mxu0 0
  %471 = vmatpush1.bf16.msra.mxu0 0
  %472 = vmatprep.subr.bf16.mxu0 0
  %473 = vmatpush1.bf16.msra.mxu0 0
  %474 = vmatprep.subr.bf16.mxu0 0
  %475 = vmatpush1.bf16.msra.mxu0 0
  %476 = vmatprep.subr.bf16.mxu0 0
  %477 = vmatpush1.bf16.msra.mxu0 0
  %478 = vmatprep.mubr.bf16.mxu0 0
  %479 = vmatmul.mubr.bf16.gmra.mrb[0].mxu0 %v390
  %v480 = vpop.f32.mrb[0].mxu0
  %v481 = vadd.f32 %v372, %v480
  %v482 = vpop.f32.mrb[0].mxu0
  %v483 = vpop.f32.mrb[0].mxu0
  %v484 = vadd.f32 %v372, %v483
  %v485 = vpop.f32.mrb[0].mxu0
  %486 = vmatprep.mubr.bf16.mxu0 0
  %487 = vmatmul.mubr.bf16.gmra.mrb[0].mxu0 %v391
  %v488 = vpop.f32.mrb[0].mxu0
  %v489 = vadd.f32 %v372, %v488
  %v490 = vpop.f32.mrb[0].mxu0
  %v491 = vpop.f32.mrb[0].mxu0
  %v492 = vadd.f32 %v372, %v491
  %v493 = vpop.f32.mrb[0].mxu0
  %494 = vmatprep.mubr.bf16.mxu0 0
  %495 = vmatmul.mubr.bf16.gmra.mrb[0].mxu0 %v392
  %v496 = vpop.f32.mrb[0].mxu0
  %v497 = vadd.f32 %v372, %v496
  %v498 = vpop.f32.mrb[0].mxu0
  %v499 = vpop.f32.mrb[0].mxu0
  %v500 = vadd.f32 %v372, %v499
  %v501 = vpop.f32.mrb[0].mxu0
  %502 = vmatprep.mubr.bf16.mxu0 0
  %503 = vmatmul.mubr.bf16.gmra.mrb[0].mxu0 %v393
  %v504 = vpop.f32.mrb[0].mxu0
  %v505 = vadd.f32 %v372, %v504
  %v506 = vpop.f32.mrb[0].mxu0
  %v507 = vpop.f32.mrb[0].mxu0
  %v508 = vadd.f32 %v372, %v507
  %v509 = vpop.f32.mrb[0].mxu0
  %510 = vdwg.mxu0
  %v511 = vpack.c.bf16 %v316, %v313
  %v512 = vpack.c.bf16 %v324, %v321
  %v513 = vpack.c.bf16 %v332, %v329
  %v514 = vpack.c.bf16 %v340, %v337
  %v515 = vld [vmem:[%s6] sm:$0xf]
  %v516 = vld [vmem:[%s6 + $0x4] sm:$0xf]
  %v517 = vld [vmem:[%s6 + $0x8] sm:$0xf]
  %v518 = vld [vmem:[%s6 + $0xc] sm:$0xf]
  %v519 = vld [vmem:[%s6 + $0x10] sm:$0xf]
  %v520 = vld [vmem:[%s6 + $0x14] sm:$0xf]
  %v521 = vld [vmem:[%s6 + $0x18] sm:$0xf]
  %v522 = vld [vmem:[%s6 + $0x1c] sm:$0xf]
  %v523 = vld [vmem:[%s6 + $0x20] sm:$0xf]
  %v524 = vld [vmem:[%s6 + $0x24] sm:$0xf]
  %v525 = vld [vmem:[%s6 + $0x28] sm:$0xf]
  %v526 = vld [vmem:[%s6 + $0x2c] sm:$0xf]
  %v527 = vld [vmem:[%s6 + $0x30] sm:$0xf]
  %v528 = vld [vmem:[%s6 + $0x34] sm:$0xf]
  %v529 = vld [vmem:[%s6 + $0x38] sm:$0xf]
  %v530 = vld [vmem:[%s6 + $0x3c] sm:$0xf]
  %v531 = vld [vmem:[%s7] sm:$0x1]
  %v533 = vlaneseq
  %v534 = vshrl.u32 %v533, 7
  %v535 = vsub.s32 0, %v534
  %v536 = vrot.slane %v531, %v535
  %v554 = vunpack.c.l.b16 %v515
  %v555 = vunpack.c.l.b16 %v516
  %v556 = vunpack.c.l.b16 %v517
  %v557 = vunpack.c.l.b16 %v518
  %v558 = vunpack.c.l.b16 %v519
  %v559 = vunpack.c.l.b16 %v520
  %v560 = vunpack.c.l.b16 %v521
  %v561 = vunpack.c.l.b16 %v522
  %v562 = vunpack.c.l.b16 %v523
  %v563 = vunpack.c.l.b16 %v524
  %v564 = vunpack.c.l.b16 %v525
  %v565 = vunpack.c.l.b16 %v526
  %v566 = vunpack.c.l.b16 %v527
  %v567 = vunpack.c.l.b16 %v528
  %v568 = vunpack.c.l.b16 %v529
  %v569 = vunpack.c.l.b16 %v530
  %v570 = vpack.c.b16 %v555, %v554
  %v571 = vpack.c.b16 %v557, %v556
  %v572 = vpack.c.b16 %v559, %v558
  %v573 = vpack.c.b16 %v561, %v560
  %v574 = vpack.c.b16 %v563, %v562
  %v575 = vpack.c.b16 %v565, %v564
  %v576 = vpack.c.b16 %v567, %v566
  %v577 = vpack.c.b16 %v569, %v568
  %586 = vmatprep.subr.bf16.mxu0 0
  %587 = vmatpush1.bf16.msra.mxu0 %v570
  %588 = vmatprep.subr.bf16.mxu0 0
  %589 = vmatpush1.bf16.msra.mxu0 %v571
  %590 = vmatprep.subr.bf16.mxu0 0
  %591 = vmatpush1.bf16.msra.mxu0 %v572
  %592 = vmatprep.subr.bf16.mxu0 0
  %593 = vmatpush1.bf16.msra.mxu0 %v573
  %594 = vmatprep.subr.bf16.mxu0 0
  %595 = vmatpush1.bf16.msra.mxu0 %v574
  %596 = vmatprep.subr.bf16.mxu0 0
  %597 = vmatpush1.bf16.msra.mxu0 %v575
  %598 = vmatprep.subr.bf16.mxu0 0
  %599 = vmatpush1.bf16.msra.mxu0 %v576
  %600 = vmatprep.subr.bf16.mxu0 0
  %601 = vmatpush1.bf16.msra.mxu0 %v577
  %602 = vmatprep.subr.bf16.mxu0 0
  %603 = vmatpush1.bf16.msra.mxu0 0
  %604 = vmatprep.subr.bf16.mxu0 0
  %605 = vmatpush1.bf16.msra.mxu0 0
  %606 = vmatprep.subr.bf16.mxu0 0
  %607 = vmatpush1.bf16.msra.mxu0 0
  %608 = vmatprep.subr.bf16.mxu0 0
  %609 = vmatpush1.bf16.msra.mxu0 0
  %610 = vmatprep.subr.bf16.mxu0 0
  %611 = vmatpush1.bf16.msra.mxu0 0
  %612 = vmatprep.subr.bf16.mxu0 0
  %613 = vmatpush1.bf16.msra.mxu0 0
  %614 = vmatprep.subr.bf16.mxu0 0
  %615 = vmatpush1.bf16.msra.mxu0 0
  %616 = vmatprep.subr.bf16.mxu0 0
  %617 = vmatpush1.bf16.msra.mxu0 0
  %618 = vmatprep.mubr.bf16.mxu0 0
  %619 = vmatmul.mubr.bf16.gmra.mrb[0].mxu0 %v511
  %v620 = vpop.f32.mrb[0].mxu0
  %v621 = vadd.f32 %v536, %v620
  %v622 = vpop.f32.mrb[0].mxu0
  %v623 = vpop.f32.mrb[0].mxu0
  %v624 = vadd.f32 %v536, %v623
  %v625 = vpop.f32.mrb[0].mxu0
  %626 = vmatprep.mubr.bf16.mxu0 0
  %627 = vmatmul.mubr.bf16.gmra.mrb[0].mxu0 %v512
  %v628 = vpop.f32.mrb[0].mxu0
  %v629 = vadd.f32 %v536, %v628
  %v630 = vpop.f32.mrb[0].mxu0
  %v631 = vpop.f32.mrb[0].mxu0
  %v632 = vadd.f32 %v536, %v631
  %v633 = vpop.f32.mrb[0].mxu0
  %634 = vmatprep.mubr.bf16.mxu0 0
  %635 = vmatmul.mubr.bf16.gmra.mrb[0].mxu0 %v513
  %v636 = vpop.f32.mrb[0].mxu0
  %v637 = vadd.f32 %v536, %v636
  %v638 = vpop.f32.mrb[0].mxu0
  %v639 = vpop.f32.mrb[0].mxu0
  %v640 = vadd.f32 %v536, %v639
  %v641 = vpop.f32.mrb[0].mxu0
  %642 = vmatprep.mubr.bf16.mxu0 0
  %643 = vmatmul.mubr.bf16.gmra.mrb[0].mxu0 %v514
  %v644 = vpop.f32.mrb[0].mxu0
  %v645 = vadd.f32 %v536, %v644
  %v646 = vpop.f32.mrb[0].mxu0
  %v647 = vpop.f32.mrb[0].mxu0
  %v648 = vadd.f32 %v536, %v647
  %v649 = vpop.f32.mrb[0].mxu0
  %650 = vdwg.mxu0
  %v651 = vpack.c.bf16 %v484, %v481
  %v652 = vpack.c.bf16 %v492, %v489
  %v653 = vpack.c.bf16 %v500, %v497
  %v654 = vpack.c.bf16 %v508, %v505
  %v655 = vld [vmem:[%s8] sm:$0xf]
  %v656 = vld [vmem:[%s8 + $0x4] sm:$0xf]
  %v657 = vld [vmem:[%s8 + $0x8] sm:$0xf]
  %v658 = vld [vmem:[%s8 + $0xc] sm:$0xf]
  %v659 = vld [vmem:[%s8 + $0x10] sm:$0xf]
  %v660 = vld [vmem:[%s8 + $0x14] sm:$0xf]
  %v661 = vld [vmem:[%s8 + $0x18] sm:$0xf]
  %v662 = vld [vmem:[%s8 + $0x1c] sm:$0xf]
  %v663 = vld [vmem:[%s8 + $0x20] sm:$0xf]
  %v664 = vld [vmem:[%s8 + $0x24] sm:$0xf]
  %v665 = vld [vmem:[%s8 + $0x28] sm:$0xf]
  %v666 = vld [vmem:[%s8 + $0x2c] sm:$0xf]
  %v667 = vld [vmem:[%s8 + $0x30] sm:$0xf]
  %v668 = vld [vmem:[%s8 + $0x34] sm:$0xf]
  %v669 = vld [vmem:[%s8 + $0x38] sm:$0xf]
  %v670 = vld [vmem:[%s8 + $0x3c] sm:$0xf]
  %v671 = vld [vmem:[%s9] sm:$0x1]
  %v673 = vlaneseq
  %v674 = vshrl.u32 %v673, 7
  %v675 = vsub.s32 0, %v674
  %v676 = vrot.slane %v671, %v675
  %v694 = vunpack.c.l.b16 %v655
  %v695 = vunpack.c.l.b16 %v656
  %v696 = vunpack.c.l.b16 %v657
  %v697 = vunpack.c.l.b16 %v658
  %v698 = vunpack.c.l.b16 %v659
  %v699 = vunpack.c.l.b16 %v660
  %v700 = vunpack.c.l.b16 %v661
  %v701 = vunpack.c.l.b16 %v662
  %v702 = vunpack.c.l.b16 %v663
  %v703 = vunpack.c.l.b16 %v664
  %v704 = vunpack.c.l.b16 %v665
  %v705 = vunpack.c.l.b16 %v666
  %v706 = vunpack.c.l.b16 %v667
  %v707 = vunpack.c.l.b16 %v668
  %v708 = vunpack.c.l.b16 %v669
  %v709 = vunpack.c.l.b16 %v670
  %v710 = vpack.c.b16 %v695, %v694
  %v711 = vpack.c.b16 %v697, %v696
  %v712 = vpack.c.b16 %v699, %v698
  %v713 = vpack.c.b16 %v701, %v700
  %v714 = vpack.c.b16 %v703, %v702
  %v715 = vpack.c.b16 %v705, %v704
  %v716 = vpack.c.b16 %v707, %v706
  %v717 = vpack.c.b16 %v709, %v708
  %726 = vmatprep.subr.bf16.mxu0 0
  %727 = vmatpush1.bf16.msra.mxu0 %v710
  %728 = vmatprep.subr.bf16.mxu0 0
  %729 = vmatpush1.bf16.msra.mxu0 %v711
  %730 = vmatprep.subr.bf16.mxu0 0
  %731 = vmatpush1.bf16.msra.mxu0 %v712
  %732 = vmatprep.subr.bf16.mxu0 0
  %733 = vmatpush1.bf16.msra.mxu0 %v713
  %734 = vmatprep.subr.bf16.mxu0 0
  %735 = vmatpush1.bf16.msra.mxu0 %v714
  %736 = vmatprep.subr.bf16.mxu0 0
  %737 = vmatpush1.bf16.msra.mxu0 %v715
  %738 = vmatprep.subr.bf16.mxu0 0
  %739 = vmatpush1.bf16.msra.mxu0 %v716
  %740 = vmatprep.subr.bf16.mxu0 0
  %741 = vmatpush1.bf16.msra.mxu0 %v717
  %742 = vmatprep.subr.bf16.mxu0 0
  %743 = vmatpush1.bf16.msra.mxu0 0
  %744 = vmatprep.subr.bf16.mxu0 0
  %745 = vmatpush1.bf16.msra.mxu0 0
  %746 = vmatprep.subr.bf16.mxu0 0
  %747 = vmatpush1.bf16.msra.mxu0 0
  %748 = vmatprep.subr.bf16.mxu0 0
  %749 = vmatpush1.bf16.msra.mxu0 0
  %750 = vmatprep.subr.bf16.mxu0 0
  %751 = vmatpush1.bf16.msra.mxu0 0
  %752 = vmatprep.subr.bf16.mxu0 0
  %753 = vmatpush1.bf16.msra.mxu0 0
  %754 = vmatprep.subr.bf16.mxu0 0
  %755 = vmatpush1.bf16.msra.mxu0 0
  %756 = vmatprep.subr.bf16.mxu0 0
  %757 = vmatpush1.bf16.msra.mxu0 0
  %758 = vmatprep.mubr.bf16.mxu0 0
  %759 = vmatmul.mubr.bf16.gmra.mrb[0].mxu0 %v651
  %v760 = vpop.f32.mrb[0].mxu0
  %v761 = vadd.f32 %v676, %v760
  %v762 = vpop.f32.mrb[0].mxu0
  %v763 = vpop.f32.mrb[0].mxu0
  %v764 = vadd.f32 %v676, %v763
  %v765 = vpop.f32.mrb[0].mxu0
  %766 = vmatprep.mubr.bf16.mxu0 0
  %767 = vmatmul.mubr.bf16.gmra.mrb[0].mxu0 %v652
  %v768 = vpop.f32.mrb[0].mxu0
  %v769 = vadd.f32 %v676, %v768
  %v770 = vpop.f32.mrb[0].mxu0
  %v771 = vpop.f32.mrb[0].mxu0
  %v772 = vadd.f32 %v676, %v771
  %v773 = vpop.f32.mrb[0].mxu0
  %774 = vmatprep.mubr.bf16.mxu0 0
  %775 = vmatmul.mubr.bf16.gmra.mrb[0].mxu0 %v653
  %v776 = vpop.f32.mrb[0].mxu0
  %v777 = vadd.f32 %v676, %v776
  %v778 = vpop.f32.mrb[0].mxu0
  %v779 = vpop.f32.mrb[0].mxu0
  %v780 = vadd.f32 %v676, %v779
  %v781 = vpop.f32.mrb[0].mxu0
  %782 = vmatprep.mubr.bf16.mxu0 0
  %783 = vmatmul.mubr.bf16.gmra.mrb[0].mxu0 %v654
  %v784 = vpop.f32.mrb[0].mxu0
  %v785 = vadd.f32 %v676, %v784
  %v786 = vpop.f32.mrb[0].mxu0
  %v787 = vpop.f32.mrb[0].mxu0
  %v788 = vadd.f32 %v676, %v787
  %v789 = vpop.f32.mrb[0].mxu0
  %790 = vdwg.mxu0
  %v791 = vpack.c.bf16 %v624, %v621
  %v792 = vpack.c.bf16 %v632, %v629
  %v793 = vpack.c.bf16 %v640, %v637
  %v794 = vpack.c.bf16 %v648, %v645
  %v795 = vld [vmem:[%s10] sm:$0xf]
  %v796 = vld [vmem:[%s10 + $0x4] sm:$0xf]
  %v797 = vld [vmem:[%s10 + $0x8] sm:$0xf]
  %v798 = vld [vmem:[%s10 + $0xc] sm:$0xf]
  %v799 = vld [vmem:[%s10 + $0x10] sm:$0xf]
  %v800 = vld [vmem:[%s10 + $0x14] sm:$0xf]
  %v801 = vld [vmem:[%s10 + $0x18] sm:$0xf]
  %v802 = vld [vmem:[%s10 + $0x1c] sm:$0xf]
  %v803 = vld [vmem:[%s10 + $0x20] sm:$0xf]
  %v804 = vld [vmem:[%s10 + $0x24] sm:$0xf]
  %v805 = vld [vmem:[%s10 + $0x28] sm:$0xf]
  %v806 = vld [vmem:[%s10 + $0x2c] sm:$0xf]
  %v807 = vld [vmem:[%s10 + $0x30] sm:$0xf]
  %v808 = vld [vmem:[%s10 + $0x34] sm:$0xf]
  %v809 = vld [vmem:[%s10 + $0x38] sm:$0xf]
  %v810 = vld [vmem:[%s10 + $0x3c] sm:$0xf]
  %v811 = vld [vmem:[%s11] sm:$0x1]
  %v813 = vlaneseq
  %v814 = vshrl.u32 %v813, 7
  %v815 = vsub.s32 0, %v814
  %v816 = vrot.slane %v811, %v815
  %v834 = vunpack.c.l.b16 %v795
  %v835 = vunpack.c.l.b16 %v796
  %v836 = vunpack.c.l.b16 %v797
  %v837 = vunpack.c.l.b16 %v798
  %v838 = vunpack.c.l.b16 %v799
  %v839 = vunpack.c.l.b16 %v800
  %v840 = vunpack.c.l.b16 %v801
  %v841 = vunpack.c.l.b16 %v802
  %v842 = vunpack.c.l.b16 %v803
  %v843 = vunpack.c.l.b16 %v804
  %v844 = vunpack.c.l.b16 %v805
  %v845 = vunpack.c.l.b16 %v806
  %v846 = vunpack.c.l.b16 %v807
  %v847 = vunpack.c.l.b16 %v808
  %v848 = vunpack.c.l.b16 %v809
  %v849 = vunpack.c.l.b16 %v810
  %v850 = vpack.c.b16 %v835, %v834
  %v851 = vpack.c.b16 %v837, %v836
  %v852 = vpack.c.b16 %v839, %v838
  %v853 = vpack.c.b16 %v841, %v840
  %v854 = vpack.c.b16 %v843, %v842
  %v855 = vpack.c.b16 %v845, %v844
  %v856 = vpack.c.b16 %v847, %v846
  %v857 = vpack.c.b16 %v849, %v848
  %866 = vmatprep.subr.bf16.mxu0 0
  %867 = vmatpush1.bf16.msra.mxu0 %v850
  %868 = vmatprep.subr.bf16.mxu0 0
  %869 = vmatpush1.bf16.msra.mxu0 %v851
  %870 = vmatprep.subr.bf16.mxu0 0
  %871 = vmatpush1.bf16.msra.mxu0 %v852
  %872 = vmatprep.subr.bf16.mxu0 0
  %873 = vmatpush1.bf16.msra.mxu0 %v853
  %874 = vmatprep.subr.bf16.mxu0 0
  %875 = vmatpush1.bf16.msra.mxu0 %v854
  %876 = vmatprep.subr.bf16.mxu0 0
  %877 = vmatpush1.bf16.msra.mxu0 %v855
  %878 = vmatprep.subr.bf16.mxu0 0
  %879 = vmatpush1.bf16.msra.mxu0 %v856
  %880 = vmatprep.subr.bf16.mxu0 0
  %881 = vmatpush1.bf16.msra.mxu0 %v857
  %882 = vmatprep.subr.bf16.mxu0 0
  %883 = vmatpush1.bf16.msra.mxu0 0
  %884 = vmatprep.subr.bf16.mxu0 0
  %885 = vmatpush1.bf16.msra.mxu0 0
  %886 = vmatprep.subr.bf16.mxu0 0
  %887 = vmatpush1.bf16.msra.mxu0 0
  %888 = vmatprep.subr.bf16.mxu0 0
  %889 = vmatpush1.bf16.msra.mxu0 0
  %890 = vmatprep.subr.bf16.mxu0 0
  %891 = vmatpush1.bf16.msra.mxu0 0
  %892 = vmatprep.subr.bf16.mxu0 0
  %893 = vmatpush1.bf16.msra.mxu0 0
  %894 = vmatprep.subr.bf16.mxu0 0
  %895 = vmatpush1.bf16.msra.mxu0 0
  %896 = vmatprep.subr.bf16.mxu0 0
  %897 = vmatpush1.bf16.msra.mxu0 0
  %898 = vmatprep.mubr.bf16.mxu0 0
  %899 = vmatmul.mubr.bf16.gmra.mrb[0].mxu0 %v791
  %v900 = vpop.f32.mrb[0].mxu0
  %v901 = vadd.f32 %v816, %v900
  %v902 = vpop.f32.mrb[0].mxu0
  %v903 = vpop.f32.mrb[0].mxu0
  %v904 = vadd.f32 %v816, %v903
  %v905 = vpop.f32.mrb[0].mxu0
  %906 = vmatprep.mubr.bf16.mxu0 0
  %907 = vmatmul.mubr.bf16.gmra.mrb[0].mxu0 %v792
  %v908 = vpop.f32.mrb[0].mxu0
  %v909 = vadd.f32 %v816, %v908
  %v910 = vpop.f32.mrb[0].mxu0
  %v911 = vpop.f32.mrb[0].mxu0
  %v912 = vadd.f32 %v816, %v911
  %v913 = vpop.f32.mrb[0].mxu0
  %914 = vmatprep.mubr.bf16.mxu0 0
  %915 = vmatmul.mubr.bf16.gmra.mrb[0].mxu0 %v793
  %v916 = vpop.f32.mrb[0].mxu0
  %v917 = vadd.f32 %v816, %v916
  %v918 = vpop.f32.mrb[0].mxu0
  %v919 = vpop.f32.mrb[0].mxu0
  %v920 = vadd.f32 %v816, %v919
  %v921 = vpop.f32.mrb[0].mxu0
  %922 = vmatprep.mubr.bf16.mxu0 0
  %923 = vmatmul.mubr.bf16.gmra.mrb[0].mxu0 %v794
  %v924 = vpop.f32.mrb[0].mxu0
  %v925 = vadd.f32 %v816, %v924
  %v926 = vpop.f32.mrb[0].mxu0
  %v927 = vpop.f32.mrb[0].mxu0
  %v928 = vadd.f32 %v816, %v927
  %v929 = vpop.f32.mrb[0].mxu0
  %930 = vdwg.mxu0
  %v931 = vpack.c.bf16 %v764, %v761
  %v932 = vpack.c.bf16 %v772, %v769
  %v933 = vpack.c.bf16 %v780, %v777
  %v934 = vpack.c.bf16 %v788, %v785
  %v935 = vld [vmem:[%s12] sm:$0xff]
  %v936 = vld [vmem:[%s12 + $0x8] sm:$0xff]
  %v937 = vld [vmem:[%s12 + $0x10] sm:$0xff]
  %v938 = vld [vmem:[%s12 + $0x18] sm:$0xff]
  %v939 = vld [vmem:[%s12 + $0x20] sm:$0xff]
  %v940 = vld [vmem:[%s12 + $0x28] sm:$0xff]
  %v941 = vld [vmem:[%s12 + $0x30] sm:$0xff]
  %v942 = vld [vmem:[%s12 + $0x38] sm:$0xff]
  %v943 = vld [vmem:[%s12 + $0x40] sm:$0xff]
  %v944 = vld [vmem:[%s12 + $0x48] sm:$0xff]
  %v945 = vld [vmem:[%s12 + $0x50] sm:$0xff]
  %v946 = vld [vmem:[%s12 + $0x58] sm:$0xff]
  %v947 = vld [vmem:[%s12 + $0x60] sm:$0xff]
  %v948 = vld [vmem:[%s12 + $0x68] sm:$0xff]
  %v949 = vld [vmem:[%s12 + $0x70] sm:$0xff]
  %v950 = vld [vmem:[%s12 + $0x78] sm:$0xff]
  %v951 = vld [vmem:[%s13] sm:$0x3]
  %v953 = vlaneseq
  %v954 = vshrl.u32 %v953, 7
  %v955 = vsub.s32 0, %v954
  %v956 = vrot.slane %v951, %v955
  %v957 = vlaneseq
  %v958 = vshrl.u32 %v957, 7
  %v959 = vsub.s32 1, %v958
  %v960 = vrot.slane %v951, %v959
  %v979 = vunpack.c.l.b16 %v935
  %v980 = vunpack.c.h.b16 %v935
  %v981 = vunpack.c.l.b16 %v936
  %v982 = vunpack.c.h.b16 %v936
  %v983 = vunpack.c.l.b16 %v937
  %v984 = vunpack.c.h.b16 %v937
  %v985 = vunpack.c.l.b16 %v938
  %v986 = vunpack.c.h.b16 %v938
  %v987 = vunpack.c.l.b16 %v939
  %v988 = vunpack.c.h.b16 %v939
  %v989 = vunpack.c.l.b16 %v940
  %v990 = vunpack.c.h.b16 %v940
  %v991 = vunpack.c.l.b16 %v941
  %v992 = vunpack.c.h.b16 %v941
  %v993 = vunpack.c.l.b16 %v942
  %v994 = vunpack.c.h.b16 %v942
  %v995 = vunpack.c.l.b16 %v943
  %v996 = vunpack.c.h.b16 %v943
  %v997 = vunpack.c.l.b16 %v944
  %v998 = vunpack.c.h.b16 %v944
  %v999 = vunpack.c.l.b16 %v945
  %v1000 = vunpack.c.h.b16 %v945
  %v1001 = vunpack.c.l.b16 %v946
  %v1002 = vunpack.c.h.b16 %v946
  %v1003 = vunpack.c.l.b16 %v947
  %v1004 = vunpack.c.h.b16 %v947
  %v1005 = vunpack.c.l.b16 %v948
  %v1006 = vunpack.c.h.b16 %v948
  %v1007 = vunpack.c.l.b16 %v949
  %v1008 = vunpack.c.h.b16 %v949
  %v1009 = vunpack.c.l.b16 %v950
  %v1010 = vunpack.c.h.b16 %v950
  %v1011 = vpack.c.b16 %v981, %v979
  %v1012 = vpack.c.b16 %v982, %v980
  %v1013 = vpack.c.b16 %v985, %v983
  %v1014 = vpack.c.b16 %v986, %v984
  %v1015 = vpack.c.b16 %v989, %v987
  %v1016 = vpack.c.b16 %v990, %v988
  %v1017 = vpack.c.b16 %v993, %v991
  %v1018 = vpack.c.b16 %v994, %v992
  %v1019 = vpack.c.b16 %v997, %v995
  %v1020 = vpack.c.b16 %v998, %v996
  %v1021 = vpack.c.b16 %v1001, %v999
  %v1022 = vpack.c.b16 %v1002, %v1000
  %v1023 = vpack.c.b16 %v1005, %v1003
  %v1024 = vpack.c.b16 %v1006, %v1004
  %v1025 = vpack.c.b16 %v1009, %v1007
  %v1026 = vpack.c.b16 %v1010, %v1008
  %1043 = vmatprep.subr.bf16.mxu0 %v1012
  %1044 = vmatpush1.bf16.msra.mxu0 %v1011
  %1045 = vmatprep.subr.bf16.mxu0 %v1014
  %1046 = vmatpush1.bf16.msra.mxu0 %v1013
  %1047 = vmatprep.subr.bf16.mxu0 %v1016
  %1048 = vmatpush1.bf16.msra.mxu0 %v1015
  %1049 = vmatprep.subr.bf16.mxu0 %v1018
  %1050 = vmatpush1.bf16.msra.mxu0 %v1017
  %1051 = vmatprep.subr.bf16.mxu0 %v1020
  %1052 = vmatpush1.bf16.msra.mxu0 %v1019
  %1053 = vmatprep.subr.bf16.mxu0 %v1022
  %1054 = vmatpush1.bf16.msra.mxu0 %v1021
  %1055 = vmatprep.subr.bf16.mxu0 %v1024
  %1056 = vmatpush1.bf16.msra.mxu0 %v1023
  %1057 = vmatprep.subr.bf16.mxu0 %v1026
  %1058 = vmatpush1.bf16.msra.mxu0 %v1025
  %1059 = vmatprep.subr.bf16.mxu0 0
  %1060 = vmatpush1.bf16.msra.mxu0 0
  %1061 = vmatprep.subr.bf16.mxu0 0
  %1062 = vmatpush1.bf16.msra.mxu0 0
  %1063 = vmatprep.subr.bf16.mxu0 0
  %1064 = vmatpush1.bf16.msra.mxu0 0
  %1065 = vmatprep.subr.bf16.mxu0 0
  %1066 = vmatpush1.bf16.msra.mxu0 0
  %1067 = vmatprep.subr.bf16.mxu0 0
  %1068 = vmatpush1.bf16.msra.mxu0 0
  %1069 = vmatprep.subr.bf16.mxu0 0
  %1070 = vmatpush1.bf16.msra.mxu0 0
  %1071 = vmatprep.subr.bf16.mxu0 0
  %1072 = vmatpush1.bf16.msra.mxu0 0
  %1073 = vmatprep.subr.bf16.mxu0 0
  %1074 = vmatpush1.bf16.msra.mxu0 0
  %1075 = vmatprep.mubr.bf16.mxu0 0
  %1076 = vmatmul.mubr.bf16.gmra.mrb[0].mxu0 %v931
  %v1077 = vpop.f32.mrb[0].mxu0
  %v1078 = vadd.f32 %v956, %v1077
  %v1079 = vpop.f32.mrb[0].mxu0
  %v1080 = vadd.f32 %v960, %v1079
  %v1081 = vpop.f32.mrb[0].mxu0
  %v1082 = vadd.f32 %v956, %v1081
  %v1083 = vpop.f32.mrb[0].mxu0
  %v1084 = vadd.f32 %v960, %v1083
  %1085 = vmatprep.mubr.bf16.mxu0 0
  %1086 = vmatmul.mubr.bf16.gmra.mrb[0].mxu0 %v932
  %v1087 = vpop.f32.mrb[0].mxu0
  %v1088 = vadd.f32 %v956, %v1087
  %v1089 = vpop.f32.mrb[0].mxu0
  %v1090 = vadd.f32 %v960, %v1089
  %v1091 = vpop.f32.mrb[0].mxu0
  %v1092 = vadd.f32 %v956, %v1091
  %v1093 = vpop.f32.mrb[0].mxu0
  %v1094 = vadd.f32 %v960, %v1093
  %1095 = vmatprep.mubr.bf16.mxu0 0
  %1096 = vmatmul.mubr.bf16.gmra.mrb[0].mxu0 %v933
  %v1097 = vpop.f32.mrb[0].mxu0
  %v1098 = vadd.f32 %v956, %v1097
  %v1099 = vpop.f32.mrb[0].mxu0
  %v1100 = vadd.f32 %v960, %v1099
  %v1101 = vpop.f32.mrb[0].mxu0
  %v1102 = vadd.f32 %v956, %v1101
  %v1103 = vpop.f32.mrb[0].mxu0
  %v1104 = vadd.f32 %v960, %v1103
  %1105 = vmatprep.mubr.bf16.mxu0 0
  %1106 = vmatmul.mubr.bf16.gmra.mrb[0].mxu0 %v934
  %v1107 = vpop.f32.mrb[0].mxu0
  %v1108 = vadd.f32 %v956, %v1107
  %v1109 = vpop.f32.mrb[0].mxu0
  %v1110 = vadd.f32 %v960, %v1109
  %v1111 = vpop.f32.mrb[0].mxu0
  %v1112 = vadd.f32 %v956, %v1111
  %v1113 = vpop.f32.mrb[0].mxu0
  %v1114 = vadd.f32 %v960, %v1113
  %1115 = vdwg.mxu0
  %vm1116 = vcmp.ge.s32.totalorder %v91, 0
  %vm1117 = vcmp.lt.s32.totalorder %v91, 16
  %vm1118 = vmand %vm1116, %vm1117
  %v1119 = vsel %vm1118, 1, 0
  %v1120 = vcvt.s32.f32 %v1119
  %vm1121 = vcmp.ge.s32.totalorder %v91, 16
  %vm1122 = vmand %vm1121, %vm92
  %v1123 = vsel %vm1122, 1, 0
  %v1124 = vcvt.s32.f32 %v1123
  %v1125 = vpack.c.bf16 %v1078, %v1078
  %v1126 = vmul.f32 %v901, %v1120
  %v1127 = vpack.c.bf16 %v1126, %v1126
  %1128 = vmatprep.subr.bf16.mxu0 0
  %1129 = vmatpush1.bf16.xpose.msra.mxu0 %v1125
  %1130 = vmatprep.subr.bf16.mxu0 0
  %1131 = vmatpush1.bf16.xpose.msra.mxu0 0
  %1132 = vmatprep.subr.bf16.mxu0 0
  %1133 = vmatpush1.bf16.xpose.msra.mxu0 0
  %1134 = vmatprep.subr.bf16.mxu0 0
  %1135 = vmatpush1.bf16.xpose.msra.mxu0 0
  %1136 = vmatprep.subr.bf16.mxu0 0
  %1137 = vmatpush1.bf16.xpose.msra.mxu0 0
  %1138 = vmatprep.subr.bf16.mxu0 0
  %1139 = vmatpush1.bf16.xpose.msra.mxu0 0
  %1140 = vmatprep.subr.bf16.mxu0 0
  %1141 = vmatpush1.bf16.xpose.msra.mxu0 0
  %1142 = vmatprep.subr.bf16.mxu0 0
  %1143 = vmatpush1.bf16.xpose.msra.mxu0 0
  %1144 = vmatprep.subr.bf16.mxu0 0
  %1145 = vmatpush1.bf16.xpose.msra.mxu0 0
  %1146 = vmatprep.subr.bf16.mxu0 0
  %1147 = vmatpush1.bf16.xpose.msra.mxu0 0
  %1148 = vmatprep.subr.bf16.mxu0 0
  %1149 = vmatpush1.bf16.xpose.msra.mxu0 0
  %1150 = vmatprep.subr.bf16.mxu0 0
  %1151 = vmatpush1.bf16.xpose.msra.mxu0 0
  %1152 = vmatprep.subr.bf16.mxu0 0
  %1153 = vmatpush1.bf16.xpose.msra.mxu0 0
  %1154 = vmatprep.subr.bf16.mxu0 0
  %1155 = vmatpush1.bf16.xpose.msra.mxu0 0
  %1156 = vmatprep.subr.bf16.mxu0 0
  %1157 = vmatpush1.bf16.xpose.msra.mxu0 0
  %1158 = vmatprep.subr.bf16.mxu0 0
  %1159 = vmatpush1.bf16.xpose.msra.mxu0 0
  %1160 = vmatprep.mubr.bf16.mxu0 0
  %1161 = vmatmul.mubr.bf16.gmra.mrb[0].mxu0 %v1127
  %v1162 = vpop.f32.mrb[0].mxu0
  %v1163 = vadd.f32 0.0, %v1162
  %v1164 = vpop.f32.mrb[0].mxu0
  %v1165 = vpop.f32.mrb[0].mxu0
  %v1166 = vpop.f32.mrb[0].mxu0
  %1167 = vdwg.mxu0
  %vm1168 = vcmask 64512
  %v1169 = vsel %vm1168, %v1163, -inf
  %1170 = vmax.xlane.f32.xlu0 %v1169
  %v1171 = vpop.xlane.xlu0 %1170
  %v1172 = vsub.f32 %v1163, %v1171
  %v1173 = vmul.f32 %v1172, 1.442695
  %v1174 = vpow.pop %v1173
  %v1175 = vsel %vm1168, %v1174, 0.0
  %1176 = vadd.xlane.f32.xlu0 %v1175
  %v1177 = vpop.xlane.xlu0 %1176
  %v1178 = vrcp.pop %v1177
  %v1179 = vmul.f32 %v1174, %v1178
  %v1180 = vmul.f32 %v1080, %v1120
  %v1181 = vpack.c.bf16 %v1180, %v1180
  %v1182 = vpack.c.bf16 %v1179, %v1179
  %v1183 = vmul.f32 %v901, %v1124
  %v1184 = vpack.c.bf16 %v1183, %v1183
  %1185 = vmatprep.subr.bf16.mxu0 0
  %1186 = vmatpush1.bf16.xpose.msra.mxu0 %v1125
  %1187 = vmatprep.subr.bf16.mxu0 0
  %1188 = vmatpush1.bf16.xpose.msra.mxu0 0
  %1189 = vmatprep.subr.bf16.mxu0 0
  %1190 = vmatpush1.bf16.xpose.msra.mxu0 0
  %1191 = vmatprep.subr.bf16.mxu0 0
  %1192 = vmatpush1.bf16.xpose.msra.mxu0 0
  %1193 = vmatprep.subr.bf16.mxu0 0
  %1194 = vmatpush1.bf16.xpose.msra.mxu0 0
  %1195 = vmatprep.subr.bf16.mxu0 0
  %1196 = vmatpush1.bf16.xpose.msra.mxu0 0
  %1197 = vmatprep.subr.bf16.mxu0 0
  %1198 = vmatpush1.bf16.xpose.msra.mxu0 0
  %1199 = vmatprep.subr.bf16.mxu0 0
  %1200 = vmatpush1.bf16.xpose.msra.mxu0 0
  %1201 = vmatprep.subr.bf16.mxu0 0
  %1202 = vmatpush1.bf16.xpose.msra.mxu0 0
  %1203 = vmatprep.subr.bf16.mxu0 0
  %1204 = vmatpush1.bf16.xpose.msra.mxu0 0
  %1205 = vmatprep.subr.bf16.mxu0 0
  %1206 = vmatpush1.bf16.xpose.msra.mxu0 0
  %1207 = vmatprep.subr.bf16.mxu0 0
  %1208 = vmatpush1.bf16.xpose.msra.mxu0 0
  %1209 = vmatprep.subr.bf16.mxu0 0
  %1210 = vmatpush1.bf16.xpose.msra.mxu0 0
  %1211 = vmatprep.subr.bf16.mxu0 0
  %1212 = vmatpush1.bf16.xpose.msra.mxu0 0
  %1213 = vmatprep.subr.bf16.mxu0 0
  %1214 = vmatpush1.bf16.xpose.msra.mxu0 0
  %1215 = vmatprep.subr.bf16.mxu0 0
  %1216 = vmatpush1.bf16.xpose.msra.mxu0 0
  %1217 = vmatprep.mubr.bf16.mxu0 0
  %1218 = vmatmul.mubr.bf16.gmra.mrb[0].mxu0 %v1184
  %v1219 = vpop.f32.mrb[0].mxu0
  %v1220 = vadd.f32 0.0, %v1219
  %v1221 = vpop.f32.mrb[0].mxu0
  %v1222 = vpop.f32.mrb[0].mxu0
  %v1223 = vpop.f32.mrb[0].mxu0
  %1224 = vdwg.mxu0
  %v1225 = vsel %vm1168, %v1220, -inf
  %1226 = vmax.xlane.f32.xlu0 %v1225
  %v1227 = vpop.xlane.xlu0 %1226
  %v1228 = vsub.f32 %v1220, %v1227
  %v1229 = vmul.f32 %v1228, 1.442695
  %v1230 = vpow.pop %v1229
  %v1231 = vsel %vm1168, %v1230, 0.0
  %1232 = vadd.xlane.f32.xlu0 %v1231
  %v1233 = vpop.xlane.xlu0 %1232
  %v1234 = vrcp.pop %v1233
  %v1235 = vmul.f32 %v1230, %v1234
  %v1236 = vmul.f32 %v1080, %v1124
  %v1237 = vpack.c.bf16 %v1236, %v1236
  %v1238 = vpack.c.bf16 %v1235, %v1235
  %v1240 = vsel %vm1168, %v1238, 0
  %vm1242 = vcmask 1043456
  %v1244 = vsel %vm1242, %v1237, 0
  %1246 = vmatprep.subr.bf16.mxu0 0
  %1247 = vmatpush1.bf16.msra.mxu0 %v1244
  %1248 = vmatprep.subr.bf16.mxu0 0
  %1249 = vmatpush1.bf16.msra.mxu0 0
  %1250 = vmatprep.subr.bf16.mxu0 0
  %1251 = vmatpush1.bf16.msra.mxu0 0
  %1252 = vmatprep.subr.bf16.mxu0 0
  %1253 = vmatpush1.bf16.msra.mxu0 0
  %1254 = vmatprep.subr.bf16.mxu0 0
  %1255 = vmatpush1.bf16.msra.mxu0 0
  %1256 = vmatprep.subr.bf16.mxu0 0
  %1257 = vmatpush1.bf16.msra.mxu0 0
  %1258 = vmatprep.subr.bf16.mxu0 0
  %1259 = vmatpush1.bf16.msra.mxu0 0
  %1260 = vmatprep.subr.bf16.mxu0 0
  %1261 = vmatpush1.bf16.msra.mxu0 0
  %1262 = vmatprep.subr.bf16.mxu0 0
  %1263 = vmatpush1.bf16.msra.mxu0 0
  %1264 = vmatprep.subr.bf16.mxu0 0
  %1265 = vmatpush1.bf16.msra.mxu0 0
  %1266 = vmatprep.subr.bf16.mxu0 0
  %1267 = vmatpush1.bf16.msra.mxu0 0
  %1268 = vmatprep.subr.bf16.mxu0 0
  %1269 = vmatpush1.bf16.msra.mxu0 0
  %1270 = vmatprep.subr.bf16.mxu0 0
  %1271 = vmatpush1.bf16.msra.mxu0 0
  %1272 = vmatprep.subr.bf16.mxu0 0
  %1273 = vmatpush1.bf16.msra.mxu0 0
  %1274 = vmatprep.subr.bf16.mxu0 0
  %1275 = vmatpush1.bf16.msra.mxu0 0
  %1276 = vmatprep.subr.bf16.mxu0 0
  %1277 = vmatpush1.bf16.msra.mxu0 0
  %1278 = vmatprep.mubr.bf16.mxu0 0
  %1279 = vmatmul.mubr.bf16.gmra.mrb[0].mxu0 %v1240
  %v1280 = vpop.f32.mrb[0].mxu0
  %v1281 = vadd.f32 0.0, %v1280
  %v1282 = vpop.f32.mrb[0].mxu0
  %v1283 = vpop.f32.mrb[0].mxu0
  %v1284 = vpop.f32.mrb[0].mxu0
  %1285 = vdwg.mxu0
  %v1287 = vsel %vm1168, %v1182, 0
  %v1290 = vsel %vm1242, %v1181, 0
  %1292 = vmatprep.subr.bf16.mxu0 0
  %1293 = vmatpush1.bf16.msra.mxu0 %v1290
  %1294 = vmatprep.subr.bf16.mxu0 0
  %1295 = vmatpush1.bf16.msra.mxu0 0
  %1296 = vmatprep.subr.bf16.mxu0 0
  %1297 = vmatpush1.bf16.msra.mxu0 0
  %1298 = vmatprep.subr.bf16.mxu0 0
  %1299 = vmatpush1.bf16.msra.mxu0 0
  %1300 = vmatprep.subr.bf16.mxu0 0
  %1301 = vmatpush1.bf16.msra.mxu0 0
  %1302 = vmatprep.subr.bf16.mxu0 0
  %1303 = vmatpush1.bf16.msra.mxu0 0
  %1304 = vmatprep.subr.bf16.mxu0 0
  %1305 = vmatpush1.bf16.msra.mxu0 0
  %1306 = vmatprep.subr.bf16.mxu0 0
  %1307 = vmatpush1.bf16.msra.mxu0 0
  %1308 = vmatprep.subr.bf16.mxu0 0
  %1309 = vmatpush1.bf16.msra.mxu0 0
  %1310 = vmatprep.subr.bf16.mxu0 0
  %1311 = vmatpush1.bf16.msra.mxu0 0
  %1312 = vmatprep.subr.bf16.mxu0 0
  %1313 = vmatpush1.bf16.msra.mxu0 0
  %1314 = vmatprep.subr.bf16.mxu0 0
  %1315 = vmatpush1.bf16.msra.mxu0 0
  %1316 = vmatprep.subr.bf16.mxu0 0
  %1317 = vmatpush1.bf16.msra.mxu0 0
  %1318 = vmatprep.subr.bf16.mxu0 0
  %1319 = vmatpush1.bf16.msra.mxu0 0
  %1320 = vmatprep.subr.bf16.mxu0 0
  %1321 = vmatpush1.bf16.msra.mxu0 0
  %1322 = vmatprep.subr.bf16.mxu0 0
  %1323 = vmatpush1.bf16.msra.mxu0 0
  %1324 = vmatprep.mubr.bf16.mxu0 0
  %1325 = vmatmul.mubr.bf16.gmra.mrb[0].mxu0 %v1287
  %v1326 = vpop.f32.mrb[0].mxu0
  %v1327 = vadd.f32 %v1281, %v1326
  %v1328 = vpop.f32.mrb[0].mxu0
  %v1329 = vpop.f32.mrb[0].mxu0
  %v1330 = vpop.f32.mrb[0].mxu0
  %1331 = vdwg.mxu0
  %v1332 = vpack.c.bf16 %v1082, %v1082
  %v1333 = vmul.f32 %v904, %v1120
  %v1334 = vpack.c.bf16 %v1333, %v1333
  %1335 = vmatprep.subr.bf16.mxu0 0
  %1336 = vmatpush1.bf16.xpose.msra.mxu0 %v1332
  %1337 = vmatprep.subr.bf16.mxu0 0
  %1338 = vmatpush1.bf16.xpose.msra.mxu0 0
  %1339 = vmatprep.subr.bf16.mxu0 0
  %1340 = vmatpush1.bf16.xpose.msra.mxu0 0
  %1341 = vmatprep.subr.bf16.mxu0 0
  %1342 = vmatpush1.bf16.xpose.msra.mxu0 0
  %1343 = vmatprep.subr.bf16.mxu0 0
  %1344 = vmatpush1.bf16.xpose.msra.mxu0 0
  %1345 = vmatprep.subr.bf16.mxu0 0
  %1346 = vmatpush1.bf16.xpose.msra.mxu0 0
  %1347 = vmatprep.subr.bf16.mxu0 0
  %1348 = vmatpush1.bf16.xpose.msra.mxu0 0
  %1349 = vmatprep.subr.bf16.mxu0 0
  %1350 = vmatpush1.bf16.xpose.msra.mxu0 0
  %1351 = vmatprep.subr.bf16.mxu0 0
  %1352 = vmatpush1.bf16.xpose.msra.mxu0 0
  %1353 = vmatprep.subr.bf16.mxu0 0
  %1354 = vmatpush1.bf16.xpose.msra.mxu0 0
  %1355 = vmatprep.subr.bf16.mxu0 0
  %1356 = vmatpush1.bf16.xpose.msra.mxu0 0
  %1357 = vmatprep.subr.bf16.mxu0 0
  %1358 = vmatpush1.bf16.xpose.msra.mxu0 0
  %1359 = vmatprep.subr.bf16.mxu0 0
  %1360 = vmatpush1.bf16.xpose.msra.mxu0 0
  %1361 = vmatprep.subr.bf16.mxu0 0
  %1362 = vmatpush1.bf16.xpose.msra.mxu0 0
  %1363 = vmatprep.subr.bf16.mxu0 0
  %1364 = vmatpush1.bf16.xpose.msra.mxu0 0
  %1365 = vmatprep.subr.bf16.mxu0 0
  %1366 = vmatpush1.bf16.xpose.msra.mxu0 0
  %1367 = vmatprep.mubr.bf16.mxu0 0
  %1368 = vmatmul.mubr.bf16.gmra.mrb[0].mxu0 %v1334
  %v1369 = vpop.f32.mrb[0].mxu0
  %v1370 = vadd.f32 0.0, %v1369
  %v1371 = vpop.f32.mrb[0].mxu0
  %v1372 = vpop.f32.mrb[0].mxu0
  %v1373 = vpop.f32.mrb[0].mxu0
  %1374 = vdwg.mxu0
  %v1375 = vsel %vm1168, %v1370, -inf
  %1376 = vmax.xlane.f32.xlu0 %v1375
  %v1377 = vpop.xlane.xlu0 %1376
  %v1378 = vsub.f32 %v1370, %v1377
  %v1379 = vmul.f32 %v1378, 1.442695
  %v1380 = vpow.pop %v1379
  %v1381 = vsel %vm1168, %v1380, 0.0
  %1382 = vadd.xlane.f32.xlu0 %v1381
  %v1383 = vpop.xlane.xlu0 %1382
  %v1384 = vrcp.pop %v1383
  %v1385 = vmul.f32 %v1380, %v1384
  %v1386 = vmul.f32 %v1084, %v1120
  %v1387 = vpack.c.bf16 %v1386, %v1386
  %v1388 = vpack.c.bf16 %v1385, %v1385
  %v1389 = vmul.f32 %v904, %v1124
  %v1390 = vpack.c.bf16 %v1389, %v1389
  %1391 = vmatprep.subr.bf16.mxu0 0
  %1392 = vmatpush1.bf16.xpose.msra.mxu0 %v1332
  %1393 = vmatprep.subr.bf16.mxu0 0
  %1394 = vmatpush1.bf16.xpose.msra.mxu0 0
  %1395 = vmatprep.subr.bf16.mxu0 0
  %1396 = vmatpush1.bf16.xpose.msra.mxu0 0
  %1397 = vmatprep.subr.bf16.mxu0 0
  %1398 = vmatpush1.bf16.xpose.msra.mxu0 0
  %1399 = vmatprep.subr.bf16.mxu0 0
  %1400 = vmatpush1.bf16.xpose.msra.mxu0 0
  %1401 = vmatprep.subr.bf16.mxu0 0
  %1402 = vmatpush1.bf16.xpose.msra.mxu0 0
  %1403 = vmatprep.subr.bf16.mxu0 0
  %1404 = vmatpush1.bf16.xpose.msra.mxu0 0
  %1405 = vmatprep.subr.bf16.mxu0 0
  %1406 = vmatpush1.bf16.xpose.msra.mxu0 0
  %1407 = vmatprep.subr.bf16.mxu0 0
  %1408 = vmatpush1.bf16.xpose.msra.mxu0 0
  %1409 = vmatprep.subr.bf16.mxu0 0
  %1410 = vmatpush1.bf16.xpose.msra.mxu0 0
  %1411 = vmatprep.subr.bf16.mxu0 0
  %1412 = vmatpush1.bf16.xpose.msra.mxu0 0
  %1413 = vmatprep.subr.bf16.mxu0 0
  %1414 = vmatpush1.bf16.xpose.msra.mxu0 0
  %1415 = vmatprep.subr.bf16.mxu0 0
  %1416 = vmatpush1.bf16.xpose.msra.mxu0 0
  %1417 = vmatprep.subr.bf16.mxu0 0
  %1418 = vmatpush1.bf16.xpose.msra.mxu0 0
  %1419 = vmatprep.subr.bf16.mxu0 0
  %1420 = vmatpush1.bf16.xpose.msra.mxu0 0
  %1421 = vmatprep.subr.bf16.mxu0 0
  %1422 = vmatpush1.bf16.xpose.msra.mxu0 0
  %1423 = vmatprep.mubr.bf16.mxu0 0
  %1424 = vmatmul.mubr.bf16.gmra.mrb[0].mxu0 %v1390
  %v1425 = vpop.f32.mrb[0].mxu0
  %v1426 = vadd.f32 0.0, %v1425
  %v1427 = vpop.f32.mrb[0].mxu0
  %v1428 = vpop.f32.mrb[0].mxu0
  %v1429 = vpop.f32.mrb[0].mxu0
  %1430 = vdwg.mxu0
  %v1431 = vsel %vm1168, %v1426, -inf
  %1432 = vmax.xlane.f32.xlu0 %v1431
  %v1433 = vpop.xlane.xlu0 %1432
  %v1434 = vsub.f32 %v1426, %v1433
  %v1435 = vmul.f32 %v1434, 1.442695
  %v1436 = vpow.pop %v1435
  %v1437 = vsel %vm1168, %v1436, 0.0
  %1438 = vadd.xlane.f32.xlu0 %v1437
  %v1439 = vpop.xlane.xlu0 %1438
  %v1440 = vrcp.pop %v1439
  %v1441 = vmul.f32 %v1436, %v1440
  %v1442 = vmul.f32 %v1084, %v1124
  %v1443 = vpack.c.bf16 %v1442, %v1442
  %v1444 = vpack.c.bf16 %v1441, %v1441
  %v1446 = vsel %vm1168, %v1444, 0
  %v1449 = vsel %vm1242, %v1443, 0
  %1451 = vmatprep.subr.bf16.mxu0 0
  %1452 = vmatpush1.bf16.msra.mxu0 %v1449
  %1453 = vmatprep.subr.bf16.mxu0 0
  %1454 = vmatpush1.bf16.msra.mxu0 0
  %1455 = vmatprep.subr.bf16.mxu0 0
  %1456 = vmatpush1.bf16.msra.mxu0 0
  %1457 = vmatprep.subr.bf16.mxu0 0
  %1458 = vmatpush1.bf16.msra.mxu0 0
  %1459 = vmatprep.subr.bf16.mxu0 0
  %1460 = vmatpush1.bf16.msra.mxu0 0
  %1461 = vmatprep.subr.bf16.mxu0 0
  %1462 = vmatpush1.bf16.msra.mxu0 0
  %1463 = vmatprep.subr.bf16.mxu0 0
  %1464 = vmatpush1.bf16.msra.mxu0 0
  %1465 = vmatprep.subr.bf16.mxu0 0
  %1466 = vmatpush1.bf16.msra.mxu0 0
  %1467 = vmatprep.subr.bf16.mxu0 0
  %1468 = vmatpush1.bf16.msra.mxu0 0
  %1469 = vmatprep.subr.bf16.mxu0 0
  %1470 = vmatpush1.bf16.msra.mxu0 0
  %1471 = vmatprep.subr.bf16.mxu0 0
  %1472 = vmatpush1.bf16.msra.mxu0 0
  %1473 = vmatprep.subr.bf16.mxu0 0
  %1474 = vmatpush1.bf16.msra.mxu0 0
  %1475 = vmatprep.subr.bf16.mxu0 0
  %1476 = vmatpush1.bf16.msra.mxu0 0
  %1477 = vmatprep.subr.bf16.mxu0 0
  %1478 = vmatpush1.bf16.msra.mxu0 0
  %1479 = vmatprep.subr.bf16.mxu0 0
  %1480 = vmatpush1.bf16.msra.mxu0 0
  %1481 = vmatprep.subr.bf16.mxu0 0
  %1482 = vmatpush1.bf16.msra.mxu0 0
  %1483 = vmatprep.mubr.bf16.mxu0 0
  %1484 = vmatmul.mubr.bf16.gmra.mrb[0].mxu0 %v1446
  %v1485 = vpop.f32.mrb[0].mxu0
  %v1486 = vadd.f32 0.0, %v1485
  %v1487 = vpop.f32.mrb[0].mxu0
  %v1488 = vpop.f32.mrb[0].mxu0
  %v1489 = vpop.f32.mrb[0].mxu0
  %1490 = vdwg.mxu0
  %v1492 = vsel %vm1168, %v1388, 0
  %v1495 = vsel %vm1242, %v1387, 0
  %1497 = vmatprep.subr.bf16.mxu0 0
  %1498 = vmatpush1.bf16.msra.mxu0 %v1495
  %1499 = vmatprep.subr.bf16.mxu0 0
  %1500 = vmatpush1.bf16.msra.mxu0 0
  %1501 = vmatprep.subr.bf16.mxu0 0
  %1502 = vmatpush1.bf16.msra.mxu0 0
  %1503 = vmatprep.subr.bf16.mxu0 0
  %1504 = vmatpush1.bf16.msra.mxu0 0
  %1505 = vmatprep.subr.bf16.mxu0 0
  %1506 = vmatpush1.bf16.msra.mxu0 0
  %1507 = vmatprep.subr.bf16.mxu0 0
  %1508 = vmatpush1.bf16.msra.mxu0 0
  %1509 = vmatprep.subr.bf16.mxu0 0
  %1510 = vmatpush1.bf16.msra.mxu0 0
  %1511 = vmatprep.subr.bf16.mxu0 0
  %1512 = vmatpush1.bf16.msra.mxu0 0
  %1513 = vmatprep.subr.bf16.mxu0 0
  %1514 = vmatpush1.bf16.msra.mxu0 0
  %1515 = vmatprep.subr.bf16.mxu0 0
  %1516 = vmatpush1.bf16.msra.mxu0 0
  %1517 = vmatprep.subr.bf16.mxu0 0
  %1518 = vmatpush1.bf16.msra.mxu0 0
  %1519 = vmatprep.subr.bf16.mxu0 0
  %1520 = vmatpush1.bf16.msra.mxu0 0
  %1521 = vmatprep.subr.bf16.mxu0 0
  %1522 = vmatpush1.bf16.msra.mxu0 0
  %1523 = vmatprep.subr.bf16.mxu0 0
  %1524 = vmatpush1.bf16.msra.mxu0 0
  %1525 = vmatprep.subr.bf16.mxu0 0
  %1526 = vmatpush1.bf16.msra.mxu0 0
  %1527 = vmatprep.subr.bf16.mxu0 0
  %1528 = vmatpush1.bf16.msra.mxu0 0
  %1529 = vmatprep.mubr.bf16.mxu0 0
  %1530 = vmatmul.mubr.bf16.gmra.mrb[0].mxu0 %v1492
  %v1531 = vpop.f32.mrb[0].mxu0
  %v1532 = vadd.f32 %v1486, %v1531
  %v1533 = vpop.f32.mrb[0].mxu0
  %v1534 = vpop.f32.mrb[0].mxu0
  %v1535 = vpop.f32.mrb[0].mxu0
  %1536 = vdwg.mxu0
  %v1537 = vpack.c.bf16 %v1088, %v1088
  %v1538 = vmul.f32 %v909, %v1120
  %v1539 = vpack.c.bf16 %v1538, %v1538
  %1540 = vmatprep.subr.bf16.mxu0 0
  %1541 = vmatpush1.bf16.xpose.msra.mxu0 %v1537
  %1542 = vmatprep.subr.bf16.mxu0 0
  %1543 = vmatpush1.bf16.xpose.msra.mxu0 0
  %1544 = vmatprep.subr.bf16.mxu0 0
  %1545 = vmatpush1.bf16.xpose.msra.mxu0 0
  %1546 = vmatprep.subr.bf16.mxu0 0
  %1547 = vmatpush1.bf16.xpose.msra.mxu0 0
  %1548 = vmatprep.subr.bf16.mxu0 0
  %1549 = vmatpush1.bf16.xpose.msra.mxu0 0
  %1550 = vmatprep.subr.bf16.mxu0 0
  %1551 = vmatpush1.bf16.xpose.msra.mxu0 0
  %1552 = vmatprep.subr.bf16.mxu0 0
  %1553 = vmatpush1.bf16.xpose.msra.mxu0 0
  %1554 = vmatprep.subr.bf16.mxu0 0
  %1555 = vmatpush1.bf16.xpose.msra.mxu0 0
  %1556 = vmatprep.subr.bf16.mxu0 0
  %1557 = vmatpush1.bf16.xpose.msra.mxu0 0
  %1558 = vmatprep.subr.bf16.mxu0 0
  %1559 = vmatpush1.bf16.xpose.msra.mxu0 0
  %1560 = vmatprep.subr.bf16.mxu0 0
  %1561 = vmatpush1.bf16.xpose.msra.mxu0 0
  %1562 = vmatprep.subr.bf16.mxu0 0
  %1563 = vmatpush1.bf16.xpose.msra.mxu0 0
  %1564 = vmatprep.subr.bf16.mxu0 0
  %1565 = vmatpush1.bf16.xpose.msra.mxu0 0
  %1566 = vmatprep.subr.bf16.mxu0 0
  %1567 = vmatpush1.bf16.xpose.msra.mxu0 0
  %1568 = vmatprep.subr.bf16.mxu0 0
  %1569 = vmatpush1.bf16.xpose.msra.mxu0 0
  %1570 = vmatprep.subr.bf16.mxu0 0
  %1571 = vmatpush1.bf16.xpose.msra.mxu0 0
  %1572 = vmatprep.mubr.bf16.mxu0 0
  %1573 = vmatmul.mubr.bf16.gmra.mrb[0].mxu0 %v1539
  %v1574 = vpop.f32.mrb[0].mxu0
  %v1575 = vadd.f32 0.0, %v1574
  %v1576 = vpop.f32.mrb[0].mxu0
  %v1577 = vpop.f32.mrb[0].mxu0
  %v1578 = vpop.f32.mrb[0].mxu0
  %1579 = vdwg.mxu0
  %v1580 = vsel %vm1168, %v1575, -inf
  %1581 = vmax.xlane.f32.xlu0 %v1580
  %v1582 = vpop.xlane.xlu0 %1581
  %v1583 = vsub.f32 %v1575, %v1582
  %v1584 = vmul.f32 %v1583, 1.442695
  %v1585 = vpow.pop %v1584
  %v1586 = vsel %vm1168, %v1585, 0.0
  %1587 = vadd.xlane.f32.xlu0 %v1586
  %v1588 = vpop.xlane.xlu0 %1587
  %v1589 = vrcp.pop %v1588
  %v1590 = vmul.f32 %v1585, %v1589
  %v1591 = vmul.f32 %v1090, %v1120
  %v1592 = vpack.c.bf16 %v1591, %v1591
  %v1593 = vpack.c.bf16 %v1590, %v1590
  %v1594 = vmul.f32 %v909, %v1124
  %v1595 = vpack.c.bf16 %v1594, %v1594
  %1596 = vmatprep.subr.bf16.mxu0 0
  %1597 = vmatpush1.bf16.xpose.msra.mxu0 %v1537
  %1598 = vmatprep.subr.bf16.mxu0 0
  %1599 = vmatpush1.bf16.xpose.msra.mxu0 0
  %1600 = vmatprep.subr.bf16.mxu0 0
  %1601 = vmatpush1.bf16.xpose.msra.mxu0 0
  %1602 = vmatprep.subr.bf16.mxu0 0
  %1603 = vmatpush1.bf16.xpose.msra.mxu0 0
  %1604 = vmatprep.subr.bf16.mxu0 0
  %1605 = vmatpush1.bf16.xpose.msra.mxu0 0
  %1606 = vmatprep.subr.bf16.mxu0 0
  %1607 = vmatpush1.bf16.xpose.msra.mxu0 0
  %1608 = vmatprep.subr.bf16.mxu0 0
  %1609 = vmatpush1.bf16.xpose.msra.mxu0 0
  %1610 = vmatprep.subr.bf16.mxu0 0
  %1611 = vmatpush1.bf16.xpose.msra.mxu0 0
  %1612 = vmatprep.subr.bf16.mxu0 0
  %1613 = vmatpush1.bf16.xpose.msra.mxu0 0
  %1614 = vmatprep.subr.bf16.mxu0 0
  %1615 = vmatpush1.bf16.xpose.msra.mxu0 0
  %1616 = vmatprep.subr.bf16.mxu0 0
  %1617 = vmatpush1.bf16.xpose.msra.mxu0 0
  %1618 = vmatprep.subr.bf16.mxu0 0
  %1619 = vmatpush1.bf16.xpose.msra.mxu0 0
  %1620 = vmatprep.subr.bf16.mxu0 0
  %1621 = vmatpush1.bf16.xpose.msra.mxu0 0
  %1622 = vmatprep.subr.bf16.mxu0 0
  %1623 = vmatpush1.bf16.xpose.msra.mxu0 0
  %1624 = vmatprep.subr.bf16.mxu0 0
  %1625 = vmatpush1.bf16.xpose.msra.mxu0 0
  %1626 = vmatprep.subr.bf16.mxu0 0
  %1627 = vmatpush1.bf16.xpose.msra.mxu0 0
  %1628 = vmatprep.mubr.bf16.mxu0 0
  %1629 = vmatmul.mubr.bf16.gmra.mrb[0].mxu0 %v1595
  %v1630 = vpop.f32.mrb[0].mxu0
  %v1631 = vadd.f32 0.0, %v1630
  %v1632 = vpop.f32.mrb[0].mxu0
  %v1633 = vpop.f32.mrb[0].mxu0
  %v1634 = vpop.f32.mrb[0].mxu0
  %1635 = vdwg.mxu0
  %v1636 = vsel %vm1168, %v1631, -inf
  %1637 = vmax.xlane.f32.xlu0 %v1636
  %v1638 = vpop.xlane.xlu0 %1637
  %v1639 = vsub.f32 %v1631, %v1638
  %v1640 = vmul.f32 %v1639, 1.442695
  %v1641 = vpow.pop %v1640
  %v1642 = vsel %vm1168, %v1641, 0.0
  %1643 = vadd.xlane.f32.xlu0 %v1642
  %v1644 = vpop.xlane.xlu0 %1643
  %v1645 = vrcp.pop %v1644
  %v1646 = vmul.f32 %v1641, %v1645
  %v1647 = vmul.f32 %v1090, %v1124
  %v1648 = vpack.c.bf16 %v1647, %v1647
  %v1649 = vpack.c.bf16 %v1646, %v1646
  %v1651 = vsel %vm1168, %v1649, 0
  %v1654 = vsel %vm1242, %v1648, 0
  %1656 = vmatprep.subr.bf16.mxu0 0
  %1657 = vmatpush1.bf16.msra.mxu0 %v1654
  %1658 = vmatprep.subr.bf16.mxu0 0
  %1659 = vmatpush1.bf16.msra.mxu0 0
  %1660 = vmatprep.subr.bf16.mxu0 0
  %1661 = vmatpush1.bf16.msra.mxu0 0
  %1662 = vmatprep.subr.bf16.mxu0 0
  %1663 = vmatpush1.bf16.msra.mxu0 0
  %1664 = vmatprep.subr.bf16.mxu0 0
  %1665 = vmatpush1.bf16.msra.mxu0 0
  %1666 = vmatprep.subr.bf16.mxu0 0
  %1667 = vmatpush1.bf16.msra.mxu0 0
  %1668 = vmatprep.subr.bf16.mxu0 0
  %1669 = vmatpush1.bf16.msra.mxu0 0
  %1670 = vmatprep.subr.bf16.mxu0 0
  %1671 = vmatpush1.bf16.msra.mxu0 0
  %1672 = vmatprep.subr.bf16.mxu0 0
  %1673 = vmatpush1.bf16.msra.mxu0 0
  %1674 = vmatprep.subr.bf16.mxu0 0
  %1675 = vmatpush1.bf16.msra.mxu0 0
  %1676 = vmatprep.subr.bf16.mxu0 0
  %1677 = vmatpush1.bf16.msra.mxu0 0
  %1678 = vmatprep.subr.bf16.mxu0 0
  %1679 = vmatpush1.bf16.msra.mxu0 0
  %1680 = vmatprep.subr.bf16.mxu0 0
  %1681 = vmatpush1.bf16.msra.mxu0 0
  %1682 = vmatprep.subr.bf16.mxu0 0
  %1683 = vmatpush1.bf16.msra.mxu0 0
  %1684 = vmatprep.subr.bf16.mxu0 0
  %1685 = vmatpush1.bf16.msra.mxu0 0
  %1686 = vmatprep.subr.bf16.mxu0 0
  %1687 = vmatpush1.bf16.msra.mxu0 0
  %1688 = vmatprep.mubr.bf16.mxu0 0
  %1689 = vmatmul.mubr.bf16.gmra.mrb[0].mxu0 %v1651
  %v1690 = vpop.f32.mrb[0].mxu0
  %v1691 = vadd.f32 0.0, %v1690
  %v1692 = vpop.f32.mrb[0].mxu0
  %v1693 = vpop.f32.mrb[0].mxu0
  %v1694 = vpop.f32.mrb[0].mxu0
  %1695 = vdwg.mxu0
  %v1697 = vsel %vm1168, %v1593, 0
  %v1700 = vsel %vm1242, %v1592, 0
  %1702 = vmatprep.subr.bf16.mxu0 0
  %1703 = vmatpush1.bf16.msra.mxu0 %v1700
  %1704 = vmatprep.subr.bf16.mxu0 0
  %1705 = vmatpush1.bf16.msra.mxu0 0
  %1706 = vmatprep.subr.bf16.mxu0 0
  %1707 = vmatpush1.bf16.msra.mxu0 0
  %1708 = vmatprep.subr.bf16.mxu0 0
  %1709 = vmatpush1.bf16.msra.mxu0 0
  %1710 = vmatprep.subr.bf16.mxu0 0
  %1711 = vmatpush1.bf16.msra.mxu0 0
  %1712 = vmatprep.subr.bf16.mxu0 0
  %1713 = vmatpush1.bf16.msra.mxu0 0
  %1714 = vmatprep.subr.bf16.mxu0 0
  %1715 = vmatpush1.bf16.msra.mxu0 0
  %1716 = vmatprep.subr.bf16.mxu0 0
  %1717 = vmatpush1.bf16.msra.mxu0 0
  %1718 = vmatprep.subr.bf16.mxu0 0
  %1719 = vmatpush1.bf16.msra.mxu0 0
  %1720 = vmatprep.subr.bf16.mxu0 0
  %1721 = vmatpush1.bf16.msra.mxu0 0
  %1722 = vmatprep.subr.bf16.mxu0 0
  %1723 = vmatpush1.bf16.msra.mxu0 0
  %1724 = vmatprep.subr.bf16.mxu0 0
  %1725 = vmatpush1.bf16.msra.mxu0 0
  %1726 = vmatprep.subr.bf16.mxu0 0
  %1727 = vmatpush1.bf16.msra.mxu0 0
  %1728 = vmatprep.subr.bf16.mxu0 0
  %1729 = vmatpush1.bf16.msra.mxu0 0
  %1730 = vmatprep.subr.bf16.mxu0 0
  %1731 = vmatpush1.bf16.msra.mxu0 0
  %1732 = vmatprep.subr.bf16.mxu0 0
  %1733 = vmatpush1.bf16.msra.mxu0 0
  %1734 = vmatprep.mubr.bf16.mxu0 0
  %1735 = vmatmul.mubr.bf16.gmra.mrb[0].mxu0 %v1697
  %v1736 = vpop.f32.mrb[0].mxu0
  %v1737 = vadd.f32 %v1691, %v1736
  %v1738 = vpop.f32.mrb[0].mxu0
  %v1739 = vpop.f32.mrb[0].mxu0
  %v1740 = vpop.f32.mrb[0].mxu0
  %1741 = vdwg.mxu0
  %v1742 = vpack.c.bf16 %v1092, %v1092
  %v1743 = vmul.f32 %v912, %v1120
  %v1744 = vpack.c.bf16 %v1743, %v1743
  %1745 = vmatprep.subr.bf16.mxu0 0
  %1746 = vmatpush1.bf16.xpose.msra.mxu0 %v1742
  %1747 = vmatprep.subr.bf16.mxu0 0
  %1748 = vmatpush1.bf16.xpose.msra.mxu0 0
  %1749 = vmatprep.subr.bf16.mxu0 0
  %1750 = vmatpush1.bf16.xpose.msra.mxu0 0
  %1751 = vmatprep.subr.bf16.mxu0 0
  %1752 = vmatpush1.bf16.xpose.msra.mxu0 0
  %1753 = vmatprep.subr.bf16.mxu0 0
  %1754 = vmatpush1.bf16.xpose.msra.mxu0 0
  %1755 = vmatprep.subr.bf16.mxu0 0
  %1756 = vmatpush1.bf16.xpose.msra.mxu0 0
  %1757 = vmatprep.subr.bf16.mxu0 0
  %1758 = vmatpush1.bf16.xpose.msra.mxu0 0
  %1759 = vmatprep.subr.bf16.mxu0 0
  %1760 = vmatpush1.bf16.xpose.msra.mxu0 0
  %1761 = vmatprep.subr.bf16.mxu0 0
  %1762 = vmatpush1.bf16.xpose.msra.mxu0 0
  %1763 = vmatprep.subr.bf16.mxu0 0
  %1764 = vmatpush1.bf16.xpose.msra.mxu0 0
  %1765 = vmatprep.subr.bf16.mxu0 0
  %1766 = vmatpush1.bf16.xpose.msra.mxu0 0
  %1767 = vmatprep.subr.bf16.mxu0 0
  %1768 = vmatpush1.bf16.xpose.msra.mxu0 0
  %1769 = vmatprep.subr.bf16.mxu0 0
  %1770 = vmatpush1.bf16.xpose.msra.mxu0 0
  %1771 = vmatprep.subr.bf16.mxu0 0
  %1772 = vmatpush1.bf16.xpose.msra.mxu0 0
  %1773 = vmatprep.subr.bf16.mxu0 0
  %1774 = vmatpush1.bf16.xpose.msra.mxu0 0
  %1775 = vmatprep.subr.bf16.mxu0 0
  %1776 = vmatpush1.bf16.xpose.msra.mxu0 0
  %1777 = vmatprep.mubr.bf16.mxu0 0
  %1778 = vmatmul.mubr.bf16.gmra.mrb[0].mxu0 %v1744
  %v1779 = vpop.f32.mrb[0].mxu0
  %v1780 = vadd.f32 0.0, %v1779
  %v1781 = vpop.f32.mrb[0].mxu0
  %v1782 = vpop.f32.mrb[0].mxu0
  %v1783 = vpop.f32.mrb[0].mxu0
  %1784 = vdwg.mxu0
  %v1785 = vsel %vm1168, %v1780, -inf
  %1786 = vmax.xlane.f32.xlu0 %v1785
  %v1787 = vpop.xlane.xlu0 %1786
  %v1788 = vsub.f32 %v1780, %v1787
  %v1789 = vmul.f32 %v1788, 1.442695
  %v1790 = vpow.pop %v1789
  %v1791 = vsel %vm1168, %v1790, 0.0
  %1792 = vadd.xlane.f32.xlu0 %v1791
  %v1793 = vpop.xlane.xlu0 %1792
  %v1794 = vrcp.pop %v1793
  %v1795 = vmul.f32 %v1790, %v1794
  %v1796 = vmul.f32 %v1094, %v1120
  %v1797 = vpack.c.bf16 %v1796, %v1796
  %v1798 = vpack.c.bf16 %v1795, %v1795
  %v1799 = vmul.f32 %v912, %v1124
  %v1800 = vpack.c.bf16 %v1799, %v1799
  %1801 = vmatprep.subr.bf16.mxu0 0
  %1802 = vmatpush1.bf16.xpose.msra.mxu0 %v1742
  %1803 = vmatprep.subr.bf16.mxu0 0
  %1804 = vmatpush1.bf16.xpose.msra.mxu0 0
  %1805 = vmatprep.subr.bf16.mxu0 0
  %1806 = vmatpush1.bf16.xpose.msra.mxu0 0
  %1807 = vmatprep.subr.bf16.mxu0 0
  %1808 = vmatpush1.bf16.xpose.msra.mxu0 0
  %1809 = vmatprep.subr.bf16.mxu0 0
  %1810 = vmatpush1.bf16.xpose.msra.mxu0 0
  %1811 = vmatprep.subr.bf16.mxu0 0
  %1812 = vmatpush1.bf16.xpose.msra.mxu0 0
  %1813 = vmatprep.subr.bf16.mxu0 0
  %1814 = vmatpush1.bf16.xpose.msra.mxu0 0
  %1815 = vmatprep.subr.bf16.mxu0 0
  %1816 = vmatpush1.bf16.xpose.msra.mxu0 0
  %1817 = vmatprep.subr.bf16.mxu0 0
  %1818 = vmatpush1.bf16.xpose.msra.mxu0 0
  %1819 = vmatprep.subr.bf16.mxu0 0
  %1820 = vmatpush1.bf16.xpose.msra.mxu0 0
  %1821 = vmatprep.subr.bf16.mxu0 0
  %1822 = vmatpush1.bf16.xpose.msra.mxu0 0
  %1823 = vmatprep.subr.bf16.mxu0 0
  %1824 = vmatpush1.bf16.xpose.msra.mxu0 0
  %1825 = vmatprep.subr.bf16.mxu0 0
  %1826 = vmatpush1.bf16.xpose.msra.mxu0 0
  %1827 = vmatprep.subr.bf16.mxu0 0
  %1828 = vmatpush1.bf16.xpose.msra.mxu0 0
  %1829 = vmatprep.subr.bf16.mxu0 0
  %1830 = vmatpush1.bf16.xpose.msra.mxu0 0
  %1831 = vmatprep.subr.bf16.mxu0 0
  %1832 = vmatpush1.bf16.xpose.msra.mxu0 0
  %1833 = vmatprep.mubr.bf16.mxu0 0
  %1834 = vmatmul.mubr.bf16.gmra.mrb[0].mxu0 %v1800
  %v1835 = vpop.f32.mrb[0].mxu0
  %v1836 = vadd.f32 0.0, %v1835
  %v1837 = vpop.f32.mrb[0].mxu0
  %v1838 = vpop.f32.mrb[0].mxu0
  %v1839 = vpop.f32.mrb[0].mxu0
  %1840 = vdwg.mxu0
  %v1841 = vsel %vm1168, %v1836, -inf
  %1842 = vmax.xlane.f32.xlu0 %v1841
  %v1843 = vpop.xlane.xlu0 %1842
  %v1844 = vsub.f32 %v1836, %v1843
  %v1845 = vmul.f32 %v1844, 1.442695
  %v1846 = vpow.pop %v1845
  %v1847 = vsel %vm1168, %v1846, 0.0
  %1848 = vadd.xlane.f32.xlu0 %v1847
  %v1849 = vpop.xlane.xlu0 %1848
  %v1850 = vrcp.pop %v1849
  %v1851 = vmul.f32 %v1846, %v1850
  %v1852 = vmul.f32 %v1094, %v1124
  %v1853 = vpack.c.bf16 %v1852, %v1852
  %v1854 = vpack.c.bf16 %v1851, %v1851
  %v1856 = vsel %vm1168, %v1854, 0
  %v1859 = vsel %vm1242, %v1853, 0
  %1861 = vmatprep.subr.bf16.mxu0 0
  %1862 = vmatpush1.bf16.msra.mxu0 %v1859
  %1863 = vmatprep.subr.bf16.mxu0 0
  %1864 = vmatpush1.bf16.msra.mxu0 0
  %1865 = vmatprep.subr.bf16.mxu0 0
  %1866 = vmatpush1.bf16.msra.mxu0 0
  %1867 = vmatprep.subr.bf16.mxu0 0
  %1868 = vmatpush1.bf16.msra.mxu0 0
  %1869 = vmatprep.subr.bf16.mxu0 0
  %1870 = vmatpush1.bf16.msra.mxu0 0
  %1871 = vmatprep.subr.bf16.mxu0 0
  %1872 = vmatpush1.bf16.msra.mxu0 0
  %1873 = vmatprep.subr.bf16.mxu0 0
  %1874 = vmatpush1.bf16.msra.mxu0 0
  %1875 = vmatprep.subr.bf16.mxu0 0
  %1876 = vmatpush1.bf16.msra.mxu0 0
  %1877 = vmatprep.subr.bf16.mxu0 0
  %1878 = vmatpush1.bf16.msra.mxu0 0
  %1879 = vmatprep.subr.bf16.mxu0 0
  %1880 = vmatpush1.bf16.msra.mxu0 0
  %1881 = vmatprep.subr.bf16.mxu0 0
  %1882 = vmatpush1.bf16.msra.mxu0 0
  %1883 = vmatprep.subr.bf16.mxu0 0
  %1884 = vmatpush1.bf16.msra.mxu0 0
  %1885 = vmatprep.subr.bf16.mxu0 0
  %1886 = vmatpush1.bf16.msra.mxu0 0
  %1887 = vmatprep.subr.bf16.mxu0 0
  %1888 = vmatpush1.bf16.msra.mxu0 0
  %1889 = vmatprep.subr.bf16.mxu0 0
  %1890 = vmatpush1.bf16.msra.mxu0 0
  %1891 = vmatprep.subr.bf16.mxu0 0
  %1892 = vmatpush1.bf16.msra.mxu0 0
  %1893 = vmatprep.mubr.bf16.mxu0 0
  %1894 = vmatmul.mubr.bf16.gmra.mrb[0].mxu0 %v1856
  %v1895 = vpop.f32.mrb[0].mxu0
  %v1896 = vadd.f32 0.0, %v1895
  %v1897 = vpop.f32.mrb[0].mxu0
  %v1898 = vpop.f32.mrb[0].mxu0
  %v1899 = vpop.f32.mrb[0].mxu0
  %1900 = vdwg.mxu0
  %v1902 = vsel %vm1168, %v1798, 0
  %v1905 = vsel %vm1242, %v1797, 0
  %1907 = vmatprep.subr.bf16.mxu0 0
  %1908 = vmatpush1.bf16.msra.mxu0 %v1905
  %1909 = vmatprep.subr.bf16.mxu0 0
  %1910 = vmatpush1.bf16.msra.mxu0 0
  %1911 = vmatprep.subr.bf16.mxu0 0
  %1912 = vmatpush1.bf16.msra.mxu0 0
  %1913 = vmatprep.subr.bf16.mxu0 0
  %1914 = vmatpush1.bf16.msra.mxu0 0
  %1915 = vmatprep.subr.bf16.mxu0 0
  %1916 = vmatpush1.bf16.msra.mxu0 0
  %1917 = vmatprep.subr.bf16.mxu0 0
  %1918 = vmatpush1.bf16.msra.mxu0 0
  %1919 = vmatprep.subr.bf16.mxu0 0
  %1920 = vmatpush1.bf16.msra.mxu0 0
  %1921 = vmatprep.subr.bf16.mxu0 0
  %1922 = vmatpush1.bf16.msra.mxu0 0
  %1923 = vmatprep.subr.bf16.mxu0 0
  %1924 = vmatpush1.bf16.msra.mxu0 0
  %1925 = vmatprep.subr.bf16.mxu0 0
  %1926 = vmatpush1.bf16.msra.mxu0 0
  %1927 = vmatprep.subr.bf16.mxu0 0
  %1928 = vmatpush1.bf16.msra.mxu0 0
  %1929 = vmatprep.subr.bf16.mxu0 0
  %1930 = vmatpush1.bf16.msra.mxu0 0
  %1931 = vmatprep.subr.bf16.mxu0 0
  %1932 = vmatpush1.bf16.msra.mxu0 0
  %1933 = vmatprep.subr.bf16.mxu0 0
  %1934 = vmatpush1.bf16.msra.mxu0 0
  %1935 = vmatprep.subr.bf16.mxu0 0
  %1936 = vmatpush1.bf16.msra.mxu0 0
  %1937 = vmatprep.subr.bf16.mxu0 0
  %1938 = vmatpush1.bf16.msra.mxu0 0
  %1939 = vmatprep.mubr.bf16.mxu0 0
  %1940 = vmatmul.mubr.bf16.gmra.mrb[0].mxu0 %v1902
  %v1941 = vpop.f32.mrb[0].mxu0
  %v1942 = vadd.f32 %v1896, %v1941
  %v1943 = vpop.f32.mrb[0].mxu0
  %v1944 = vpop.f32.mrb[0].mxu0
  %v1945 = vpop.f32.mrb[0].mxu0
  %1946 = vdwg.mxu0
  %v1947 = vpack.c.bf16 %v1098, %v1098
  %v1948 = vmul.f32 %v917, %v1120
  %v1949 = vpack.c.bf16 %v1948, %v1948
  %1950 = vmatprep.subr.bf16.mxu0 0
  %1951 = vmatpush1.bf16.xpose.msra.mxu0 %v1947
  %1952 = vmatprep.subr.bf16.mxu0 0
  %1953 = vmatpush1.bf16.xpose.msra.mxu0 0
  %1954 = vmatprep.subr.bf16.mxu0 0
  %1955 = vmatpush1.bf16.xpose.msra.mxu0 0
  %1956 = vmatprep.subr.bf16.mxu0 0
  %1957 = vmatpush1.bf16.xpose.msra.mxu0 0
  %1958 = vmatprep.subr.bf16.mxu0 0
  %1959 = vmatpush1.bf16.xpose.msra.mxu0 0
  %1960 = vmatprep.subr.bf16.mxu0 0
  %1961 = vmatpush1.bf16.xpose.msra.mxu0 0
  %1962 = vmatprep.subr.bf16.mxu0 0
  %1963 = vmatpush1.bf16.xpose.msra.mxu0 0
  %1964 = vmatprep.subr.bf16.mxu0 0
  %1965 = vmatpush1.bf16.xpose.msra.mxu0 0
  %1966 = vmatprep.subr.bf16.mxu0 0
  %1967 = vmatpush1.bf16.xpose.msra.mxu0 0
  %1968 = vmatprep.subr.bf16.mxu0 0
  %1969 = vmatpush1.bf16.xpose.msra.mxu0 0
  %1970 = vmatprep.subr.bf16.mxu0 0
  %1971 = vmatpush1.bf16.xpose.msra.mxu0 0
  %1972 = vmatprep.subr.bf16.mxu0 0
  %1973 = vmatpush1.bf16.xpose.msra.mxu0 0
  %1974 = vmatprep.subr.bf16.mxu0 0
  %1975 = vmatpush1.bf16.xpose.msra.mxu0 0
  %1976 = vmatprep.subr.bf16.mxu0 0
  %1977 = vmatpush1.bf16.xpose.msra.mxu0 0
  %1978 = vmatprep.subr.bf16.mxu0 0
  %1979 = vmatpush1.bf16.xpose.msra.mxu0 0
  %1980 = vmatprep.subr.bf16.mxu0 0
  %1981 = vmatpush1.bf16.xpose.msra.mxu0 0
  %1982 = vmatprep.mubr.bf16.mxu0 0
  %1983 = vmatmul.mubr.bf16.gmra.mrb[0].mxu0 %v1949
  %v1984 = vpop.f32.mrb[0].mxu0
  %v1985 = vadd.f32 0.0, %v1984
  %v1986 = vpop.f32.mrb[0].mxu0
  %v1987 = vpop.f32.mrb[0].mxu0
  %v1988 = vpop.f32.mrb[0].mxu0
  %1989 = vdwg.mxu0
  %v1990 = vsel %vm1168, %v1985, -inf
  %1991 = vmax.xlane.f32.xlu0 %v1990
  %v1992 = vpop.xlane.xlu0 %1991
  %v1993 = vsub.f32 %v1985, %v1992
  %v1994 = vmul.f32 %v1993, 1.442695
  %v1995 = vpow.pop %v1994
  %v1996 = vsel %vm1168, %v1995, 0.0
  %1997 = vadd.xlane.f32.xlu0 %v1996
  %v1998 = vpop.xlane.xlu0 %1997
  %v1999 = vrcp.pop %v1998
  %v2000 = vmul.f32 %v1995, %v1999
  %v2001 = vmul.f32 %v1100, %v1120
  %v2002 = vpack.c.bf16 %v2001, %v2001
  %v2003 = vpack.c.bf16 %v2000, %v2000
  %v2004 = vmul.f32 %v917, %v1124
  %v2005 = vpack.c.bf16 %v2004, %v2004
  %2006 = vmatprep.subr.bf16.mxu0 0
  %2007 = vmatpush1.bf16.xpose.msra.mxu0 %v1947
  %2008 = vmatprep.subr.bf16.mxu0 0
  %2009 = vmatpush1.bf16.xpose.msra.mxu0 0
  %2010 = vmatprep.subr.bf16.mxu0 0
  %2011 = vmatpush1.bf16.xpose.msra.mxu0 0
  %2012 = vmatprep.subr.bf16.mxu0 0
  %2013 = vmatpush1.bf16.xpose.msra.mxu0 0
  %2014 = vmatprep.subr.bf16.mxu0 0
  %2015 = vmatpush1.bf16.xpose.msra.mxu0 0
  %2016 = vmatprep.subr.bf16.mxu0 0
  %2017 = vmatpush1.bf16.xpose.msra.mxu0 0
  %2018 = vmatprep.subr.bf16.mxu0 0
  %2019 = vmatpush1.bf16.xpose.msra.mxu0 0
  %2020 = vmatprep.subr.bf16.mxu0 0
  %2021 = vmatpush1.bf16.xpose.msra.mxu0 0
  %2022 = vmatprep.subr.bf16.mxu0 0
  %2023 = vmatpush1.bf16.xpose.msra.mxu0 0
  %2024 = vmatprep.subr.bf16.mxu0 0
  %2025 = vmatpush1.bf16.xpose.msra.mxu0 0
  %2026 = vmatprep.subr.bf16.mxu0 0
  %2027 = vmatpush1.bf16.xpose.msra.mxu0 0
  %2028 = vmatprep.subr.bf16.mxu0 0
  %2029 = vmatpush1.bf16.xpose.msra.mxu0 0
  %2030 = vmatprep.subr.bf16.mxu0 0
  %2031 = vmatpush1.bf16.xpose.msra.mxu0 0
  %2032 = vmatprep.subr.bf16.mxu0 0
  %2033 = vmatpush1.bf16.xpose.msra.mxu0 0
  %2034 = vmatprep.subr.bf16.mxu0 0
  %2035 = vmatpush1.bf16.xpose.msra.mxu0 0
  %2036 = vmatprep.subr.bf16.mxu0 0
  %2037 = vmatpush1.bf16.xpose.msra.mxu0 0
  %2038 = vmatprep.mubr.bf16.mxu0 0
  %2039 = vmatmul.mubr.bf16.gmra.mrb[0].mxu0 %v2005
  %v2040 = vpop.f32.mrb[0].mxu0
  %v2041 = vadd.f32 0.0, %v2040
  %v2042 = vpop.f32.mrb[0].mxu0
  %v2043 = vpop.f32.mrb[0].mxu0
  %v2044 = vpop.f32.mrb[0].mxu0
  %2045 = vdwg.mxu0
  %v2046 = vsel %vm1168, %v2041, -inf
  %2047 = vmax.xlane.f32.xlu0 %v2046
  %v2048 = vpop.xlane.xlu0 %2047
  %v2049 = vsub.f32 %v2041, %v2048
  %v2050 = vmul.f32 %v2049, 1.442695
  %v2051 = vpow.pop %v2050
  %v2052 = vsel %vm1168, %v2051, 0.0
  %2053 = vadd.xlane.f32.xlu0 %v2052
  %v2054 = vpop.xlane.xlu0 %2053
  %v2055 = vrcp.pop %v2054
  %v2056 = vmul.f32 %v2051, %v2055
  %v2057 = vmul.f32 %v1100, %v1124
  %v2058 = vpack.c.bf16 %v2057, %v2057
  %v2059 = vpack.c.bf16 %v2056, %v2056
  %v2061 = vsel %vm1168, %v2059, 0
  %v2064 = vsel %vm1242, %v2058, 0
  %2066 = vmatprep.subr.bf16.mxu0 0
  %2067 = vmatpush1.bf16.msra.mxu0 %v2064
  %2068 = vmatprep.subr.bf16.mxu0 0
  %2069 = vmatpush1.bf16.msra.mxu0 0
  %2070 = vmatprep.subr.bf16.mxu0 0
  %2071 = vmatpush1.bf16.msra.mxu0 0
  %2072 = vmatprep.subr.bf16.mxu0 0
  %2073 = vmatpush1.bf16.msra.mxu0 0
  %2074 = vmatprep.subr.bf16.mxu0 0
  %2075 = vmatpush1.bf16.msra.mxu0 0
  %2076 = vmatprep.subr.bf16.mxu0 0
  %2077 = vmatpush1.bf16.msra.mxu0 0
  %2078 = vmatprep.subr.bf16.mxu0 0
  %2079 = vmatpush1.bf16.msra.mxu0 0
  %2080 = vmatprep.subr.bf16.mxu0 0
  %2081 = vmatpush1.bf16.msra.mxu0 0
  %2082 = vmatprep.subr.bf16.mxu0 0
  %2083 = vmatpush1.bf16.msra.mxu0 0
  %2084 = vmatprep.subr.bf16.mxu0 0
  %2085 = vmatpush1.bf16.msra.mxu0 0
  %2086 = vmatprep.subr.bf16.mxu0 0
  %2087 = vmatpush1.bf16.msra.mxu0 0
  %2088 = vmatprep.subr.bf16.mxu0 0
  %2089 = vmatpush1.bf16.msra.mxu0 0
  %2090 = vmatprep.subr.bf16.mxu0 0
  %2091 = vmatpush1.bf16.msra.mxu0 0
  %2092 = vmatprep.subr.bf16.mxu0 0
  %2093 = vmatpush1.bf16.msra.mxu0 0
  %2094 = vmatprep.subr.bf16.mxu0 0
  %2095 = vmatpush1.bf16.msra.mxu0 0
  %2096 = vmatprep.subr.bf16.mxu0 0
  %2097 = vmatpush1.bf16.msra.mxu0 0
  %2098 = vmatprep.mubr.bf16.mxu0 0
  %2099 = vmatmul.mubr.bf16.gmra.mrb[0].mxu0 %v2061
  %v2100 = vpop.f32.mrb[0].mxu0
  %v2101 = vadd.f32 0.0, %v2100
  %v2102 = vpop.f32.mrb[0].mxu0
  %v2103 = vpop.f32.mrb[0].mxu0
  %v2104 = vpop.f32.mrb[0].mxu0
  %2105 = vdwg.mxu0
  %v2107 = vsel %vm1168, %v2003, 0
  %v2110 = vsel %vm1242, %v2002, 0
  %2112 = vmatprep.subr.bf16.mxu0 0
  %2113 = vmatpush1.bf16.msra.mxu0 %v2110
  %2114 = vmatprep.subr.bf16.mxu0 0
  %2115 = vmatpush1.bf16.msra.mxu0 0
  %2116 = vmatprep.subr.bf16.mxu0 0
  %2117 = vmatpush1.bf16.msra.mxu0 0
  %2118 = vmatprep.subr.bf16.mxu0 0
  %2119 = vmatpush1.bf16.msra.mxu0 0
  %2120 = vmatprep.subr.bf16.mxu0 0
  %2121 = vmatpush1.bf16.msra.mxu0 0
  %2122 = vmatprep.subr.bf16.mxu0 0
  %2123 = vmatpush1.bf16.msra.mxu0 0
  %2124 = vmatprep.subr.bf16.mxu0 0
  %2125 = vmatpush1.bf16.msra.mxu0 0
  %2126 = vmatprep.subr.bf16.mxu0 0
  %2127 = vmatpush1.bf16.msra.mxu0 0
  %2128 = vmatprep.subr.bf16.mxu0 0
  %2129 = vmatpush1.bf16.msra.mxu0 0
  %2130 = vmatprep.subr.bf16.mxu0 0
  %2131 = vmatpush1.bf16.msra.mxu0 0
  %2132 = vmatprep.subr.bf16.mxu0 0
  %2133 = vmatpush1.bf16.msra.mxu0 0
  %2134 = vmatprep.subr.bf16.mxu0 0
  %2135 = vmatpush1.bf16.msra.mxu0 0
  %2136 = vmatprep.subr.bf16.mxu0 0
  %2137 = vmatpush1.bf16.msra.mxu0 0
  %2138 = vmatprep.subr.bf16.mxu0 0
  %2139 = vmatpush1.bf16.msra.mxu0 0
  %2140 = vmatprep.subr.bf16.mxu0 0
  %2141 = vmatpush1.bf16.msra.mxu0 0
  %2142 = vmatprep.subr.bf16.mxu0 0
  %2143 = vmatpush1.bf16.msra.mxu0 0
  %2144 = vmatprep.mubr.bf16.mxu0 0
  %2145 = vmatmul.mubr.bf16.gmra.mrb[0].mxu0 %v2107
  %v2146 = vpop.f32.mrb[0].mxu0
  %v2147 = vadd.f32 %v2101, %v2146
  %v2148 = vpop.f32.mrb[0].mxu0
  %v2149 = vpop.f32.mrb[0].mxu0
  %v2150 = vpop.f32.mrb[0].mxu0
  %2151 = vdwg.mxu0
  %v2152 = vpack.c.bf16 %v1102, %v1102
  %v2153 = vmul.f32 %v920, %v1120
  %v2154 = vpack.c.bf16 %v2153, %v2153
  %2155 = vmatprep.subr.bf16.mxu0 0
  %2156 = vmatpush1.bf16.xpose.msra.mxu0 %v2152
  %2157 = vmatprep.subr.bf16.mxu0 0
  %2158 = vmatpush1.bf16.xpose.msra.mxu0 0
  %2159 = vmatprep.subr.bf16.mxu0 0
  %2160 = vmatpush1.bf16.xpose.msra.mxu0 0
  %2161 = vmatprep.subr.bf16.mxu0 0
  %2162 = vmatpush1.bf16.xpose.msra.mxu0 0
  %2163 = vmatprep.subr.bf16.mxu0 0
  %2164 = vmatpush1.bf16.xpose.msra.mxu0 0
  %2165 = vmatprep.subr.bf16.mxu0 0
  %2166 = vmatpush1.bf16.xpose.msra.mxu0 0
  %2167 = vmatprep.subr.bf16.mxu0 0
  %2168 = vmatpush1.bf16.xpose.msra.mxu0 0
  %2169 = vmatprep.subr.bf16.mxu0 0
  %2170 = vmatpush1.bf16.xpose.msra.mxu0 0
  %2171 = vmatprep.subr.bf16.mxu0 0
  %2172 = vmatpush1.bf16.xpose.msra.mxu0 0
  %2173 = vmatprep.subr.bf16.mxu0 0
  %2174 = vmatpush1.bf16.xpose.msra.mxu0 0
  %2175 = vmatprep.subr.bf16.mxu0 0
  %2176 = vmatpush1.bf16.xpose.msra.mxu0 0
  %2177 = vmatprep.subr.bf16.mxu0 0
  %2178 = vmatpush1.bf16.xpose.msra.mxu0 0
  %2179 = vmatprep.subr.bf16.mxu0 0
  %2180 = vmatpush1.bf16.xpose.msra.mxu0 0
  %2181 = vmatprep.subr.bf16.mxu0 0
  %2182 = vmatpush1.bf16.xpose.msra.mxu0 0
  %2183 = vmatprep.subr.bf16.mxu0 0
  %2184 = vmatpush1.bf16.xpose.msra.mxu0 0
  %2185 = vmatprep.subr.bf16.mxu0 0
  %2186 = vmatpush1.bf16.xpose.msra.mxu0 0
  %2187 = vmatprep.mubr.bf16.mxu0 0
  %2188 = vmatmul.mubr.bf16.gmra.mrb[0].mxu0 %v2154
  %v2189 = vpop.f32.mrb[0].mxu0
  %v2190 = vadd.f32 0.0, %v2189
  %v2191 = vpop.f32.mrb[0].mxu0
  %v2192 = vpop.f32.mrb[0].mxu0
  %v2193 = vpop.f32.mrb[0].mxu0
  %2194 = vdwg.mxu0
  %v2195 = vsel %vm1168, %v2190, -inf
  %2196 = vmax.xlane.f32.xlu0 %v2195
  %v2197 = vpop.xlane.xlu0 %2196
  %v2198 = vsub.f32 %v2190, %v2197
  %v2199 = vmul.f32 %v2198, 1.442695
  %v2200 = vpow.pop %v2199
  %v2201 = vsel %vm1168, %v2200, 0.0
  %2202 = vadd.xlane.f32.xlu0 %v2201
  %v2203 = vpop.xlane.xlu0 %2202
  %v2204 = vrcp.pop %v2203
  %v2205 = vmul.f32 %v2200, %v2204
  %v2206 = vmul.f32 %v1104, %v1120
  %v2207 = vpack.c.bf16 %v2206, %v2206
  %v2208 = vpack.c.bf16 %v2205, %v2205
  %v2209 = vmul.f32 %v920, %v1124
  %v2210 = vpack.c.bf16 %v2209, %v2209
  %2211 = vmatprep.subr.bf16.mxu0 0
  %2212 = vmatpush1.bf16.xpose.msra.mxu0 %v2152
  %2213 = vmatprep.subr.bf16.mxu0 0
  %2214 = vmatpush1.bf16.xpose.msra.mxu0 0
  %2215 = vmatprep.subr.bf16.mxu0 0
  %2216 = vmatpush1.bf16.xpose.msra.mxu0 0
  %2217 = vmatprep.subr.bf16.mxu0 0
  %2218 = vmatpush1.bf16.xpose.msra.mxu0 0
  %2219 = vmatprep.subr.bf16.mxu0 0
  %2220 = vmatpush1.bf16.xpose.msra.mxu0 0
  %2221 = vmatprep.subr.bf16.mxu0 0
  %2222 = vmatpush1.bf16.xpose.msra.mxu0 0
  %2223 = vmatprep.subr.bf16.mxu0 0
  %2224 = vmatpush1.bf16.xpose.msra.mxu0 0
  %2225 = vmatprep.subr.bf16.mxu0 0
  %2226 = vmatpush1.bf16.xpose.msra.mxu0 0
  %2227 = vmatprep.subr.bf16.mxu0 0
  %2228 = vmatpush1.bf16.xpose.msra.mxu0 0
  %2229 = vmatprep.subr.bf16.mxu0 0
  %2230 = vmatpush1.bf16.xpose.msra.mxu0 0
  %2231 = vmatprep.subr.bf16.mxu0 0
  %2232 = vmatpush1.bf16.xpose.msra.mxu0 0
  %2233 = vmatprep.subr.bf16.mxu0 0
  %2234 = vmatpush1.bf16.xpose.msra.mxu0 0
  %2235 = vmatprep.subr.bf16.mxu0 0
  %2236 = vmatpush1.bf16.xpose.msra.mxu0 0
  %2237 = vmatprep.subr.bf16.mxu0 0
  %2238 = vmatpush1.bf16.xpose.msra.mxu0 0
  %2239 = vmatprep.subr.bf16.mxu0 0
  %2240 = vmatpush1.bf16.xpose.msra.mxu0 0
  %2241 = vmatprep.subr.bf16.mxu0 0
  %2242 = vmatpush1.bf16.xpose.msra.mxu0 0
  %2243 = vmatprep.mubr.bf16.mxu0 0
  %2244 = vmatmul.mubr.bf16.gmra.mrb[0].mxu0 %v2210
  %v2245 = vpop.f32.mrb[0].mxu0
  %v2246 = vadd.f32 0.0, %v2245
  %v2247 = vpop.f32.mrb[0].mxu0
  %v2248 = vpop.f32.mrb[0].mxu0
  %v2249 = vpop.f32.mrb[0].mxu0
  %2250 = vdwg.mxu0
  %v2251 = vsel %vm1168, %v2246, -inf
  %2252 = vmax.xlane.f32.xlu0 %v2251
  %v2253 = vpop.xlane.xlu0 %2252
  %v2254 = vsub.f32 %v2246, %v2253
  %v2255 = vmul.f32 %v2254, 1.442695
  %v2256 = vpow.pop %v2255
  %v2257 = vsel %vm1168, %v2256, 0.0
  %2258 = vadd.xlane.f32.xlu0 %v2257
  %v2259 = vpop.xlane.xlu0 %2258
  %v2260 = vrcp.pop %v2259
  %v2261 = vmul.f32 %v2256, %v2260
  %v2262 = vmul.f32 %v1104, %v1124
  %v2263 = vpack.c.bf16 %v2262, %v2262
  %v2264 = vpack.c.bf16 %v2261, %v2261
  %v2266 = vsel %vm1168, %v2264, 0
  %v2269 = vsel %vm1242, %v2263, 0
  %2271 = vmatprep.subr.bf16.mxu0 0
  %2272 = vmatpush1.bf16.msra.mxu0 %v2269
  %2273 = vmatprep.subr.bf16.mxu0 0
  %2274 = vmatpush1.bf16.msra.mxu0 0
  %2275 = vmatprep.subr.bf16.mxu0 0
  %2276 = vmatpush1.bf16.msra.mxu0 0
  %2277 = vmatprep.subr.bf16.mxu0 0
  %2278 = vmatpush1.bf16.msra.mxu0 0
  %2279 = vmatprep.subr.bf16.mxu0 0
  %2280 = vmatpush1.bf16.msra.mxu0 0
  %2281 = vmatprep.subr.bf16.mxu0 0
  %2282 = vmatpush1.bf16.msra.mxu0 0
  %2283 = vmatprep.subr.bf16.mxu0 0
  %2284 = vmatpush1.bf16.msra.mxu0 0
  %2285 = vmatprep.subr.bf16.mxu0 0
  %2286 = vmatpush1.bf16.msra.mxu0 0
  %2287 = vmatprep.subr.bf16.mxu0 0
  %2288 = vmatpush1.bf16.msra.mxu0 0
  %2289 = vmatprep.subr.bf16.mxu0 0
  %2290 = vmatpush1.bf16.msra.mxu0 0
  %2291 = vmatprep.subr.bf16.mxu0 0
  %2292 = vmatpush1.bf16.msra.mxu0 0
  %2293 = vmatprep.subr.bf16.mxu0 0
  %2294 = vmatpush1.bf16.msra.mxu0 0
  %2295 = vmatprep.subr.bf16.mxu0 0
  %2296 = vmatpush1.bf16.msra.mxu0 0
  %2297 = vmatprep.subr.bf16.mxu0 0
  %2298 = vmatpush1.bf16.msra.mxu0 0
  %2299 = vmatprep.subr.bf16.mxu0 0
  %2300 = vmatpush1.bf16.msra.mxu0 0
  %2301 = vmatprep.subr.bf16.mxu0 0
  %2302 = vmatpush1.bf16.msra.mxu0 0
  %2303 = vmatprep.mubr.bf16.mxu0 0
  %2304 = vmatmul.mubr.bf16.gmra.mrb[0].mxu0 %v2266
  %v2305 = vpop.f32.mrb[0].mxu0
  %v2306 = vadd.f32 0.0, %v2305
  %v2307 = vpop.f32.mrb[0].mxu0
  %v2308 = vpop.f32.mrb[0].mxu0
  %v2309 = vpop.f32.mrb[0].mxu0
  %2310 = vdwg.mxu0
  %v2312 = vsel %vm1168, %v2208, 0
  %v2315 = vsel %vm1242, %v2207, 0
  %2317 = vmatprep.subr.bf16.mxu0 0
  %2318 = vmatpush1.bf16.msra.mxu0 %v2315
  %2319 = vmatprep.subr.bf16.mxu0 0
  %2320 = vmatpush1.bf16.msra.mxu0 0
  %2321 = vmatprep.subr.bf16.mxu0 0
  %2322 = vmatpush1.bf16.msra.mxu0 0
  %2323 = vmatprep.subr.bf16.mxu0 0
  %2324 = vmatpush1.bf16.msra.mxu0 0
  %2325 = vmatprep.subr.bf16.mxu0 0
  %2326 = vmatpush1.bf16.msra.mxu0 0
  %2327 = vmatprep.subr.bf16.mxu0 0
  %2328 = vmatpush1.bf16.msra.mxu0 0
  %2329 = vmatprep.subr.bf16.mxu0 0
  %2330 = vmatpush1.bf16.msra.mxu0 0
  %2331 = vmatprep.subr.bf16.mxu0 0
  %2332 = vmatpush1.bf16.msra.mxu0 0
  %2333 = vmatprep.subr.bf16.mxu0 0
  %2334 = vmatpush1.bf16.msra.mxu0 0
  %2335 = vmatprep.subr.bf16.mxu0 0
  %2336 = vmatpush1.bf16.msra.mxu0 0
  %2337 = vmatprep.subr.bf16.mxu0 0
  %2338 = vmatpush1.bf16.msra.mxu0 0
  %2339 = vmatprep.subr.bf16.mxu0 0
  %2340 = vmatpush1.bf16.msra.mxu0 0
  %2341 = vmatprep.subr.bf16.mxu0 0
  %2342 = vmatpush1.bf16.msra.mxu0 0
  %2343 = vmatprep.subr.bf16.mxu0 0
  %2344 = vmatpush1.bf16.msra.mxu0 0
  %2345 = vmatprep.subr.bf16.mxu0 0
  %2346 = vmatpush1.bf16.msra.mxu0 0
  %2347 = vmatprep.subr.bf16.mxu0 0
  %2348 = vmatpush1.bf16.msra.mxu0 0
  %2349 = vmatprep.mubr.bf16.mxu0 0
  %2350 = vmatmul.mubr.bf16.gmra.mrb[0].mxu0 %v2312
  %v2351 = vpop.f32.mrb[0].mxu0
  %v2352 = vadd.f32 %v2306, %v2351
  %v2353 = vpop.f32.mrb[0].mxu0
  %v2354 = vpop.f32.mrb[0].mxu0
  %v2355 = vpop.f32.mrb[0].mxu0
  %2356 = vdwg.mxu0
  %v2357 = vpack.c.bf16 %v1108, %v1108
  %v2358 = vmul.f32 %v925, %v1120
  %v2359 = vpack.c.bf16 %v2358, %v2358
  %2360 = vmatprep.subr.bf16.mxu0 0
  %2361 = vmatpush1.bf16.xpose.msra.mxu0 %v2357
  %2362 = vmatprep.subr.bf16.mxu0 0
  %2363 = vmatpush1.bf16.xpose.msra.mxu0 0
  %2364 = vmatprep.subr.bf16.mxu0 0
  %2365 = vmatpush1.bf16.xpose.msra.mxu0 0
  %2366 = vmatprep.subr.bf16.mxu0 0
  %2367 = vmatpush1.bf16.xpose.msra.mxu0 0
  %2368 = vmatprep.subr.bf16.mxu0 0
  %2369 = vmatpush1.bf16.xpose.msra.mxu0 0
  %2370 = vmatprep.subr.bf16.mxu0 0
  %2371 = vmatpush1.bf16.xpose.msra.mxu0 0
  %2372 = vmatprep.subr.bf16.mxu0 0
  %2373 = vmatpush1.bf16.xpose.msra.mxu0 0
  %2374 = vmatprep.subr.bf16.mxu0 0
  %2375 = vmatpush1.bf16.xpose.msra.mxu0 0
  %2376 = vmatprep.subr.bf16.mxu0 0
  %2377 = vmatpush1.bf16.xpose.msra.mxu0 0
  %2378 = vmatprep.subr.bf16.mxu0 0
  %2379 = vmatpush1.bf16.xpose.msra.mxu0 0
  %2380 = vmatprep.subr.bf16.mxu0 0
  %2381 = vmatpush1.bf16.xpose.msra.mxu0 0
  %2382 = vmatprep.subr.bf16.mxu0 0
  %2383 = vmatpush1.bf16.xpose.msra.mxu0 0
  %2384 = vmatprep.subr.bf16.mxu0 0
  %2385 = vmatpush1.bf16.xpose.msra.mxu0 0
  %2386 = vmatprep.subr.bf16.mxu0 0
  %2387 = vmatpush1.bf16.xpose.msra.mxu0 0
  %2388 = vmatprep.subr.bf16.mxu0 0
  %2389 = vmatpush1.bf16.xpose.msra.mxu0 0
  %2390 = vmatprep.subr.bf16.mxu0 0
  %2391 = vmatpush1.bf16.xpose.msra.mxu0 0
  %2392 = vmatprep.mubr.bf16.mxu0 0
  %2393 = vmatmul.mubr.bf16.gmra.mrb[0].mxu0 %v2359
  %v2394 = vpop.f32.mrb[0].mxu0
  %v2395 = vadd.f32 0.0, %v2394
  %v2396 = vpop.f32.mrb[0].mxu0
  %v2397 = vpop.f32.mrb[0].mxu0
  %v2398 = vpop.f32.mrb[0].mxu0
  %2399 = vdwg.mxu0
  %v2400 = vsel %vm1168, %v2395, -inf
  %2401 = vmax.xlane.f32.xlu0 %v2400
  %v2402 = vpop.xlane.xlu0 %2401
  %v2403 = vsub.f32 %v2395, %v2402
  %v2404 = vmul.f32 %v2403, 1.442695
  %v2405 = vpow.pop %v2404
  %v2406 = vsel %vm1168, %v2405, 0.0
  %2407 = vadd.xlane.f32.xlu0 %v2406
  %v2408 = vpop.xlane.xlu0 %2407
  %v2409 = vrcp.pop %v2408
  %v2410 = vmul.f32 %v2405, %v2409
  %v2411 = vmul.f32 %v1110, %v1120
  %v2412 = vpack.c.bf16 %v2411, %v2411
  %v2413 = vpack.c.bf16 %v2410, %v2410
  %v2414 = vmul.f32 %v925, %v1124
  %v2415 = vpack.c.bf16 %v2414, %v2414
  %2416 = vmatprep.subr.bf16.mxu0 0
  %2417 = vmatpush1.bf16.xpose.msra.mxu0 %v2357
  %2418 = vmatprep.subr.bf16.mxu0 0
  %2419 = vmatpush1.bf16.xpose.msra.mxu0 0
  %2420 = vmatprep.subr.bf16.mxu0 0
  %2421 = vmatpush1.bf16.xpose.msra.mxu0 0
  %2422 = vmatprep.subr.bf16.mxu0 0
  %2423 = vmatpush1.bf16.xpose.msra.mxu0 0
  %2424 = vmatprep.subr.bf16.mxu0 0
  %2425 = vmatpush1.bf16.xpose.msra.mxu0 0
  %2426 = vmatprep.subr.bf16.mxu0 0
  %2427 = vmatpush1.bf16.xpose.msra.mxu0 0
  %2428 = vmatprep.subr.bf16.mxu0 0
  %2429 = vmatpush1.bf16.xpose.msra.mxu0 0
  %2430 = vmatprep.subr.bf16.mxu0 0
  %2431 = vmatpush1.bf16.xpose.msra.mxu0 0
  %2432 = vmatprep.subr.bf16.mxu0 0
  %2433 = vmatpush1.bf16.xpose.msra.mxu0 0
  %2434 = vmatprep.subr.bf16.mxu0 0
  %2435 = vmatpush1.bf16.xpose.msra.mxu0 0
  %2436 = vmatprep.subr.bf16.mxu0 0
  %2437 = vmatpush1.bf16.xpose.msra.mxu0 0
  %2438 = vmatprep.subr.bf16.mxu0 0
  %2439 = vmatpush1.bf16.xpose.msra.mxu0 0
  %2440 = vmatprep.subr.bf16.mxu0 0
  %2441 = vmatpush1.bf16.xpose.msra.mxu0 0
  %2442 = vmatprep.subr.bf16.mxu0 0
  %2443 = vmatpush1.bf16.xpose.msra.mxu0 0
  %2444 = vmatprep.subr.bf16.mxu0 0
  %2445 = vmatpush1.bf16.xpose.msra.mxu0 0
  %2446 = vmatprep.subr.bf16.mxu0 0
  %2447 = vmatpush1.bf16.xpose.msra.mxu0 0
  %2448 = vmatprep.mubr.bf16.mxu0 0
  %2449 = vmatmul.mubr.bf16.gmra.mrb[0].mxu0 %v2415
  %v2450 = vpop.f32.mrb[0].mxu0
  %v2451 = vadd.f32 0.0, %v2450
  %v2452 = vpop.f32.mrb[0].mxu0
  %v2453 = vpop.f32.mrb[0].mxu0
  %v2454 = vpop.f32.mrb[0].mxu0
  %2455 = vdwg.mxu0
  %v2456 = vsel %vm1168, %v2451, -inf
  %2457 = vmax.xlane.f32.xlu0 %v2456
  %v2458 = vpop.xlane.xlu0 %2457
  %v2459 = vsub.f32 %v2451, %v2458
  %v2460 = vmul.f32 %v2459, 1.442695
  %v2461 = vpow.pop %v2460
  %v2462 = vsel %vm1168, %v2461, 0.0
  %2463 = vadd.xlane.f32.xlu0 %v2462
  %v2464 = vpop.xlane.xlu0 %2463
  %v2465 = vrcp.pop %v2464
  %v2466 = vmul.f32 %v2461, %v2465
  %v2467 = vmul.f32 %v1110, %v1124
  %v2468 = vpack.c.bf16 %v2467, %v2467
  %v2469 = vpack.c.bf16 %v2466, %v2466
  %v2471 = vsel %vm1168, %v2469, 0
  %v2474 = vsel %vm1242, %v2468, 0
  %2476 = vmatprep.subr.bf16.mxu0 0
  %2477 = vmatpush1.bf16.msra.mxu0 %v2474
  %2478 = vmatprep.subr.bf16.mxu0 0
  %2479 = vmatpush1.bf16.msra.mxu0 0
  %2480 = vmatprep.subr.bf16.mxu0 0
  %2481 = vmatpush1.bf16.msra.mxu0 0
  %2482 = vmatprep.subr.bf16.mxu0 0
  %2483 = vmatpush1.bf16.msra.mxu0 0
  %2484 = vmatprep.subr.bf16.mxu0 0
  %2485 = vmatpush1.bf16.msra.mxu0 0
  %2486 = vmatprep.subr.bf16.mxu0 0
  %2487 = vmatpush1.bf16.msra.mxu0 0
  %2488 = vmatprep.subr.bf16.mxu0 0
  %2489 = vmatpush1.bf16.msra.mxu0 0
  %2490 = vmatprep.subr.bf16.mxu0 0
  %2491 = vmatpush1.bf16.msra.mxu0 0
  %2492 = vmatprep.subr.bf16.mxu0 0
  %2493 = vmatpush1.bf16.msra.mxu0 0
  %2494 = vmatprep.subr.bf16.mxu0 0
  %2495 = vmatpush1.bf16.msra.mxu0 0
  %2496 = vmatprep.subr.bf16.mxu0 0
  %2497 = vmatpush1.bf16.msra.mxu0 0
  %2498 = vmatprep.subr.bf16.mxu0 0
  %2499 = vmatpush1.bf16.msra.mxu0 0
  %2500 = vmatprep.subr.bf16.mxu0 0
  %2501 = vmatpush1.bf16.msra.mxu0 0
  %2502 = vmatprep.subr.bf16.mxu0 0
  %2503 = vmatpush1.bf16.msra.mxu0 0
  %2504 = vmatprep.subr.bf16.mxu0 0
  %2505 = vmatpush1.bf16.msra.mxu0 0
  %2506 = vmatprep.subr.bf16.mxu0 0
  %2507 = vmatpush1.bf16.msra.mxu0 0
  %2508 = vmatprep.mubr.bf16.mxu0 0
  %2509 = vmatmul.mubr.bf16.gmra.mrb[0].mxu0 %v2471
  %v2510 = vpop.f32.mrb[0].mxu0
  %v2511 = vadd.f32 0.0, %v2510
  %v2512 = vpop.f32.mrb[0].mxu0
  %v2513 = vpop.f32.mrb[0].mxu0
  %v2514 = vpop.f32.mrb[0].mxu0
  %2515 = vdwg.mxu0
  %v2517 = vsel %vm1168, %v2413, 0
  %v2520 = vsel %vm1242, %v2412, 0
  %2522 = vmatprep.subr.bf16.mxu0 0
  %2523 = vmatpush1.bf16.msra.mxu0 %v2520
  %2524 = vmatprep.subr.bf16.mxu0 0
  %2525 = vmatpush1.bf16.msra.mxu0 0
  %2526 = vmatprep.subr.bf16.mxu0 0
  %2527 = vmatpush1.bf16.msra.mxu0 0
  %2528 = vmatprep.subr.bf16.mxu0 0
  %2529 = vmatpush1.bf16.msra.mxu0 0
  %2530 = vmatprep.subr.bf16.mxu0 0
  %2531 = vmatpush1.bf16.msra.mxu0 0
  %2532 = vmatprep.subr.bf16.mxu0 0
  %2533 = vmatpush1.bf16.msra.mxu0 0
  %2534 = vmatprep.subr.bf16.mxu0 0
  %2535 = vmatpush1.bf16.msra.mxu0 0
  %2536 = vmatprep.subr.bf16.mxu0 0
  %2537 = vmatpush1.bf16.msra.mxu0 0
  %2538 = vmatprep.subr.bf16.mxu0 0
  %2539 = vmatpush1.bf16.msra.mxu0 0
  %2540 = vmatprep.subr.bf16.mxu0 0
  %2541 = vmatpush1.bf16.msra.mxu0 0
  %2542 = vmatprep.subr.bf16.mxu0 0
  %2543 = vmatpush1.bf16.msra.mxu0 0
  %2544 = vmatprep.subr.bf16.mxu0 0
  %2545 = vmatpush1.bf16.msra.mxu0 0
  %2546 = vmatprep.subr.bf16.mxu0 0
  %2547 = vmatpush1.bf16.msra.mxu0 0
  %2548 = vmatprep.subr.bf16.mxu0 0
  %2549 = vmatpush1.bf16.msra.mxu0 0
  %2550 = vmatprep.subr.bf16.mxu0 0
  %2551 = vmatpush1.bf16.msra.mxu0 0
  %2552 = vmatprep.subr.bf16.mxu0 0
  %2553 = vmatpush1.bf16.msra.mxu0 0
  %2554 = vmatprep.mubr.bf16.mxu0 0
  %2555 = vmatmul.mubr.bf16.gmra.mrb[0].mxu0 %v2517
  %v2556 = vpop.f32.mrb[0].mxu0
  %v2557 = vadd.f32 %v2511, %v2556
  %v2558 = vpop.f32.mrb[0].mxu0
  %v2559 = vpop.f32.mrb[0].mxu0
  %v2560 = vpop.f32.mrb[0].mxu0
  %2561 = vdwg.mxu0
  %v2562 = vpack.c.bf16 %v1112, %v1112
  %v2563 = vmul.f32 %v928, %v1120
  %v2564 = vpack.c.bf16 %v2563, %v2563
  %2565 = vmatprep.subr.bf16.mxu0 0
  %2566 = vmatpush1.bf16.xpose.msra.mxu0 %v2562
  %2567 = vmatprep.subr.bf16.mxu0 0
  %2568 = vmatpush1.bf16.xpose.msra.mxu0 0
  %2569 = vmatprep.subr.bf16.mxu0 0
  %2570 = vmatpush1.bf16.xpose.msra.mxu0 0
  %2571 = vmatprep.subr.bf16.mxu0 0
  %2572 = vmatpush1.bf16.xpose.msra.mxu0 0
  %2573 = vmatprep.subr.bf16.mxu0 0
  %2574 = vmatpush1.bf16.xpose.msra.mxu0 0
  %2575 = vmatprep.subr.bf16.mxu0 0
  %2576 = vmatpush1.bf16.xpose.msra.mxu0 0
  %2577 = vmatprep.subr.bf16.mxu0 0
  %2578 = vmatpush1.bf16.xpose.msra.mxu0 0
  %2579 = vmatprep.subr.bf16.mxu0 0
  %2580 = vmatpush1.bf16.xpose.msra.mxu0 0
  %2581 = vmatprep.subr.bf16.mxu0 0
  %2582 = vmatpush1.bf16.xpose.msra.mxu0 0
  %2583 = vmatprep.subr.bf16.mxu0 0
  %2584 = vmatpush1.bf16.xpose.msra.mxu0 0
  %2585 = vmatprep.subr.bf16.mxu0 0
  %2586 = vmatpush1.bf16.xpose.msra.mxu0 0
  %2587 = vmatprep.subr.bf16.mxu0 0
  %2588 = vmatpush1.bf16.xpose.msra.mxu0 0
  %2589 = vmatprep.subr.bf16.mxu0 0
  %2590 = vmatpush1.bf16.xpose.msra.mxu0 0
  %2591 = vmatprep.subr.bf16.mxu0 0
  %2592 = vmatpush1.bf16.xpose.msra.mxu0 0
  %2593 = vmatprep.subr.bf16.mxu0 0
  %2594 = vmatpush1.bf16.xpose.msra.mxu0 0
  %2595 = vmatprep.subr.bf16.mxu0 0
  %2596 = vmatpush1.bf16.xpose.msra.mxu0 0
  %2597 = vmatprep.mubr.bf16.mxu0 0
  %2598 = vmatmul.mubr.bf16.gmra.mrb[0].mxu0 %v2564
  %v2599 = vpop.f32.mrb[0].mxu0
  %v2600 = vadd.f32 0.0, %v2599
  %v2601 = vpop.f32.mrb[0].mxu0
  %v2602 = vpop.f32.mrb[0].mxu0
  %v2603 = vpop.f32.mrb[0].mxu0
  %2604 = vdwg.mxu0
  %v2605 = vsel %vm1168, %v2600, -inf
  %2606 = vmax.xlane.f32.xlu0 %v2605
  %v2607 = vpop.xlane.xlu0 %2606
  %v2608 = vsub.f32 %v2600, %v2607
  %v2609 = vmul.f32 %v2608, 1.442695
  %v2610 = vpow.pop %v2609
  %v2611 = vsel %vm1168, %v2610, 0.0
  %2612 = vadd.xlane.f32.xlu0 %v2611
  %v2613 = vpop.xlane.xlu0 %2612
  %v2614 = vrcp.pop %v2613
  %v2615 = vmul.f32 %v2610, %v2614
  %v2616 = vmul.f32 %v1114, %v1120
  %v2617 = vpack.c.bf16 %v2616, %v2616
  %v2618 = vpack.c.bf16 %v2615, %v2615
  %v2619 = vmul.f32 %v928, %v1124
  %v2620 = vpack.c.bf16 %v2619, %v2619
  %2621 = vmatprep.subr.bf16.mxu0 0
  %2622 = vmatpush1.bf16.xpose.msra.mxu0 %v2562
  %2623 = vmatprep.subr.bf16.mxu0 0
  %2624 = vmatpush1.bf16.xpose.msra.mxu0 0
  %2625 = vmatprep.subr.bf16.mxu0 0
  %2626 = vmatpush1.bf16.xpose.msra.mxu0 0
  %2627 = vmatprep.subr.bf16.mxu0 0
  %2628 = vmatpush1.bf16.xpose.msra.mxu0 0
  %2629 = vmatprep.subr.bf16.mxu0 0
  %2630 = vmatpush1.bf16.xpose.msra.mxu0 0
  %2631 = vmatprep.subr.bf16.mxu0 0
  %2632 = vmatpush1.bf16.xpose.msra.mxu0 0
  %2633 = vmatprep.subr.bf16.mxu0 0
  %2634 = vmatpush1.bf16.xpose.msra.mxu0 0
  %2635 = vmatprep.subr.bf16.mxu0 0
  %2636 = vmatpush1.bf16.xpose.msra.mxu0 0
  %2637 = vmatprep.subr.bf16.mxu0 0
  %2638 = vmatpush1.bf16.xpose.msra.mxu0 0
  %2639 = vmatprep.subr.bf16.mxu0 0
  %2640 = vmatpush1.bf16.xpose.msra.mxu0 0
  %2641 = vmatprep.subr.bf16.mxu0 0
  %2642 = vmatpush1.bf16.xpose.msra.mxu0 0
  %2643 = vmatprep.subr.bf16.mxu0 0
  %2644 = vmatpush1.bf16.xpose.msra.mxu0 0
  %2645 = vmatprep.subr.bf16.mxu0 0
  %2646 = vmatpush1.bf16.xpose.msra.mxu0 0
  %2647 = vmatprep.subr.bf16.mxu0 0
  %2648 = vmatpush1.bf16.xpose.msra.mxu0 0
  %2649 = vmatprep.subr.bf16.mxu0 0
  %2650 = vmatpush1.bf16.xpose.msra.mxu0 0
  %2651 = vmatprep.subr.bf16.mxu0 0
  %2652 = vmatpush1.bf16.xpose.msra.mxu0 0
  %2653 = vmatprep.mubr.bf16.mxu0 0
  %2654 = vmatmul.mubr.bf16.gmra.mrb[0].mxu0 %v2620
  %v2655 = vpop.f32.mrb[0].mxu0
  %v2656 = vadd.f32 0.0, %v2655
  %v2657 = vpop.f32.mrb[0].mxu0
  %v2658 = vpop.f32.mrb[0].mxu0
  %v2659 = vpop.f32.mrb[0].mxu0
  %2660 = vdwg.mxu0
  %v2661 = vsel %vm1168, %v2656, -inf
  %2662 = vmax.xlane.f32.xlu0 %v2661
  %v2663 = vpop.xlane.xlu0 %2662
  %v2664 = vsub.f32 %v2656, %v2663
  %v2665 = vmul.f32 %v2664, 1.442695
  %v2666 = vpow.pop %v2665
  %v2667 = vsel %vm1168, %v2666, 0.0
  %2668 = vadd.xlane.f32.xlu0 %v2667
  %v2669 = vpop.xlane.xlu0 %2668
  %v2670 = vrcp.pop %v2669
  %v2671 = vmul.f32 %v2666, %v2670
  %v2672 = vmul.f32 %v1114, %v1124
  %v2673 = vpack.c.bf16 %v2672, %v2672
  %v2674 = vpack.c.bf16 %v2671, %v2671
  %v2676 = vsel %vm1168, %v2674, 0
  %v2679 = vsel %vm1242, %v2673, 0
  %2681 = vmatprep.subr.bf16.mxu0 0
  %2682 = vmatpush1.bf16.msra.mxu0 %v2679
  %2683 = vmatprep.subr.bf16.mxu0 0
  %2684 = vmatpush1.bf16.msra.mxu0 0
  %2685 = vmatprep.subr.bf16.mxu0 0
  %2686 = vmatpush1.bf16.msra.mxu0 0
  %2687 = vmatprep.subr.bf16.mxu0 0
  %2688 = vmatpush1.bf16.msra.mxu0 0
  %2689 = vmatprep.subr.bf16.mxu0 0
  %2690 = vmatpush1.bf16.msra.mxu0 0
  %2691 = vmatprep.subr.bf16.mxu0 0
  %2692 = vmatpush1.bf16.msra.mxu0 0
  %2693 = vmatprep.subr.bf16.mxu0 0
  %2694 = vmatpush1.bf16.msra.mxu0 0
  %2695 = vmatprep.subr.bf16.mxu0 0
  %2696 = vmatpush1.bf16.msra.mxu0 0
  %2697 = vmatprep.subr.bf16.mxu0 0
  %2698 = vmatpush1.bf16.msra.mxu0 0
  %2699 = vmatprep.subr.bf16.mxu0 0
  %2700 = vmatpush1.bf16.msra.mxu0 0
  %2701 = vmatprep.subr.bf16.mxu0 0
  %2702 = vmatpush1.bf16.msra.mxu0 0
  %2703 = vmatprep.subr.bf16.mxu0 0
  %2704 = vmatpush1.bf16.msra.mxu0 0
  %2705 = vmatprep.subr.bf16.mxu0 0
  %2706 = vmatpush1.bf16.msra.mxu0 0
  %2707 = vmatprep.subr.bf16.mxu0 0
  %2708 = vmatpush1.bf16.msra.mxu0 0
  %2709 = vmatprep.subr.bf16.mxu0 0
  %2710 = vmatpush1.bf16.msra.mxu0 0
  %2711 = vmatprep.subr.bf16.mxu0 0
  %2712 = vmatpush1.bf16.msra.mxu0 0
  %2713 = vmatprep.mubr.bf16.mxu0 0
  %2714 = vmatmul.mubr.bf16.gmra.mrb[0].mxu0 %v2676
  %v2715 = vpop.f32.mrb[0].mxu0
  %v2716 = vadd.f32 0.0, %v2715
  %v2717 = vpop.f32.mrb[0].mxu0
  %v2718 = vpop.f32.mrb[0].mxu0
  %v2719 = vpop.f32.mrb[0].mxu0
  %2720 = vdwg.mxu0
  %v2722 = vsel %vm1168, %v2618, 0
  %v2725 = vsel %vm1242, %v2617, 0
  %2727 = vmatprep.subr.bf16.mxu0 0
  %2728 = vmatpush1.bf16.msra.mxu0 %v2725
  %2729 = vmatprep.subr.bf16.mxu0 0
  %2730 = vmatpush1.bf16.msra.mxu0 0
  %2731 = vmatprep.subr.bf16.mxu0 0
  %2732 = vmatpush1.bf16.msra.mxu0 0
  %2733 = vmatprep.subr.bf16.mxu0 0
  %2734 = vmatpush1.bf16.msra.mxu0 0
  %2735 = vmatprep.subr.bf16.mxu0 0
  %2736 = vmatpush1.bf16.msra.mxu0 0
  %2737 = vmatprep.subr.bf16.mxu0 0
  %2738 = vmatpush1.bf16.msra.mxu0 0
  %2739 = vmatprep.subr.bf16.mxu0 0
  %2740 = vmatpush1.bf16.msra.mxu0 0
  %2741 = vmatprep.subr.bf16.mxu0 0
  %2742 = vmatpush1.bf16.msra.mxu0 0
  %2743 = vmatprep.subr.bf16.mxu0 0
  %2744 = vmatpush1.bf16.msra.mxu0 0
  %2745 = vmatprep.subr.bf16.mxu0 0
  %2746 = vmatpush1.bf16.msra.mxu0 0
  %2747 = vmatprep.subr.bf16.mxu0 0
  %2748 = vmatpush1.bf16.msra.mxu0 0
  %2749 = vmatprep.subr.bf16.mxu0 0
  %2750 = vmatpush1.bf16.msra.mxu0 0
  %2751 = vmatprep.subr.bf16.mxu0 0
  %2752 = vmatpush1.bf16.msra.mxu0 0
  %2753 = vmatprep.subr.bf16.mxu0 0
  %2754 = vmatpush1.bf16.msra.mxu0 0
  %2755 = vmatprep.subr.bf16.mxu0 0
  %2756 = vmatpush1.bf16.msra.mxu0 0
  %2757 = vmatprep.subr.bf16.mxu0 0
  %2758 = vmatpush1.bf16.msra.mxu0 0
  %2759 = vmatprep.mubr.bf16.mxu0 0
  %2760 = vmatmul.mubr.bf16.gmra.mrb[0].mxu0 %v2722
  %v2761 = vpop.f32.mrb[0].mxu0
  %v2762 = vadd.f32 %v2716, %v2761
  %v2763 = vpop.f32.mrb[0].mxu0
  %v2764 = vpop.f32.mrb[0].mxu0
  %v2765 = vpop.f32.mrb[0].mxu0
  %2766 = vdwg.mxu0
  %v2767 = vpack.c.bf16 %v1532, %v1327
  %v2768 = vpack.c.bf16 %v1942, %v1737
  %v2769 = vpack.c.bf16 %v2352, %v2147
  %v2770 = vpack.c.bf16 %v2762, %v2557
  %v2771 = vld [vmem:[%s14] sm:$0xf]
  %v2772 = vld [vmem:[%s14 + $0x4] sm:$0xf]
  %v2773 = vld [vmem:[%s14 + $0x8] sm:$0xf]
  %v2774 = vld [vmem:[%s14 + $0xc] sm:$0xf]
  %v2775 = vld [vmem:[%s14 + $0x10] sm:$0xf]
  %v2776 = vld [vmem:[%s14 + $0x14] sm:$0xf]
  %v2777 = vld [vmem:[%s14 + $0x18] sm:$0xf]
  %v2778 = vld [vmem:[%s14 + $0x1c] sm:$0xf]
  %v2779 = vld [vmem:[%s14 + $0x20] sm:$0xf]
  %v2780 = vld [vmem:[%s14 + $0x24] sm:$0xf]
  %v2781 = vld [vmem:[%s14 + $0x28] sm:$0xf]
  %v2782 = vld [vmem:[%s14 + $0x2c] sm:$0xf]
  %v2783 = vld [vmem:[%s14 + $0x30] sm:$0xf]
  %v2784 = vld [vmem:[%s14 + $0x34] sm:$0xf]
  %v2785 = vld [vmem:[%s14 + $0x38] sm:$0xf]
  %v2786 = vld [vmem:[%s14 + $0x3c] sm:$0xf]
  %v2787 = vld [vmem:[%s15] sm:$0x1]
  %v2789 = vlaneseq
  %v2790 = vshrl.u32 %v2789, 7
  %v2791 = vsub.s32 0, %v2790
  %v2792 = vrot.slane %v2787, %v2791
  %v2810 = vunpack.c.l.b16 %v2771
  %v2811 = vunpack.c.l.b16 %v2772
  %v2812 = vunpack.c.l.b16 %v2773
  %v2813 = vunpack.c.l.b16 %v2774
  %v2814 = vunpack.c.l.b16 %v2775
  %v2815 = vunpack.c.l.b16 %v2776
  %v2816 = vunpack.c.l.b16 %v2777
  %v2817 = vunpack.c.l.b16 %v2778
  %v2818 = vunpack.c.l.b16 %v2779
  %v2819 = vunpack.c.l.b16 %v2780
  %v2820 = vunpack.c.l.b16 %v2781
  %v2821 = vunpack.c.l.b16 %v2782
  %v2822 = vunpack.c.l.b16 %v2783
  %v2823 = vunpack.c.l.b16 %v2784
  %v2824 = vunpack.c.l.b16 %v2785
  %v2825 = vunpack.c.l.b16 %v2786
  %v2826 = vpack.c.b16 %v2811, %v2810
  %v2827 = vpack.c.b16 %v2813, %v2812
  %v2828 = vpack.c.b16 %v2815, %v2814
  %v2829 = vpack.c.b16 %v2817, %v2816
  %v2830 = vpack.c.b16 %v2819, %v2818
  %v2831 = vpack.c.b16 %v2821, %v2820
  %v2832 = vpack.c.b16 %v2823, %v2822
  %v2833 = vpack.c.b16 %v2825, %v2824
  %2842 = vmatprep.subr.bf16.mxu0 0
  %2843 = vmatpush1.bf16.msra.mxu0 %v2826
  %2844 = vmatprep.subr.bf16.mxu0 0
  %2845 = vmatpush1.bf16.msra.mxu0 %v2827
  %2846 = vmatprep.subr.bf16.mxu0 0
  %2847 = vmatpush1.bf16.msra.mxu0 %v2828
  %2848 = vmatprep.subr.bf16.mxu0 0
  %2849 = vmatpush1.bf16.msra.mxu0 %v2829
  %2850 = vmatprep.subr.bf16.mxu0 0
  %2851 = vmatpush1.bf16.msra.mxu0 %v2830
  %2852 = vmatprep.subr.bf16.mxu0 0
  %2853 = vmatpush1.bf16.msra.mxu0 %v2831
  %2854 = vmatprep.subr.bf16.mxu0 0
  %2855 = vmatpush1.bf16.msra.mxu0 %v2832
  %2856 = vmatprep.subr.bf16.mxu0 0
  %2857 = vmatpush1.bf16.msra.mxu0 %v2833
  %2858 = vmatprep.subr.bf16.mxu0 0
  %2859 = vmatpush1.bf16.msra.mxu0 0
  %2860 = vmatprep.subr.bf16.mxu0 0
  %2861 = vmatpush1.bf16.msra.mxu0 0
  %2862 = vmatprep.subr.bf16.mxu0 0
  %2863 = vmatpush1.bf16.msra.mxu0 0
  %2864 = vmatprep.subr.bf16.mxu0 0
  %2865 = vmatpush1.bf16.msra.mxu0 0
  %2866 = vmatprep.subr.bf16.mxu0 0
  %2867 = vmatpush1.bf16.msra.mxu0 0
  %2868 = vmatprep.subr.bf16.mxu0 0
  %2869 = vmatpush1.bf16.msra.mxu0 0
  %2870 = vmatprep.subr.bf16.mxu0 0
  %2871 = vmatpush1.bf16.msra.mxu0 0
  %2872 = vmatprep.subr.bf16.mxu0 0
  %2873 = vmatpush1.bf16.msra.mxu0 0
  %2874 = vmatprep.mubr.bf16.mxu0 0
  %2875 = vmatmul.mubr.bf16.gmra.mrb[0].mxu0 %v2767
  %v2876 = vpop.f32.mrb[0].mxu0
  %v2877 = vadd.f32 %v2792, %v2876
  %v2878 = vpop.f32.mrb[0].mxu0
  %v2879 = vpop.f32.mrb[0].mxu0
  %v2880 = vadd.f32 %v2792, %v2879
  %v2881 = vpop.f32.mrb[0].mxu0
  %2882 = vmatprep.mubr.bf16.mxu0 0
  %2883 = vmatmul.mubr.bf16.gmra.mrb[0].mxu0 %v2768
  %v2884 = vpop.f32.mrb[0].mxu0
  %v2885 = vadd.f32 %v2792, %v2884
  %v2886 = vpop.f32.mrb[0].mxu0
  %v2887 = vpop.f32.mrb[0].mxu0
  %v2888 = vadd.f32 %v2792, %v2887
  %v2889 = vpop.f32.mrb[0].mxu0
  %2890 = vmatprep.mubr.bf16.mxu0 0
  %2891 = vmatmul.mubr.bf16.gmra.mrb[0].mxu0 %v2769
  %v2892 = vpop.f32.mrb[0].mxu0
  %v2893 = vadd.f32 %v2792, %v2892
  %v2894 = vpop.f32.mrb[0].mxu0
  %v2895 = vpop.f32.mrb[0].mxu0
  %v2896 = vadd.f32 %v2792, %v2895
  %v2897 = vpop.f32.mrb[0].mxu0
  %2898 = vmatprep.mubr.bf16.mxu0 0
  %2899 = vmatmul.mubr.bf16.gmra.mrb[0].mxu0 %v2770
  %v2900 = vpop.f32.mrb[0].mxu0
  %v2901 = vadd.f32 %v2792, %v2900
  %v2902 = vpop.f32.mrb[0].mxu0
  %v2903 = vpop.f32.mrb[0].mxu0
  %v2904 = vadd.f32 %v2792, %v2903
  %v2905 = vpop.f32.mrb[0].mxu0
  %2906 = vdwg.mxu0
  %v2907 = vadd.f32 %v2877, %v621
  %v2908 = vadd.f32 %v2880, %v624
  %v2909 = vadd.f32 %v2885, %v629
  %v2910 = vadd.f32 %v2888, %v632
  %v2911 = vadd.f32 %v2893, %v637
  %v2912 = vadd.f32 %v2896, %v640
  %v2913 = vadd.f32 %v2901, %v645
  %v2914 = vadd.f32 %v2904, %v648
  %2915 = vadd.xlane.f32.xlu0 %v2907
  %v2916 = vpop.xlane.xlu0 %2915
  %2917 = vadd.xlane.f32.xlu0 %v2908
  %v2918 = vpop.xlane.xlu0 %2917
  %2919 = vadd.xlane.f32.xlu0 %v2909
  %v2920 = vpop.xlane.xlu0 %2919
  %2921 = vadd.xlane.f32.xlu0 %v2910
  %v2922 = vpop.xlane.xlu0 %2921
  %2923 = vadd.xlane.f32.xlu0 %v2911
  %v2924 = vpop.xlane.xlu0 %2923
  %2925 = vadd.xlane.f32.xlu0 %v2912
  %v2926 = vpop.xlane.xlu0 %2925
  %2927 = vadd.xlane.f32.xlu0 %v2913
  %v2928 = vpop.xlane.xlu0 %2927
  %2929 = vadd.xlane.f32.xlu0 %v2914
  %v2930 = vpop.xlane.xlu0 %2929
  %v2931 = vmul.f32 %v2916, 0.03125
  %v2932 = vmul.f32 %v2918, 0.03125
  %v2933 = vmul.f32 %v2920, 0.03125
  %v2934 = vmul.f32 %v2922, 0.03125
  %v2935 = vmul.f32 %v2924, 0.03125
  %v2936 = vmul.f32 %v2926, 0.03125
  %v2937 = vmul.f32 %v2928, 0.03125
  %v2938 = vmul.f32 %v2930, 0.03125
  %v2939 = vsub.f32 %v2907, %v2931
  %v2940 = vsub.f32 %v2908, %v2932
  %v2941 = vsub.f32 %v2909, %v2933
  %v2942 = vsub.f32 %v2910, %v2934
  %v2943 = vsub.f32 %v2911, %v2935
  %v2944 = vsub.f32 %v2912, %v2936
  %v2945 = vsub.f32 %v2913, %v2937
  %v2946 = vsub.f32 %v2914, %v2938
  %v2947 = vmul.f32 %v2939, %v2939
  %v2948 = vmul.f32 %v2940, %v2940
  %v2949 = vmul.f32 %v2941, %v2941
  %v2950 = vmul.f32 %v2942, %v2942
  %v2951 = vmul.f32 %v2943, %v2943
  %v2952 = vmul.f32 %v2944, %v2944
  %v2953 = vmul.f32 %v2945, %v2945
  %v2954 = vmul.f32 %v2946, %v2946
  %v2955 = vmul.f32 %v2947, %v94
  %v2956 = vmul.f32 %v2948, %v94
  %v2957 = vmul.f32 %v2949, %v94
  %v2958 = vmul.f32 %v2950, %v94
  %v2959 = vmul.f32 %v2951, %v94
  %v2960 = vmul.f32 %v2952, %v94
  %v2961 = vmul.f32 %v2953, %v94
  %v2962 = vmul.f32 %v2954, %v94
  %2963 = vadd.xlane.f32.xlu0 %v2955
  %v2964 = vpop.xlane.xlu0 %2963
  %2965 = vadd.xlane.f32.xlu0 %v2956
  %v2966 = vpop.xlane.xlu0 %2965
  %2967 = vadd.xlane.f32.xlu0 %v2957
  %v2968 = vpop.xlane.xlu0 %2967
  %2969 = vadd.xlane.f32.xlu0 %v2958
  %v2970 = vpop.xlane.xlu0 %2969
  %2971 = vadd.xlane.f32.xlu0 %v2959
  %v2972 = vpop.xlane.xlu0 %2971
  %2973 = vadd.xlane.f32.xlu0 %v2960
  %v2974 = vpop.xlane.xlu0 %2973
  %2975 = vadd.xlane.f32.xlu0 %v2961
  %v2976 = vpop.xlane.xlu0 %2975
  %2977 = vadd.xlane.f32.xlu0 %v2962
  %v2978 = vpop.xlane.xlu0 %2977
  %v2979 = vmul.f32 %v2964, 0.03125
  %v2980 = vmul.f32 %v2966, 0.03125
  %v2981 = vmul.f32 %v2968, 0.03125
  %v2982 = vmul.f32 %v2970, 0.03125
  %v2983 = vmul.f32 %v2972, 0.03125
  %v2984 = vmul.f32 %v2974, 0.03125
  %v2985 = vmul.f32 %v2976, 0.03125
  %v2986 = vmul.f32 %v2978, 0.03125
  %v2987 = vadd.f32 %v2979, 1e-05
  %v2988 = vadd.f32 %v2980, 1e-05
  %v2989 = vadd.f32 %v2981, 1e-05
  %v2990 = vadd.f32 %v2982, 1e-05
  %v2991 = vadd.f32 %v2983, 1e-05
  %v2992 = vadd.f32 %v2984, 1e-05
  %v2993 = vadd.f32 %v2985, 1e-05
  %v2994 = vadd.f32 %v2986, 1e-05
  %v2995 = vrsqrt.pop %v2987
  %v2996 = vrsqrt.pop %v2988
  %v2997 = vrsqrt.pop %v2989
  %v2998 = vrsqrt.pop %v2990
  %v2999 = vrsqrt.pop %v2991
  %v3000 = vrsqrt.pop %v2992
  %v3001 = vrsqrt.pop %v2993
  %v3002 = vrsqrt.pop %v2994
  %v3003 = vmul.f32 %v2939, %v2995
  %v3004 = vmul.f32 %v2940, %v2996
  %v3005 = vmul.f32 %v2941, %v2997
  %v3006 = vmul.f32 %v2942, %v2998
  %v3007 = vmul.f32 %v2943, %v2999
  %v3008 = vmul.f32 %v2944, %v3000
  %v3009 = vmul.f32 %v2945, %v3001
  %v3010 = vmul.f32 %v2946, %v3002
  %v3011 = vld [vmem:[%s16] sm:$0x1]
  %v3013 = vlaneseq
  %v3014 = vshrl.u32 %v3013, 7
  %v3015 = vsub.s32 0, %v3014
  %v3016 = vrot.slane %v3011, %v3015
  %v3018 = vmul.f32 %v3003, %v3016
  %v3019 = vmul.f32 %v3004, %v3016
  %v3020 = vmul.f32 %v3005, %v3016
  %v3021 = vmul.f32 %v3006, %v3016
  %v3022 = vmul.f32 %v3007, %v3016
  %v3023 = vmul.f32 %v3008, %v3016
  %v3024 = vmul.f32 %v3009, %v3016
  %v3025 = vmul.f32 %v3010, %v3016
  %v3026 = vld [vmem:[%s17] sm:$0x1]
  %v3028 = vlaneseq
  %v3029 = vshrl.u32 %v3028, 7
  %v3030 = vsub.s32 0, %v3029
  %v3031 = vrot.slane %v3026, %v3030
  %v3033 = vadd.f32 %v3018, %v3031
  %v3034 = vadd.f32 %v3019, %v3031
  %v3035 = vadd.f32 %v3020, %v3031
  %v3036 = vadd.f32 %v3021, %v3031
  %v3037 = vadd.f32 %v3022, %v3031
  %v3038 = vadd.f32 %v3023, %v3031
  %v3039 = vadd.f32 %v3024, %v3031
  %v3040 = vadd.f32 %v3025, %v3031
  %v3041 = vpack.c.bf16 %v3034, %v3033
  %v3042 = vpack.c.bf16 %v3036, %v3035
  %v3043 = vpack.c.bf16 %v3038, %v3037
  %v3044 = vpack.c.bf16 %v3040, %v3039
  %v3045 = vld [vmem:[%s18] sm:$0xf]
  %v3046 = vld [vmem:[%s18 + $0x4] sm:$0xf]
  %v3047 = vld [vmem:[%s18 + $0x8] sm:$0xf]
  %v3048 = vld [vmem:[%s18 + $0xc] sm:$0xf]
  %v3049 = vld [vmem:[%s18 + $0x10] sm:$0xf]
  %v3050 = vld [vmem:[%s18 + $0x14] sm:$0xf]
  %v3051 = vld [vmem:[%s18 + $0x18] sm:$0xf]
  %v3052 = vld [vmem:[%s18 + $0x1c] sm:$0xf]
  %v3053 = vld [vmem:[%s18 + $0x20] sm:$0xf]
  %v3054 = vld [vmem:[%s18 + $0x24] sm:$0xf]
  %v3055 = vld [vmem:[%s18 + $0x28] sm:$0xf]
  %v3056 = vld [vmem:[%s18 + $0x2c] sm:$0xf]
  %v3057 = vld [vmem:[%s18 + $0x30] sm:$0xf]
  %v3058 = vld [vmem:[%s18 + $0x34] sm:$0xf]
  %v3059 = vld [vmem:[%s18 + $0x38] sm:$0xf]
  %v3060 = vld [vmem:[%s18 + $0x3c] sm:$0xf]
  %v3061 = vld [vmem:[%s19] sm:$0x1]
  %v3063 = vlaneseq
  %v3064 = vshrl.u32 %v3063, 7
  %v3065 = vsub.s32 0, %v3064
  %v3066 = vrot.slane %v3061, %v3065
  %v3084 = vunpack.c.l.b16 %v3045
  %v3085 = vunpack.c.l.b16 %v3046
  %v3086 = vunpack.c.l.b16 %v3047
  %v3087 = vunpack.c.l.b16 %v3048
  %v3088 = vunpack.c.l.b16 %v3049
  %v3089 = vunpack.c.l.b16 %v3050
  %v3090 = vunpack.c.l.b16 %v3051
  %v3091 = vunpack.c.l.b16 %v3052
  %v3092 = vunpack.c.l.b16 %v3053
  %v3093 = vunpack.c.l.b16 %v3054
  %v3094 = vunpack.c.l.b16 %v3055
  %v3095 = vunpack.c.l.b16 %v3056
  %v3096 = vunpack.c.l.b16 %v3057
  %v3097 = vunpack.c.l.b16 %v3058
  %v3098 = vunpack.c.l.b16 %v3059
  %v3099 = vunpack.c.l.b16 %v3060
  %v3100 = vpack.c.b16 %v3085, %v3084
  %v3101 = vpack.c.b16 %v3087, %v3086
  %v3102 = vpack.c.b16 %v3089, %v3088
  %v3103 = vpack.c.b16 %v3091, %v3090
  %v3104 = vpack.c.b16 %v3093, %v3092
  %v3105 = vpack.c.b16 %v3095, %v3094
  %v3106 = vpack.c.b16 %v3097, %v3096
  %v3107 = vpack.c.b16 %v3099, %v3098
  %3116 = vmatprep.subr.bf16.mxu0 0
  %3117 = vmatpush1.bf16.msra.mxu0 %v3100
  %3118 = vmatprep.subr.bf16.mxu0 0
  %3119 = vmatpush1.bf16.msra.mxu0 %v3101
  %3120 = vmatprep.subr.bf16.mxu0 0
  %3121 = vmatpush1.bf16.msra.mxu0 %v3102
  %3122 = vmatprep.subr.bf16.mxu0 0
  %3123 = vmatpush1.bf16.msra.mxu0 %v3103
  %3124 = vmatprep.subr.bf16.mxu0 0
  %3125 = vmatpush1.bf16.msra.mxu0 %v3104
  %3126 = vmatprep.subr.bf16.mxu0 0
  %3127 = vmatpush1.bf16.msra.mxu0 %v3105
  %3128 = vmatprep.subr.bf16.mxu0 0
  %3129 = vmatpush1.bf16.msra.mxu0 %v3106
  %3130 = vmatprep.subr.bf16.mxu0 0
  %3131 = vmatpush1.bf16.msra.mxu0 %v3107
  %3132 = vmatprep.subr.bf16.mxu0 0
  %3133 = vmatpush1.bf16.msra.mxu0 0
  %3134 = vmatprep.subr.bf16.mxu0 0
  %3135 = vmatpush1.bf16.msra.mxu0 0
  %3136 = vmatprep.subr.bf16.mxu0 0
  %3137 = vmatpush1.bf16.msra.mxu0 0
  %3138 = vmatprep.subr.bf16.mxu0 0
  %3139 = vmatpush1.bf16.msra.mxu0 0
  %3140 = vmatprep.subr.bf16.mxu0 0
  %3141 = vmatpush1.bf16.msra.mxu0 0
  %3142 = vmatprep.subr.bf16.mxu0 0
  %3143 = vmatpush1.bf16.msra.mxu0 0
  %3144 = vmatprep.subr.bf16.mxu0 0
  %3145 = vmatpush1.bf16.msra.mxu0 0
  %3146 = vmatprep.subr.bf16.mxu0 0
  %3147 = vmatpush1.bf16.msra.mxu0 0
  %3148 = vmatprep.mubr.bf16.mxu0 0
  %3149 = vmatmul.mubr.bf16.gmra.mrb[0].mxu0 %v3041
  %v3150 = vpop.f32.mrb[0].mxu0
  %v3151 = vadd.f32 %v3066, %v3150
  %v3152 = vpop.f32.mrb[0].mxu0
  %v3153 = vpop.f32.mrb[0].mxu0
  %v3154 = vadd.f32 %v3066, %v3153
  %v3155 = vpop.f32.mrb[0].mxu0
  %3156 = vmatprep.mubr.bf16.mxu0 0
  %3157 = vmatmul.mubr.bf16.gmra.mrb[0].mxu0 %v3042
  %v3158 = vpop.f32.mrb[0].mxu0
  %v3159 = vadd.f32 %v3066, %v3158
  %v3160 = vpop.f32.mrb[0].mxu0
  %v3161 = vpop.f32.mrb[0].mxu0
  %v3162 = vadd.f32 %v3066, %v3161
  %v3163 = vpop.f32.mrb[0].mxu0
  %3164 = vmatprep.mubr.bf16.mxu0 0
  %3165 = vmatmul.mubr.bf16.gmra.mrb[0].mxu0 %v3043
  %v3166 = vpop.f32.mrb[0].mxu0
  %v3167 = vadd.f32 %v3066, %v3166
  %v3168 = vpop.f32.mrb[0].mxu0
  %v3169 = vpop.f32.mrb[0].mxu0
  %v3170 = vadd.f32 %v3066, %v3169
  %v3171 = vpop.f32.mrb[0].mxu0
  %3172 = vmatprep.mubr.bf16.mxu0 0
  %3173 = vmatmul.mubr.bf16.gmra.mrb[0].mxu0 %v3044
  %v3174 = vpop.f32.mrb[0].mxu0
  %v3175 = vadd.f32 %v3066, %v3174
  %v3176 = vpop.f32.mrb[0].mxu0
  %v3177 = vpop.f32.mrb[0].mxu0
  %v3178 = vadd.f32 %v3066, %v3177
  %v3179 = vpop.f32.mrb[0].mxu0
  %3180 = vdwg.mxu0
  %v3181 = vmax.f32 %v3151, 0.0
  %v3182 = vmax.f32 %v3154, 0.0
  %v3183 = vmax.f32 %v3159, 0.0
  %v3184 = vmax.f32 %v3162, 0.0
  %v3185 = vmax.f32 %v3167, 0.0
  %v3186 = vmax.f32 %v3170, 0.0
  %v3187 = vmax.f32 %v3175, 0.0
  %v3188 = vmax.f32 %v3178, 0.0
  %v3189 = vpack.c.bf16 %v3182, %v3181
  %v3190 = vpack.c.bf16 %v3184, %v3183
  %v3191 = vpack.c.bf16 %v3186, %v3185
  %v3192 = vpack.c.bf16 %v3188, %v3187
  %v3193 = vld [vmem:[%s20] sm:$0xf]
  %v3194 = vld [vmem:[%s20 + $0x4] sm:$0xf]
  %v3195 = vld [vmem:[%s20 + $0x8] sm:$0xf]
  %v3196 = vld [vmem:[%s20 + $0xc] sm:$0xf]
  %v3197 = vld [vmem:[%s20 + $0x10] sm:$0xf]
  %v3198 = vld [vmem:[%s20 + $0x14] sm:$0xf]
  %v3199 = vld [vmem:[%s20 + $0x18] sm:$0xf]
  %v3200 = vld [vmem:[%s20 + $0x1c] sm:$0xf]
  %v3201 = vld [vmem:[%s20 + $0x20] sm:$0xf]
  %v3202 = vld [vmem:[%s20 + $0x24] sm:$0xf]
  %v3203 = vld [vmem:[%s20 + $0x28] sm:$0xf]
  %v3204 = vld [vmem:[%s20 + $0x2c] sm:$0xf]
  %v3205 = vld [vmem:[%s20 + $0x30] sm:$0xf]
  %v3206 = vld [vmem:[%s20 + $0x34] sm:$0xf]
  %v3207 = vld [vmem:[%s20 + $0x38] sm:$0xf]
  %v3208 = vld [vmem:[%s20 + $0x3c] sm:$0xf]
  %v3209 = vld [vmem:[%s21] sm:$0x1]
  %v3211 = vlaneseq
  %v3212 = vshrl.u32 %v3211, 7
  %v3213 = vsub.s32 0, %v3212
  %v3214 = vrot.slane %v3209, %v3213
  %v3232 = vunpack.c.l.b16 %v3193
  %v3233 = vunpack.c.l.b16 %v3194
  %v3234 = vunpack.c.l.b16 %v3195
  %v3235 = vunpack.c.l.b16 %v3196
  %v3236 = vunpack.c.l.b16 %v3197
  %v3237 = vunpack.c.l.b16 %v3198
  %v3238 = vunpack.c.l.b16 %v3199
  %v3239 = vunpack.c.l.b16 %v3200
  %v3240 = vunpack.c.l.b16 %v3201
  %v3241 = vunpack.c.l.b16 %v3202
  %v3242 = vunpack.c.l.b16 %v3203
  %v3243 = vunpack.c.l.b16 %v3204
  %v3244 = vunpack.c.l.b16 %v3205
  %v3245 = vunpack.c.l.b16 %v3206
  %v3246 = vunpack.c.l.b16 %v3207
  %v3247 = vunpack.c.l.b16 %v3208
  %v3248 = vpack.c.b16 %v3233, %v3232
  %v3249 = vpack.c.b16 %v3235, %v3234
  %v3250 = vpack.c.b16 %v3237, %v3236
  %v3251 = vpack.c.b16 %v3239, %v3238
  %v3252 = vpack.c.b16 %v3241, %v3240
  %v3253 = vpack.c.b16 %v3243, %v3242
  %v3254 = vpack.c.b16 %v3245, %v3244
  %v3255 = vpack.c.b16 %v3247, %v3246
  %3264 = vmatprep.subr.bf16.mxu0 0
  %3265 = vmatpush1.bf16.msra.mxu0 %v3248
  %3266 = vmatprep.subr.bf16.mxu0 0
  %3267 = vmatpush1.bf16.msra.mxu0 %v3249
  %3268 = vmatprep.subr.bf16.mxu0 0
  %3269 = vmatpush1.bf16.msra.mxu0 %v3250
  %3270 = vmatprep.subr.bf16.mxu0 0
  %3271 = vmatpush1.bf16.msra.mxu0 %v3251
  %3272 = vmatprep.subr.bf16.mxu0 0
  %3273 = vmatpush1.bf16.msra.mxu0 %v3252
  %3274 = vmatprep.subr.bf16.mxu0 0
  %3275 = vmatpush1.bf16.msra.mxu0 %v3253
  %3276 = vmatprep.subr.bf16.mxu0 0
  %3277 = vmatpush1.bf16.msra.mxu0 %v3254
  %3278 = vmatprep.subr.bf16.mxu0 0
  %3279 = vmatpush1.bf16.msra.mxu0 %v3255
  %3280 = vmatprep.subr.bf16.mxu0 0
  %3281 = vmatpush1.bf16.msra.mxu0 0
  %3282 = vmatprep.subr.bf16.mxu0 0
  %3283 = vmatpush1.bf16.msra.mxu0 0
  %3284 = vmatprep.subr.bf16.mxu0 0
  %3285 = vmatpush1.bf16.msra.mxu0 0
  %3286 = vmatprep.subr.bf16.mxu0 0
  %3287 = vmatpush1.bf16.msra.mxu0 0
  %3288 = vmatprep.subr.bf16.mxu0 0
  %3289 = vmatpush1.bf16.msra.mxu0 0
  %3290 = vmatprep.subr.bf16.mxu0 0
  %3291 = vmatpush1.bf16.msra.mxu0 0
  %3292 = vmatprep.subr.bf16.mxu0 0
  %3293 = vmatpush1.bf16.msra.mxu0 0
  %3294 = vmatprep.subr.bf16.mxu0 0
  %3295 = vmatpush1.bf16.msra.mxu0 0
  %3296 = vmatprep.mubr.bf16.mxu0 0
  %3297 = vmatmul.mubr.bf16.gmra.mrb[0].mxu0 %v3189
  %v3298 = vpop.f32.mrb[0].mxu0
  %v3299 = vadd.f32 %v3214, %v3298
  %v3300 = vpop.f32.mrb[0].mxu0
  %v3301 = vpop.f32.mrb[0].mxu0
  %v3302 = vadd.f32 %v3214, %v3301
  %v3303 = vpop.f32.mrb[0].mxu0
  %3304 = vmatprep.mubr.bf16.mxu0 0
  %3305 = vmatmul.mubr.bf16.gmra.mrb[0].mxu0 %v3190
  %v3306 = vpop.f32.mrb[0].mxu0
  %v3307 = vadd.f32 %v3214, %v3306
  %v3308 = vpop.f32.mrb[0].mxu0
  %v3309 = vpop.f32.mrb[0].mxu0
  %v3310 = vadd.f32 %v3214, %v3309
  %v3311 = vpop.f32.mrb[0].mxu0
  %3312 = vmatprep.mubr.bf16.mxu0 0
  %3313 = vmatmul.mubr.bf16.gmra.mrb[0].mxu0 %v3191
  %v3314 = vpop.f32.mrb[0].mxu0
  %v3315 = vadd.f32 %v3214, %v3314
  %v3316 = vpop.f32.mrb[0].mxu0
  %v3317 = vpop.f32.mrb[0].mxu0
  %v3318 = vadd.f32 %v3214, %v3317
  %v3319 = vpop.f32.mrb[0].mxu0
  %3320 = vmatprep.mubr.bf16.mxu0 0
  %3321 = vmatmul.mubr.bf16.gmra.mrb[0].mxu0 %v3192
  %v3322 = vpop.f32.mrb[0].mxu0
  %v3323 = vadd.f32 %v3214, %v3322
  %v3324 = vpop.f32.mrb[0].mxu0
  %v3325 = vpop.f32.mrb[0].mxu0
  %v3326 = vadd.f32 %v3214, %v3325
  %v3327 = vpop.f32.mrb[0].mxu0
  %3328 = vdwg.mxu0
  %v3329 = vadd.f32 %v3299, %v3033
  %v3330 = vadd.f32 %v3302, %v3034
  %v3331 = vadd.f32 %v3307, %v3035
  %v3332 = vadd.f32 %v3310, %v3036
  %v3333 = vadd.f32 %v3315, %v3037
  %v3334 = vadd.f32 %v3318, %v3038
  %v3335 = vadd.f32 %v3323, %v3039
  %v3336 = vadd.f32 %v3326, %v3040
  %3337 = vadd.xlane.f32.xlu0 %v3329
  %v3338 = vpop.xlane.xlu0 %3337
  %3339 = vadd.xlane.f32.xlu0 %v3330
  %v3340 = vpop.xlane.xlu0 %3339
  %3341 = vadd.xlane.f32.xlu0 %v3331
  %v3342 = vpop.xlane.xlu0 %3341
  %3343 = vadd.xlane.f32.xlu0 %v3332
  %v3344 = vpop.xlane.xlu0 %3343
  %3345 = vadd.xlane.f32.xlu0 %v3333
  %v3346 = vpop.xlane.xlu0 %3345
  %3347 = vadd.xlane.f32.xlu0 %v3334
  %v3348 = vpop.xlane.xlu0 %3347
  %3349 = vadd.xlane.f32.xlu0 %v3335
  %v3350 = vpop.xlane.xlu0 %3349
  %3351 = vadd.xlane.f32.xlu0 %v3336
  %v3352 = vpop.xlane.xlu0 %3351
  %v3353 = vmul.f32 %v3338, 0.03125
  %v3354 = vmul.f32 %v3340, 0.03125
  %v3355 = vmul.f32 %v3342, 0.03125
  %v3356 = vmul.f32 %v3344, 0.03125
  %v3357 = vmul.f32 %v3346, 0.03125
  %v3358 = vmul.f32 %v3348, 0.03125
  %v3359 = vmul.f32 %v3350, 0.03125
  %v3360 = vmul.f32 %v3352, 0.03125
  %v3361 = vsub.f32 %v3329, %v3353
  %v3362 = vsub.f32 %v3330, %v3354
  %v3363 = vsub.f32 %v3331, %v3355
  %v3364 = vsub.f32 %v3332, %v3356
  %v3365 = vsub.f32 %v3333, %v3357
  %v3366 = vsub.f32 %v3334, %v3358
  %v3367 = vsub.f32 %v3335, %v3359
  %v3368 = vsub.f32 %v3336, %v3360
  %v3369 = vmul.f32 %v3361, %v3361
  %v3370 = vmul.f32 %v3362, %v3362
  %v3371 = vmul.f32 %v3363, %v3363
  %v3372 = vmul.f32 %v3364, %v3364
  %v3373 = vmul.f32 %v3365, %v3365
  %v3374 = vmul.f32 %v3366, %v3366
  %v3375 = vmul.f32 %v3367, %v3367
  %v3376 = vmul.f32 %v3368, %v3368
  %v3377 = vmul.f32 %v3369, %v94
  %v3378 = vmul.f32 %v3370, %v94
  %v3379 = vmul.f32 %v3371, %v94
  %v3380 = vmul.f32 %v3372, %v94
  %v3381 = vmul.f32 %v3373, %v94
  %v3382 = vmul.f32 %v3374, %v94
  %v3383 = vmul.f32 %v3375, %v94
  %v3384 = vmul.f32 %v3376, %v94
  %3385 = vadd.xlane.f32.xlu0 %v3377
  %v3386 = vpop.xlane.xlu0 %3385
  %3387 = vadd.xlane.f32.xlu0 %v3378
  %v3388 = vpop.xlane.xlu0 %3387
  %3389 = vadd.xlane.f32.xlu0 %v3379
  %v3390 = vpop.xlane.xlu0 %3389
  %3391 = vadd.xlane.f32.xlu0 %v3380
  %v3392 = vpop.xlane.xlu0 %3391
  %3393 = vadd.xlane.f32.xlu0 %v3381
  %v3394 = vpop.xlane.xlu0 %3393
  %3395 = vadd.xlane.f32.xlu0 %v3382
  %v3396 = vpop.xlane.xlu0 %3395
  %3397 = vadd.xlane.f32.xlu0 %v3383
  %v3398 = vpop.xlane.xlu0 %3397
  %3399 = vadd.xlane.f32.xlu0 %v3384
  %v3400 = vpop.xlane.xlu0 %3399
  %v3401 = vmul.f32 %v3386, 0.03125
  %v3402 = vmul.f32 %v3388, 0.03125
  %v3403 = vmul.f32 %v3390, 0.03125
  %v3404 = vmul.f32 %v3392, 0.03125
  %v3405 = vmul.f32 %v3394, 0.03125
  %v3406 = vmul.f32 %v3396, 0.03125
  %v3407 = vmul.f32 %v3398, 0.03125
  %v3408 = vmul.f32 %v3400, 0.03125
  %v3409 = vadd.f32 %v3401, 1e-05
  %v3410 = vadd.f32 %v3402, 1e-05
  %v3411 = vadd.f32 %v3403, 1e-05
  %v3412 = vadd.f32 %v3404, 1e-05
  %v3413 = vadd.f32 %v3405, 1e-05
  %v3414 = vadd.f32 %v3406, 1e-05
  %v3415 = vadd.f32 %v3407, 1e-05
  %v3416 = vadd.f32 %v3408, 1e-05
  %v3417 = vrsqrt.pop %v3409
  %v3418 = vrsqrt.pop %v3410
  %v3419 = vrsqrt.pop %v3411
  %v3420 = vrsqrt.pop %v3412
  %v3421 = vrsqrt.pop %v3413
  %v3422 = vrsqrt.pop %v3414
  %v3423 = vrsqrt.pop %v3415
  %v3424 = vrsqrt.pop %v3416
  %v3425 = vmul.f32 %v3361, %v3417
  %v3426 = vmul.f32 %v3362, %v3418
  %v3427 = vmul.f32 %v3363, %v3419
  %v3428 = vmul.f32 %v3364, %v3420
  %v3429 = vmul.f32 %v3365, %v3421
  %v3430 = vmul.f32 %v3366, %v3422
  %v3431 = vmul.f32 %v3367, %v3423
  %v3432 = vmul.f32 %v3368, %v3424
  %v3433 = vld [vmem:[%s22] sm:$0x1]
  %v3435 = vlaneseq
  %v3436 = vshrl.u32 %v3435, 7
  %v3437 = vsub.s32 0, %v3436
  %v3438 = vrot.slane %v3433, %v3437
  %v3440 = vmul.f32 %v3425, %v3438
  %v3441 = vmul.f32 %v3426, %v3438
  %v3442 = vmul.f32 %v3427, %v3438
  %v3443 = vmul.f32 %v3428, %v3438
  %v3444 = vmul.f32 %v3429, %v3438
  %v3445 = vmul.f32 %v3430, %v3438
  %v3446 = vmul.f32 %v3431, %v3438
  %v3447 = vmul.f32 %v3432, %v3438
  %v3448 = vld [vmem:[%s23] sm:$0x1]
  %v3450 = vlaneseq
  %v3451 = vshrl.u32 %v3450, 7
  %v3452 = vsub.s32 0, %v3451
  %v3453 = vrot.slane %v3448, %v3452
  %v3455 = vadd.f32 %v3440, %v3453
  %v3456 = vadd.f32 %v3441, %v3453
  %v3457 = vadd.f32 %v3442, %v3453
  %v3458 = vadd.f32 %v3443, %v3453
  %v3459 = vadd.f32 %v3444, %v3453
  %v3460 = vadd.f32 %v3445, %v3453
  %v3461 = vadd.f32 %v3446, %v3453
  %v3462 = vadd.f32 %v3447, %v3453
  %v3463 = vlaneseq
  %v3464 = vshrl.u32 %v3463, 7
  %v3465 = vmul.u32 %v3464, 8
  %vm3466 = vcmp.ge.s32.totalorder %v91, %v3465
  %v3467 = vadd.s32 %v3465, 4
  %vm3468 = vcmp.lt.s32.totalorder %v91, %v3467
  %vm3469 = vmand %vm3466, %vm3468
  %v3470 = vsel %vm3469, 1, 0
  %v3471 = vcvt.s32.f32 %v3470
  %v3472 = vmul.f32 %v3471, 0.25
  %vm3473 = vcmask 523264
  %v3475 = vsel %vm3473, %v3472, 0
  %3477 = vmatprep.subr.mxu0 0.0
  %3478 = vmatpush1.msra.mxu0 %v3455
  %3479 = vmatprep.subr.mxu0 0.0
  %3480 = vmatpush1.msra.mxu0 %v3456
  %3481 = vmatprep.subr.mxu0 0.0
  %3482 = vmatpush1.msra.mxu0 %v3457
  %3483 = vmatprep.subr.mxu0 0.0
  %3484 = vmatpush1.msra.mxu0 %v3458
  %3485 = vmatprep.subr.mxu0 0.0
  %3486 = vmatpush1.msra.mxu0 %v3459
  %3487 = vmatprep.subr.mxu0 0.0
  %3488 = vmatpush1.msra.mxu0 %v3460
  %3489 = vmatprep.subr.mxu0 0.0
  %3490 = vmatpush1.msra.mxu0 %v3461
  %3491 = vmatprep.subr.mxu0 0.0
  %3492 = vmatpush1.msra.mxu0 %v3462
  %3493 = vmatprep.subr.mxu0 0.0
  %3494 = vmatpush1.msra.mxu0 0.0
  %3495 = vmatprep.subr.mxu0 0.0
  %3496 = vmatpush1.msra.mxu0 0.0
  %3497 = vmatprep.subr.mxu0 0.0
  %3498 = vmatpush1.msra.mxu0 0.0
  %3499 = vmatprep.subr.mxu0 0.0
  %3500 = vmatpush1.msra.mxu0 0.0
  %3501 = vmatprep.subr.mxu0 0.0
  %3502 = vmatpush1.msra.mxu0 0.0
  %3503 = vmatprep.subr.mxu0 0.0
  %3504 = vmatpush1.msra.mxu0 0.0
  %3505 = vmatprep.subr.mxu0 0.0
  %3506 = vmatpush1.msra.mxu0 0.0
  %3507 = vmatprep.subr.mxu0 0.0
  %3508 = vmatpush1.msra.mxu0 0.0
  %3509 = vmatprep.subr.mxu0 0.0
  %3510 = vmatpush1.msra.mxu0 0.0
  %3511 = vmatprep.subr.mxu0 0.0
  %3512 = vmatpush1.msra.mxu0 0.0
  %3513 = vmatprep.subr.mxu0 0.0
  %3514 = vmatpush1.msra.mxu0 0.0
  %3515 = vmatprep.subr.mxu0 0.0
  %3516 = vmatpush1.msra.mxu0 0.0
  %3517 = vmatprep.subr.mxu0 0.0
  %3518 = vmatpush1.msra.mxu0 0.0
  %3519 = vmatprep.subr.mxu0 0.0
  %3520 = vmatpush1.msra.mxu0 0.0
  %3521 = vmatprep.subr.mxu0 0.0
  %3522 = vmatpush1.msra.mxu0 0.0
  %3523 = vmatprep.subr.mxu0 0.0
  %3524 = vmatpush1.msra.mxu0 0.0
  %3525 = vmatprep.subr.mxu0 0.0
  %3526 = vmatpush1.msra.mxu0 0.0
  %3527 = vmatprep.subr.mxu0 0.0
  %3528 = vmatpush1.msra.mxu0 0.0
  %3529 = vmatprep.subr.mxu0 0.0
  %3530 = vmatpush1.msra.mxu0 0.0
  %3531 = vmatprep.subr.mxu0 0.0
  %3532 = vmatpush1.msra.mxu0 0.0
  %3533 = vmatprep.subr.mxu0 0.0
  %3534 = vmatpush1.msra.mxu0 0.0
  %3535 = vmatprep.subr.mxu0 0.0
  %3536 = vmatpush1.msra.mxu0 0.0
  %3537 = vmatprep.subr.mxu0 0.0
  %3538 = vmatpush1.msra.mxu0 0.0
  %3539 = vmatprep.subr.mxu0 0.0
  %3540 = vmatpush1.msra.mxu0 0.0
  %3541 = vmatprep.mubr.f32.mxu0 0.0
  %3542 = vmatmul.mubr.f32.gmra.mrb[0].mxu0 %v3475
  %v3543 = vpop.f32.mrb[0].mxu0
  %v3544 = vadd.f32 0.0, %v3543
  %v3545 = vpop.f32.mrb[0].mxu0
  %3546 = vdwg.mxu0
  %v3547 = vpack.c.bf16 %v3544, %v3544
  %v3548 = vld [vmem:[%s24] sm:$0xf]
  %v3549 = vld [vmem:[%s24 + $0x4] sm:$0xf]
  %v3550 = vld [vmem:[%s24 + $0x8] sm:$0xf]
  %v3551 = vld [vmem:[%s24 + $0xc] sm:$0xf]
  %v3552 = vld [vmem:[%s24 + $0x10] sm:$0xf]
  %v3553 = vld [vmem:[%s24 + $0x14] sm:$0xf]
  %v3554 = vld [vmem:[%s24 + $0x18] sm:$0xf]
  %v3555 = vld [vmem:[%s24 + $0x1c] sm:$0xf]
  %v3556 = vld [vmem:[%s24 + $0x20] sm:$0xf]
  %v3557 = vld [vmem:[%s24 + $0x24] sm:$0xf]
  %v3558 = vld [vmem:[%s24 + $0x28] sm:$0xf]
  %v3559 = vld [vmem:[%s24 + $0x2c] sm:$0xf]
  %v3560 = vld [vmem:[%s24 + $0x30] sm:$0xf]
  %v3561 = vld [vmem:[%s24 + $0x34] sm:$0xf]
  %v3562 = vld [vmem:[%s24 + $0x38] sm:$0xf]
  %v3563 = vld [vmem:[%s24 + $0x3c] sm:$0xf]
  %v3564 = vld [vmem:[%s25] sm:$0x1]
  %v3566 = vlaneseq
  %v3567 = vshrl.u32 %v3566, 7
  %v3568 = vsub.s32 0, %v3567
  %v3569 = vrot.slane %v3564, %v3568
  %v3587 = vunpack.c.l.b16 %v3548
  %v3588 = vunpack.c.l.b16 %v3549
  %v3589 = vunpack.c.l.b16 %v3550
  %v3590 = vunpack.c.l.b16 %v3551
  %v3591 = vunpack.c.l.b16 %v3552
  %v3592 = vunpack.c.l.b16 %v3553
  %v3593 = vunpack.c.l.b16 %v3554
  %v3594 = vunpack.c.l.b16 %v3555
  %v3595 = vunpack.c.l.b16 %v3556
  %v3596 = vunpack.c.l.b16 %v3557
  %v3597 = vunpack.c.l.b16 %v3558
  %v3598 = vunpack.c.l.b16 %v3559
  %v3599 = vunpack.c.l.b16 %v3560
  %v3600 = vunpack.c.l.b16 %v3561
  %v3601 = vunpack.c.l.b16 %v3562
  %v3602 = vunpack.c.l.b16 %v3563
  %v3603 = vpack.c.b16 %v3588, %v3587
  %v3604 = vpack.c.b16 %v3590, %v3589
  %v3605 = vpack.c.b16 %v3592, %v3591
  %v3606 = vpack.c.b16 %v3594, %v3593
  %v3607 = vpack.c.b16 %v3596, %v3595
  %v3608 = vpack.c.b16 %v3598, %v3597
  %v3609 = vpack.c.b16 %v3600, %v3599
  %v3610 = vpack.c.b16 %v3602, %v3601
  %3619 = vmatprep.subr.bf16.mxu0 0
  %3620 = vmatpush1.bf16.msra.mxu0 %v3603
  %3621 = vmatprep.subr.bf16.mxu0 0
  %3622 = vmatpush1.bf16.msra.mxu0 %v3604
  %3623 = vmatprep.subr.bf16.mxu0 0
  %3624 = vmatpush1.bf16.msra.mxu0 %v3605
  %3625 = vmatprep.subr.bf16.mxu0 0
  %3626 = vmatpush1.bf16.msra.mxu0 %v3606
  %3627 = vmatprep.subr.bf16.mxu0 0
  %3628 = vmatpush1.bf16.msra.mxu0 %v3607
  %3629 = vmatprep.subr.bf16.mxu0 0
  %3630 = vmatpush1.bf16.msra.mxu0 %v3608
  %3631 = vmatprep.subr.bf16.mxu0 0
  %3632 = vmatpush1.bf16.msra.mxu0 %v3609
  %3633 = vmatprep.subr.bf16.mxu0 0
  %3634 = vmatpush1.bf16.msra.mxu0 %v3610
  %3635 = vmatprep.subr.bf16.mxu0 0
  %3636 = vmatpush1.bf16.msra.mxu0 0
  %3637 = vmatprep.subr.bf16.mxu0 0
  %3638 = vmatpush1.bf16.msra.mxu0 0
  %3639 = vmatprep.subr.bf16.mxu0 0
  %3640 = vmatpush1.bf16.msra.mxu0 0
  %3641 = vmatprep.subr.bf16.mxu0 0
  %3642 = vmatpush1.bf16.msra.mxu0 0
  %3643 = vmatprep.subr.bf16.mxu0 0
  %3644 = vmatpush1.bf16.msra.mxu0 0
  %3645 = vmatprep.subr.bf16.mxu0 0
  %3646 = vmatpush1.bf16.msra.mxu0 0
  %3647 = vmatprep.subr.bf16.mxu0 0
  %3648 = vmatpush1.bf16.msra.mxu0 0
  %3649 = vmatprep.subr.bf16.mxu0 0
  %3650 = vmatpush1.bf16.msra.mxu0 0
  %3651 = vmatprep.mubr.bf16.mxu0 0
  %3652 = vmatmul.mubr.bf16.gmra.mrb[0].mxu0 %v3547
  %v3653 = vpop.f32.mrb[0].mxu0
  %v3654 = vadd.f32 %v3569, %v3653
  %v3655 = vpop.f32.mrb[0].mxu0
  %v3656 = vpop.f32.mrb[0].mxu0
  %v3657 = vpop.f32.mrb[0].mxu0
  %3658 = vdwg.mxu0
  %v3659 = vtanh.pop %v3654
  %v3660 = vpack.c.bf16 %v3659, %v3659
  %v3661 = vld [vmem:[%s26] sm:$0xf]
  %v3662 = vld [vmem:[%s26 + $0x4] sm:$0xf]
  %v3663 = vld [vmem:[%s26 + $0x8] sm:$0xf]
  %v3664 = vld [vmem:[%s26 + $0xc] sm:$0xf]
  %v3665 = vld [vmem:[%s26 + $0x10] sm:$0xf]
  %v3666 = vld [vmem:[%s26 + $0x14] sm:$0xf]
  %v3667 = vld [vmem:[%s26 + $0x18] sm:$0xf]
  %v3668 = vld [vmem:[%s26 + $0x1c] sm:$0xf]
  %v3669 = vld [vmem:[%s26 + $0x20] sm:$0xf]
  %v3670 = vld [vmem:[%s26 + $0x24] sm:$0xf]
  %v3671 = vld [vmem:[%s26 + $0x28] sm:$0xf]
  %v3672 = vld [vmem:[%s26 + $0x2c] sm:$0xf]
  %v3673 = vld [vmem:[%s26 + $0x30] sm:$0xf]
  %v3674 = vld [vmem:[%s26 + $0x34] sm:$0xf]
  %v3675 = vld [vmem:[%s26 + $0x38] sm:$0xf]
  %v3676 = vld [vmem:[%s26 + $0x3c] sm:$0xf]
  %v3677 = vld [vmem:[%s27] sm:$0x1]
  %v3679 = vlaneseq
  %v3680 = vshrl.u32 %v3679, 7
  %v3681 = vsub.s32 0, %v3680
  %v3682 = vrot.slane %v3677, %v3681
  %v3700 = vunpack.c.l.b16 %v3661
  %v3701 = vunpack.c.l.b16 %v3662
  %v3702 = vunpack.c.l.b16 %v3663
  %v3703 = vunpack.c.l.b16 %v3664
  %v3704 = vunpack.c.l.b16 %v3665
  %v3705 = vunpack.c.l.b16 %v3666
  %v3706 = vunpack.c.l.b16 %v3667
  %v3707 = vunpack.c.l.b16 %v3668
  %v3708 = vunpack.c.l.b16 %v3669
  %v3709 = vunpack.c.l.b16 %v3670
  %v3710 = vunpack.c.l.b16 %v3671
  %v3711 = vunpack.c.l.b16 %v3672
  %v3712 = vunpack.c.l.b16 %v3673
  %v3713 = vunpack.c.l.b16 %v3674
  %v3714 = vunpack.c.l.b16 %v3675
  %v3715 = vunpack.c.l.b16 %v3676
  %v3716 = vpack.c.b16 %v3701, %v3700
  %v3717 = vpack.c.b16 %v3703, %v3702
  %v3718 = vpack.c.b16 %v3705, %v3704
  %v3719 = vpack.c.b16 %v3707, %v3706
  %v3720 = vpack.c.b16 %v3709, %v3708
  %v3721 = vpack.c.b16 %v3711, %v3710
  %v3722 = vpack.c.b16 %v3713, %v3712
  %v3723 = vpack.c.b16 %v3715, %v3714
  %3732 = vmatprep.subr.bf16.mxu0 0
  %3733 = vmatpush1.bf16.msra.mxu0 %v3716
  %3734 = vmatprep.subr.bf16.mxu0 0
  %3735 = vmatpush1.bf16.msra.mxu0 %v3717
  %3736 = vmatprep.subr.bf16.mxu0 0
  %3737 = vmatpush1.bf16.msra.mxu0 %v3718
  %3738 = vmatprep.subr.bf16.mxu0 0
  %3739 = vmatpush1.bf16.msra.mxu0 %v3719
  %3740 = vmatprep.subr.bf16.mxu0 0
  %3741 = vmatpush1.bf16.msra.mxu0 %v3720
  %3742 = vmatprep.subr.bf16.mxu0 0
  %3743 = vmatpush1.bf16.msra.mxu0 %v3721
  %3744 = vmatprep.subr.bf16.mxu0 0
  %3745 = vmatpush1.bf16.msra.mxu0 %v3722
  %3746 = vmatprep.subr.bf16.mxu0 0
  %3747 = vmatpush1.bf16.msra.mxu0 %v3723
  %3748 = vmatprep.subr.bf16.mxu0 0
  %3749 = vmatpush1.bf16.msra.mxu0 0
  %3750 = vmatprep.subr.bf16.mxu0 0
  %3751 = vmatpush1.bf16.msra.mxu0 0
  %3752 = vmatprep.subr.bf16.mxu0 0
  %3753 = vmatpush1.bf16.msra.mxu0 0
  %3754 = vmatprep.subr.bf16.mxu0 0
  %3755 = vmatpush1.bf16.msra.mxu0 0
  %3756 = vmatprep.subr.bf16.mxu0 0
  %3757 = vmatpush1.bf16.msra.mxu0 0
  %3758 = vmatprep.subr.bf16.mxu0 0
  %3759 = vmatpush1.bf16.msra.mxu0 0
  %3760 = vmatprep.subr.bf16.mxu0 0
  %3761 = vmatpush1.bf16.msra.mxu0 0
  %3762 = vmatprep.subr.bf16.mxu0 0
  %3763 = vmatpush1.bf16.msra.mxu0 0
  %3764 = vmatprep.mubr.bf16.mxu0 0
  %3765 = vmatmul.mubr.bf16.gmra.mrb[0].mxu0 %v3660
  %v3766 = vpop.f32.mrb[0].mxu0
  %v3767 = vadd.f32 %v3682, %v3766
  %v3768 = vpop.f32.mrb[0].mxu0
  %v3769 = vpop.f32.mrb[0].mxu0
  %v3770 = vpop.f32.mrb[0].mxu0
  %3771 = vdwg.mxu0
  %3772 = vst [vmem:[%s28] sm:$0xff] %v3767
  // Predicated region
  $region114: #{vlnce_forward.1} parent=0 // pred_check
    _
  $region115: #{vlnce_forward.1} parent=0 // pred_check_branch
    %3774 = sbr.rel (0) target = $region117
  $region116: #{vlnce_forward.1} parent=0 // pred_region
    _
  $region117: #{vlnce_forward.1} parent=0 // pred_fallthru
    _
  // Predicated region
  $region118: #{vlnce_forward.1} parent=0 // pred_check
    _
  $region119: #{vlnce_forward.1} parent=0 // pred_check_branch
    %3776 = sbr.rel (0) target = $region121
  $region120: #{vlnce_forward.1} parent=0 // pred_region
    _
  $region121: #{vlnce_forward.1} parent=0 // pred_fallthru
    _

</llo_original>
